<compile_context>
chip_gen: v7x
topology: tpu7x:2x2x1
jax: 0.10.0
libtpu: 0.0.40
codegen_flags: <defaults>
</compile_context>

<pallas_src>
import math
from functools import partial

import jax
import jax.numpy as jnp
import numpy as np
from jax.experimental import pallas as pl
from jax.experimental.pallas import tpu as pltpu

# ----------------------------- configuration --------------------------------
NC = 3                      # number of classes (small for the demo)
NO = NC + 5                 # outputs per anchor
ANCHORS = np.array([[10, 13, 16, 30, 33, 23],
                    [30, 61, 62, 45, 59, 119],
                    [116, 90, 156, 198, 373, 326]], dtype=np.float32)
NL = ANCHORS.shape[0]       # number of detection levels
NA = ANCHORS.shape[1] // 2  # anchors per level
STRIDES = np.array([8.0, 16.0, 32.0], dtype=np.float32)

# backbone spec: (cin, cout, k, stride)
BACKBONE = [(3, 16, 3, 2), (16, 32, 3, 2), (32, 32, 3, 2),
            (32, 64, 3, 2), (64, 64, 3, 2)]
FEAT_IDX = (2, 3, 4)        # which backbone outputs feed Detect (P3, P4, P5)
DETECT_CIN = (32, 64, 64)

LANE = 128                  # TPU lane width; output channels padded to this
TM_TARGET = 512             # M-tile (rows) per grid step
VMEM_LIMIT = 32 * 1024 * 1024


# ------------------------------ Pallas kernels -------------------------------
def _matmul_bias_act_kernel(x_ref, w_ref, b_ref, o_ref, *, act):
    """bf16 (tm,K)@(K,Npad) on MXU, f32 bias + SiLU epilogue, lane-dense store."""
    acc = jnp.dot(x_ref[...], w_ref[...], preferred_element_type=jnp.float32)
    acc = acc + b_ref[...]
    if act:
        acc = acc * jax.nn.sigmoid(acc)          # SiLU (f32 VPU/EUP)
    o_ref[...] = acc.astype(o_ref.dtype)


def _detect_decode_kernel(x_ref, w_ref, b_ref, gx_ref, gy_ref,
                          selx_ref, sely_ref, iswh_ref, anch_ref,
                          raw_ref, dec_ref, *, stride):
    """Detect-head 1x1 conv with the YOLO decode fused into the epilogue.

    Emits both the raw logits (the `x[i]` list output) and the decoded boxes
    from the same f32 accumulator.  Column layout is (a*NO + r), padded to 128.
    """
    logits = jnp.dot(x_ref[...], w_ref[...], preferred_element_type=jnp.float32)
    logits = logits + b_ref[...]
    raw_ref[...] = logits.astype(raw_ref.dtype)

    sig = jax.nn.sigmoid(logits)                 # (tm, Npad) f32
    selx = selx_ref[...]                         # (1, Npad): 1 where r == 0
    sely = sely_ref[...]                         # (1, Npad): 1 where r == 1
    iswh = iswh_ref[...]                         # (1, Npad): 1 where r in {2,3}
    anch = anch_ref[...]                         # (1, Npad): anchor w/h at r=2/3
    isxy = selx + sely

    grid_v = selx * gx_ref[...] + sely * gy_ref[...]      # (tm, Npad)
    xy = (sig * 2.0 - 0.5 + grid_v) * stride
    wh = (sig * 2.0) ** 2 * anch
    dec = isxy * xy + iswh * wh + (1.0 - isxy - iswh) * sig
    dec_ref[...] = dec.astype(dec_ref.dtype)


# ------------------------------ helpers --------------------------------------
def _round_up(v, m):
    return (v + m - 1) // m * m


def _pad_lanes(a, npad):
    n = a.shape[-1]
    if n == npad:
        return a
    pad = [(0, 0)] * (a.ndim - 1) + [(0, npad - n)]
    return jnp.pad(a, pad)


def _choose_tm(M):
    # full-array block when small (always legal), else a multiple-of-8/16 tile
    return M if M <= TM_TARGET else TM_TARGET


# ------------------------- tiled matmul + SiLU (convs) ------------------------
def pallas_matmul_bias(x, w, b, act=False):
    """(M,K)@(K,N)+b with optional fused SiLU.

    bf16 MXU operands, f32 epilogue, N padded to a multiple of 128 lanes
    (pad sliced off afterwards), M tiled on a parallel grid.
    """
    M, K = x.shape
    N = w.shape[1]
    Npad = _round_up(max(N, LANE), LANE)
    wp = _pad_lanes(w.astype(jnp.bfloat16), Npad)
    bp = _pad_lanes(b.reshape(1, N).astype(jnp.float32), Npad)
    tm = _choose_tm(M)
    out = pl.pallas_call(
        partial(_matmul_bias_act_kernel, act=act),
        out_shape=jax.ShapeDtypeStruct((M, Npad), jnp.bfloat16),
        grid=(pl.cdiv(M, tm),),
        in_specs=[pl.BlockSpec((tm, K), lambda i: (i, 0)),
                  pl.BlockSpec((K, Npad), lambda i: (0, 0)),
                  pl.BlockSpec((1, Npad), lambda i: (0, 0))],
        out_specs=pl.BlockSpec((tm, Npad), lambda i: (i, 0)),
        compiler_params=pltpu.CompilerParams(
            dimension_semantics=("parallel",),
            vmem_limit_bytes=VMEM_LIMIT),
    )(x.astype(jnp.bfloat16), wp, bp)
    return out[:, :N] if Npad != N else out


# ------------------------------ conv via im2col ------------------------------
def _im2col(x_nhwc, kh, kw, stride):
    B, H, W, Cin = x_nhwc.shape
    ph, pw = kh // 2, kw // 2
    xp = jnp.pad(x_nhwc, ((0, 0), (ph, ph), (pw, pw), (0, 0)))
    Ho = (H + 2 * ph - kh) // stride + 1
    Wo = (W + 2 * pw - kw) // stride + 1
    patches = []
    for ky in range(kh):
        for kx in range(kw):
            patches.append(xp[:, ky:ky + stride * Ho:stride,
                              kx:kx + stride * Wo:stride, :])
    p = jnp.concatenate(patches, axis=-1)         # (B, Ho, Wo, kh*kw*Cin)
    return p, Ho, Wo


def conv2d_pallas(x_nhwc, w_oihw, b, stride, act):
    Cout, Cin, kh, kw = w_oihw.shape
    p, Ho, Wo = _im2col(x_nhwc.astype(jnp.bfloat16), kh, kw, stride)
    B = x_nhwc.shape[0]
    pm = p.reshape(B * Ho * Wo, kh * kw * Cin)
    wm = jnp.transpose(w_oihw, (2, 3, 1, 0)).reshape(kh * kw * Cin, Cout)
    y = pallas_matmul_bias(pm, wm, b, act=act)        # bf16 (M, Cout)
    return y.reshape(B, Ho, Wo, Cout)


def conv2d_ref(x_nhwc, w_oihw, b, stride, act):
    """Pure-JAX reference mirroring the bf16-operand / f32-accumulate path."""
    Cout, Cin, kh, kw = w_oihw.shape
    p, Ho, Wo = _im2col(x_nhwc.astype(jnp.bfloat16), kh, kw, stride)
    B = x_nhwc.shape[0]
    pm = p.reshape(B * Ho * Wo, kh * kw * Cin).astype(jnp.float32)
    wm = jnp.transpose(w_oihw, (2, 3, 1, 0)).reshape(kh * kw * Cin, Cout)
    wm = wm.astype(jnp.bfloat16).astype(jnp.float32)
    y = jnp.dot(pm, wm, precision=jax.lax.Precision.HIGHEST) + b[None, :]
    if act:
        y = y * jax.nn.sigmoid(y)
    return y.astype(jnp.bfloat16).reshape(B, Ho, Wo, Cout)


# ---------------------------- Detect head (fused) -----------------------------
def _detect_col_aux(anchors_l, npad):
    """Per-column (column = a*NO + r) masks/anchors, zero in the lane padding."""
    selx = np.zeros((1, npad), np.float32)
    sely = np.zeros((1, npad), np.float32)
    iswh = np.zeros((1, npad), np.float32)
    anch = np.zeros((1, npad), np.float32)
    for a in range(NA):
        base = a * NO
        selx[0, base + 0] = 1.0
        sely[0, base + 1] = 1.0
        iswh[0, base + 2] = 1.0
        iswh[0, base + 3] = 1.0
        anch[0, base + 2] = anchors_l[a, 0]
        anch[0, base + 3] = anchors_l[a, 1]
    return tuple(jnp.asarray(v) for v in (selx, sely, iswh, anch))


def _row_grid(B, ny, nx):
    """Per-row (row order = (b, gy, gx)) grid-x / grid-y columns, shape (M, 1)."""
    gy, gx = np.meshgrid(np.arange(ny, dtype=np.float32),
                         np.arange(nx, dtype=np.float32), indexing="ij")
    gx_rows = np.ascontiguousarray(
        np.broadcast_to(gx[None], (B, ny, nx))).reshape(-1, 1)
    gy_rows = np.ascontiguousarray(
        np.broadcast_to(gy[None], (B, ny, nx))).reshape(-1, 1)
    return jnp.asarray(gx_rows), jnp.asarray(gy_rows)


def detect_head_pallas(f_nhwc, w_oihw, b, anchors_l, stride_l):
    B, ny, nx, Cin = f_nhwc.shape
    Cout = NA * NO
    Npad = _round_up(max(Cout, LANE), LANE)
    M = B * ny * nx
    xm = f_nhwc.reshape(M, Cin).astype(jnp.bfloat16)
    wm = jnp.transpose(w_oihw, (2, 3, 1, 0)).reshape(Cin, Cout)
    wp = _pad_lanes(wm.astype(jnp.bfloat16), Npad)
    bp = _pad_lanes(b.reshape(1, Cout).astype(jnp.float32), Npad)
    gx_rows, gy_rows = _row_grid(B, ny, nx)
    selx, sely, iswh, anch = _detect_col_aux(anchors_l, Npad)

    tm = _choose_tm(M)
    vec_spec = pl.BlockSpec((1, Npad), lambda i: (0, 0))
    row_spec = pl.BlockSpec((tm, 1), lambda i: (i, 0))
    raw, dec = pl.pallas_call(
        partial(_detect_decode_kernel, stride=float(stride_l)),
        out_shape=(jax.ShapeDtypeStruct((M, Npad), jnp.float32),
                   jax.ShapeDtypeStruct((M, Npad), jnp.float32)),
        grid=(pl.cdiv(M, tm),),
        in_specs=[pl.BlockSpec((tm, Cin), lambda i: (i, 0)),
                  pl.BlockSpec((Cin, Npad), lambda i: (0, 0)),
                  vec_spec,            # bias
                  row_spec, row_spec,  # gx, gy
                  vec_spec, vec_spec, vec_spec, vec_spec],
        out_specs=(pl.BlockSpec((tm, Npad), lambda i: (i, 0)),
                   pl.BlockSpec((tm, Npad), lambda i: (i, 0))),
        compiler_params=pltpu.CompilerParams(
            dimension_semantics=("parallel",),
            vmem_limit_bytes=VMEM_LIMIT),
    )(xm, wp, bp, gx_rows, gy_rows, selx, sely, iswh, anch)

    raw5 = raw[:, :Cout].reshape(B, ny, nx, NA, NO).transpose(0, 3, 1, 2, 4)
    dec5 = dec[:, :Cout].reshape(B, ny, nx, NA, NO).transpose(0, 3, 1, 2, 4)
    z = dec5.reshape(B, NA * ny * nx, NO)
    return raw5, z


def detect_head_ref(f_nhwc, w_oihw, b, anchors_l, stride_l):
    B, ny, nx, Cin = f_nhwc.shape
    Cout = NA * NO
    xm = f_nhwc.reshape(-1, Cin).astype(jnp.bfloat16).astype(jnp.float32)
    wm = jnp.transpose(w_oihw, (2, 3, 1, 0)).reshape(Cin, Cout)
    wm = wm.astype(jnp.bfloat16).astype(jnp.float32)
    logits = jnp.dot(xm, wm, precision=jax.lax.Precision.HIGHEST) + b[None, :]
    raw5 = logits.reshape(B, ny, nx, NA, NO).transpose(0, 3, 1, 2, 4)
    sig = jax.nn.sigmoid(raw5)
    gy, gx = jnp.meshgrid(jnp.arange(ny, dtype=jnp.float32),
                          jnp.arange(nx, dtype=jnp.float32), indexing="ij")
    grid = jnp.stack((gx, gy), axis=-1)[None, None]            # (1,1,ny,nx,2)
    anchor = jnp.asarray(anchors_l).reshape(1, NA, 1, 1, 2)
    xy = (sig[..., 0:2] * 2.0 - 0.5 + grid) * float(stride_l)
    wh = (sig[..., 2:4] * 2.0) ** 2 * anchor
    dec = jnp.concatenate([xy, wh, sig[..., 4:]], axis=-1)
    return raw5, dec.reshape(B, NA * ny * nx, NO)


# ------------------------------ parameter init --------------------------------
def init_params(key):
    params = {"backbone": [], "detect": []}
    keys = jax.random.split(key, len(BACKBONE) + NL)
    for i, (cin, cout, k, s) in enumerate(BACKBONE):
        fan_in = cin * k * k
        w = jax.random.normal(keys[i], (cout, cin, k, k), jnp.float32) / math.sqrt(fan_in)
        b = jnp.zeros((cout,), jnp.float32)
        params["backbone"].append((w, b))
    # Detect 1x1 convolutions + YOLO bias initialization (_initialize_biases)
    for li in range(NL):
        cin = DETECT_CIN[li]
        w = jax.random.normal(keys[len(BACKBONE) + li],
                              (NA * NO, cin, 1, 1), jnp.float32) / math.sqrt(cin)
        b = np.zeros((NA, NO), dtype=np.float32)
        s = STRIDES[li]
        b[:, 4] += math.log(8.0 / (640.0 / s) ** 2)
        b[:, 5:] += math.log(0.6 / (NC - 0.99))
        params["detect"].append((w, jnp.asarray(b.reshape(-1))))
    return params


# --------------------------------- forward -----------------------------------
def _backbone(params, x_nchw, conv_fn):
    x = jnp.transpose(x_nchw, (0, 2, 3, 1)).astype(jnp.float32)   # NCHW -> NHWC
    feats = []
    for i, (w, b) in enumerate(params["backbone"]):
        x = conv_fn(x, w, b, BACKBONE[i][3], True)
        if i in FEAT_IDX:
            feats.append(x)
    return feats


def _forward(params, x_nchw, conv_fn, head_fn):
    feats = _backbone(params, x_nchw, conv_fn)
    anchors3 = ANCHORS.reshape(NL, NA, 2)
    raws, zs = [], []
    for li, ((w, b), f) in enumerate(zip(params["detect"], feats)):
        raw5, z = head_fn(f, w, b, anchors3[li], STRIDES[li])
        raws.append(raw5)
        zs.append(z)
    pred = jnp.concatenate(zs, axis=1)            # torch.cat(z, 1)
    return pred, raws


@jax.jit
def model_forward(params, x_nchw):
    """Eval-mode Model.forward: returns (torch.cat(z, 1), x_list)."""
    return _forward(params, x_nchw, conv2d_pallas, detect_head_pallas)


def model_forward_ref(params, x_nchw):
    return _forward(params, x_nchw, conv2d_ref, detect_head_ref)


# ----------------------------------- main -------------------------------------
if __name__ == "__main__":
    key = jax.random.PRNGKey(0)
    pkey, xkey = jax.random.split(key)
    params = init_params(pkey)
    x = jax.random.normal(xkey, (2, 3, 64, 64), jnp.float32)       # NCHW input

    pred, raw = model_forward(params, x)
    pred = jax.block_until_ready(pred)
    raw = [jax.block_until_ready(r) for r in raw]

    pred_ref, raw_ref = model_forward_ref(params, x)
    np.testing.assert_allclose(np.asarray(pred), np.asarray(pred_ref),
                               rtol=2e-2, atol=2e-2)
    for r, rr in zip(raw, raw_ref):
        np.testing.assert_allclose(np.asarray(r), np.asarray(rr),
                                   rtol=2e-2, atol=2e-2)

    # shape sanity: A_total = sum(na*ny*nx) over levels = 3*(64+16+4) = 252
    assert pred.shape == (2, 252, NO)
    assert raw[0].shape == (2, NA, 8, 8, NO)
    assert raw[1].shape == (2, NA, 4, 4, NO)
    assert raw[2].shape == (2, NA, 2, 2, NO)

    print("KERNEL_OK")
</pallas_src>

<mosaic_0001>
module attributes {stable_mosaic.version = 11 : i64} {
  func.func @_matmul_bias_act_kernel(%arg0: i32, %arg1: memref<512x27xbf16, #tpu.memory_space<vmem>>, %arg2: memref<27x128xbf16, #tpu.memory_space<vmem>>, %arg3: memref<1x128xf32, #tpu.memory_space<vmem>>, %arg4: memref<512x128xbf16, #tpu.memory_space<vmem>>) attributes {dimension_semantics = [#tpu.dimension_semantics<parallel>], iteration_bounds = array<i64: 4>, scalar_prefetch = 0 : i64, scratch_operands = 0 : i64, tpu.core_type = #tpu.core_type<tc>, window_params = [{transform_indices = @transform_0, window_bounds = array<i64: 512, 27>}, {pipeline_mode = #tpu.pipeline_mode<synchronous>, transform_indices = @transform_1, window_bounds = array<i64: 27, 128>}, {pipeline_mode = #tpu.pipeline_mode<synchronous>, transform_indices = @transform_2, window_bounds = array<i64: 1, 128>}, {transform_indices = @transform_3, window_bounds = array<i64: 512, 128>}]} {
    %c0 = arith.constant 0 : index
    %c0_0 = arith.constant 0 : index
    %0 = vector.load %arg1[%c0, %c0_0] : memref<512x27xbf16, #tpu.memory_space<vmem>>, vector<512x27xbf16>
    %c0_1 = arith.constant 0 : index
    %c0_2 = arith.constant 0 : index
    %1 = vector.load %arg2[%c0_1, %c0_2] : memref<27x128xbf16, #tpu.memory_space<vmem>>, vector<27x128xbf16>
    %cst = arith.constant dense<0.000000e+00> : vector<512x128xf32>
    %2 = tpu.matmul %0, %1, %cst {dimension_numbers = #tpu.dot_dimension_numbers<[1], [0], [0], [1], [0, 0, 1, 1], [], []>} : vector<512x27xbf16>, vector<27x128xbf16>, vector<512x128xf32> -> vector<512x128xf32>
    %c0_3 = arith.constant 0 : index
    %c0_4 = arith.constant 0 : index
    %3 = vector.load %arg3[%c0_3, %c0_4] : memref<1x128xf32, #tpu.memory_space<vmem>>, vector<1x128xf32>
    %4 = vector.broadcast %3 : vector<1x128xf32> to vector<512x128xf32>
    %5 = arith.addf %2, %4 : vector<512x128xf32>
    %6 = arith.negf %5 : vector<512x128xf32>
    %7 = math.exp %6 : vector<512x128xf32>
    %cst_5 = arith.constant 1.000000e+00 : f32
    %8 = vector.broadcast %cst_5 : f32 to vector<512x128xf32>
    %9 = arith.addf %8, %7 : vector<512x128xf32>
    %10 = arith.divf %8, %9 : vector<512x128xf32>
    %11 = arith.mulf %5, %10 : vector<512x128xf32>
    %12 = arith.truncf %11 : vector<512x128xf32> to vector<512x128xbf16>
    %c0_6 = arith.constant 0 : index
    %c0_7 = arith.constant 0 : index
    %13 = vector.load %arg4[%c0_6, %c0_7] : memref<512x128xbf16, #tpu.memory_space<vmem>>, vector<512x128xbf16>
    tpu.vector_store %arg4[%c0_6, %c0_7], %12 {strides = array<i32>} : memref<512x128xbf16, #tpu.memory_space<vmem>>, vector<512x128xbf16>,
    return
  }
  func.func @transform_0(%arg0: i32) -> (i32, i32) {
    %c0_i32 = arith.constant 0 : i32
    %c0_i32_0 = arith.constant 0 : i32
    return %arg0, %c0_i32 : i32, i32
  }
  func.func @transform_1(%arg0: i32) -> (i32, i32) {
    %c0_i32 = arith.constant 0 : i32
    %c0_i32_0 = arith.constant 0 : i32
    %c0_i32_1 = arith.constant 0 : i32
    return %c0_i32, %c0_i32_0 : i32, i32
  }
  func.func @transform_2(%arg0: i32) -> (i32, i32) {
    %c0_i32 = arith.constant 0 : i32
    %c0_i32_0 = arith.constant 0 : i32
    %c0_i32_1 = arith.constant 0 : i32
    return %c0_i32, %c0_i32_0 : i32, i32
  }
  func.func @transform_3(%arg0: i32) -> (i32, i32) {
    %c0_i32 = arith.constant 0 : i32
    %c0_i32_0 = arith.constant 0 : i32
    return %arg0, %c0_i32 : i32, i32
  }
}

module attributes {stable_mosaic.version = 11 : i64} {
  func.func @_matmul_bias_act_kernel(%arg0: i32, %arg1: memref<512x144xbf16, #tpu.memory_space<vmem>>, %arg2: memref<144x128xbf16, #tpu.memory_space<vmem>>, %arg3: memref<1x128xf32, #tpu.memory_space<vmem>>, %arg4: memref<512x128xbf16, #tpu.memory_space<vmem>>) attributes {dimension_semantics = [#tpu.dimension_semantics<parallel>], iteration_bounds = array<i64: 1>, scalar_prefetch = 0 : i64, scratch_operands = 0 : i64, tpu.core_type = #tpu.core_type<tc>, window_params = [{transform_indices = @transform_0, window_bounds = array<i64: 512, 144>}, {pipeline_mode = #tpu.pipeline_mode<synchronous>, transform_indices = @transform_1, window_bounds = array<i64: 144, 128>}, {pipeline_mode = #tpu.pipeline_mode<synchronous>, transform_indices = @transform_2, window_bounds = array<i64: 1, 128>}, {transform_indices = @transform_3, window_bounds = array<i64: 512, 128>}]} {
    %c0 = arith.constant 0 : index
    %c0_0 = arith.constant 0 : index
    %0 = vector.load %arg1[%c0, %c0_0] : memref<512x144xbf16, #tpu.memory_space<vmem>>, vector<512x144xbf16>
    %c0_1 = arith.constant 0 : index
    %c0_2 = arith.constant 0 : index
    %1 = vector.load %arg2[%c0_1, %c0_2] : memref<144x128xbf16, #tpu.memory_space<vmem>>, vector<144x128xbf16>
    %cst = arith.constant dense<0.000000e+00> : vector<512x128xf32>
    %2 = tpu.matmul %0, %1, %cst {dimension_numbers = #tpu.dot_dimension_numbers<[1], [0], [0], [1], [0, 0, 1, 1], [], []>} : vector<512x144xbf16>, vector<144x128xbf16>, vector<512x128xf32> -> vector<512x128xf32>
    %c0_3 = arith.constant 0 : index
    %c0_4 = arith.constant 0 : index
    %3 = vector.load %arg3[%c0_3, %c0_4] : memref<1x128xf32, #tpu.memory_space<vmem>>, vector<1x128xf32>
    %4 = vector.broadcast %3 : vector<1x128xf32> to vector<512x128xf32>
    %5 = arith.addf %2, %4 : vector<512x128xf32>
    %6 = arith.negf %5 : vector<512x128xf32>
    %7 = math.exp %6 : vector<512x128xf32>
    %cst_5 = arith.constant 1.000000e+00 : f32
    %8 = vector.broadcast %cst_5 : f32 to vector<512x128xf32>
    %9 = arith.addf %8, %7 : vector<512x128xf32>
    %10 = arith.divf %8, %9 : vector<512x128xf32>
    %11 = arith.mulf %5, %10 : vector<512x128xf32>
    %12 = arith.truncf %11 : vector<512x128xf32> to vector<512x128xbf16>
    %c0_6 = arith.constant 0 : index
    %c0_7 = arith.constant 0 : index
    %13 = vector.load %arg4[%c0_6, %c0_7] : memref<512x128xbf16, #tpu.memory_space<vmem>>, vector<512x128xbf16>
    tpu.vector_store %arg4[%c0_6, %c0_7], %12 {strides = array<i32>} : memref<512x128xbf16, #tpu.memory_space<vmem>>, vector<512x128xbf16>,
    return
  }
  func.func @transform_0(%arg0: i32) -> (i32, i32) {
    %c0_i32 = arith.constant 0 : i32
    %c0_i32_0 = arith.constant 0 : i32
    return %arg0, %c0_i32 : i32, i32
  }
  func.func @transform_1(%arg0: i32) -> (i32, i32) {
    %c0_i32 = arith.constant 0 : i32
    %c0_i32_0 = arith.constant 0 : i32
    %c0_i32_1 = arith.constant 0 : i32
    return %c0_i32, %c0_i32_0 : i32, i32
  }
  func.func @transform_2(%arg0: i32) -> (i32, i32) {
    %c0_i32 = arith.constant 0 : i32
    %c0_i32_0 = arith.constant 0 : i32
    %c0_i32_1 = arith.constant 0 : i32
    return %c0_i32, %c0_i32_0 : i32, i32
  }
  func.func @transform_3(%arg0: i32) -> (i32, i32) {
    %c0_i32 = arith.constant 0 : i32
    %c0_i32_0 = arith.constant 0 : i32
    return %arg0, %c0_i32 : i32, i32
  }
}

module attributes {stable_mosaic.version = 11 : i64} {
  func.func @_matmul_bias_act_kernel(%arg0: i32, %arg1: memref<128x288xbf16, #tpu.memory_space<vmem>>, %arg2: memref<288x128xbf16, #tpu.memory_space<vmem>>, %arg3: memref<1x128xf32, #tpu.memory_space<vmem>>, %arg4: memref<128x128xbf16, #tpu.memory_space<vmem>>) attributes {dimension_semantics = [#tpu.dimension_semantics<parallel>], iteration_bounds = array<i64: 1>, scalar_prefetch = 0 : i64, scratch_operands = 0 : i64, tpu.core_type = #tpu.core_type<tc>, window_params = [{transform_indices = @transform_0, window_bounds = array<i64: 128, 288>}, {pipeline_mode = #tpu.pipeline_mode<synchronous>, transform_indices = @transform_1, window_bounds = array<i64: 288, 128>}, {pipeline_mode = #tpu.pipeline_mode<synchronous>, transform_indices = @transform_2, window_bounds = array<i64: 1, 128>}, {transform_indices = @transform_3, window_bounds = array<i64: 128, 128>}]} {
    %c0 = arith.constant 0 : index
    %c0_0 = arith.constant 0 : index
    %0 = vector.load %arg1[%c0, %c0_0] : memref<128x288xbf16, #tpu.memory_space<vmem>>, vector<128x288xbf16>
    %c0_1 = arith.constant 0 : index
    %c0_2 = arith.constant 0 : index
    %1 = vector.load %arg2[%c0_1, %c0_2] : memref<288x128xbf16, #tpu.memory_space<vmem>>, vector<288x128xbf16>
    %cst = arith.constant dense<0.000000e+00> : vector<128x128xf32>
    %2 = tpu.matmul %0, %1, %cst {dimension_numbers = #tpu.dot_dimension_numbers<[1], [0], [0], [1], [0, 0, 1, 1], [], []>} : vector<128x288xbf16>, vector<288x128xbf16>, vector<128x128xf32> -> vector<128x128xf32>
    %c0_3 = arith.constant 0 : index
    %c0_4 = arith.constant 0 : index
    %3 = vector.load %arg3[%c0_3, %c0_4] : memref<1x128xf32, #tpu.memory_space<vmem>>, vector<1x128xf32>
    %4 = vector.broadcast %3 : vector<1x128xf32> to vector<128x128xf32>
    %5 = arith.addf %2, %4 : vector<128x128xf32>
    %6 = arith.negf %5 : vector<128x128xf32>
    %7 = math.exp %6 : vector<128x128xf32>
    %cst_5 = arith.constant 1.000000e+00 : f32
    %8 = vector.broadcast %cst_5 : f32 to vector<128x128xf32>
    %9 = arith.addf %8, %7 : vector<128x128xf32>
    %10 = arith.divf %8, %9 : vector<128x128xf32>
    %11 = arith.mulf %5, %10 : vector<128x128xf32>
    %12 = arith.truncf %11 : vector<128x128xf32> to vector<128x128xbf16>
    %c0_6 = arith.constant 0 : index
    %c0_7 = arith.constant 0 : index
    %13 = vector.load %arg4[%c0_6, %c0_7] : memref<128x128xbf16, #tpu.memory_space<vmem>>, vector<128x128xbf16>
    tpu.vector_store %arg4[%c0_6, %c0_7], %12 {strides = array<i32>} : memref<128x128xbf16, #tpu.memory_space<vmem>>, vector<128x128xbf16>,
    return
  }
  func.func @transform_0(%arg0: i32) -> (i32, i32) {
    %c0_i32 = arith.constant 0 : i32
    %c0_i32_0 = arith.constant 0 : i32
    return %arg0, %c0_i32 : i32, i32
  }
  func.func @transform_1(%arg0: i32) -> (i32, i32) {
    %c0_i32 = arith.constant 0 : i32
    %c0_i32_0 = arith.constant 0 : i32
    %c0_i32_1 = arith.constant 0 : i32
    return %c0_i32, %c0_i32_0 : i32, i32
  }
  func.func @transform_2(%arg0: i32) -> (i32, i32) {
    %c0_i32 = arith.constant 0 : i32
    %c0_i32_0 = arith.constant 0 : i32
    %c0_i32_1 = arith.constant 0 : i32
    return %c0_i32, %c0_i32_0 : i32, i32
  }
  func.func @transform_3(%arg0: i32) -> (i32, i32) {
    %c0_i32 = arith.constant 0 : i32
    %c0_i32_0 = arith.constant 0 : i32
    return %arg0, %c0_i32 : i32, i32
  }
}

module attributes {stable_mosaic.version = 11 : i64} {
  func.func @_matmul_bias_act_kernel(%arg0: i32, %arg1: memref<32x288xbf16, #tpu.memory_space<vmem>>, %arg2: memref<288x128xbf16, #tpu.memory_space<vmem>>, %arg3: memref<1x128xf32, #tpu.memory_space<vmem>>, %arg4: memref<32x128xbf16, #tpu.memory_space<vmem>>) attributes {dimension_semantics = [#tpu.dimension_semantics<parallel>], iteration_bounds = array<i64: 1>, scalar_prefetch = 0 : i64, scratch_operands = 0 : i64, tpu.core_type = #tpu.core_type<tc>, window_params = [{transform_indices = @transform_0, window_bounds = array<i64: 32, 288>}, {pipeline_mode = #tpu.pipeline_mode<synchronous>, transform_indices = @transform_1, window_bounds = array<i64: 288, 128>}, {pipeline_mode = #tpu.pipeline_mode<synchronous>, transform_indices = @transform_2, window_bounds = array<i64: 1, 128>}, {transform_indices = @transform_3, window_bounds = array<i64: 32, 128>}]} {
    %c0 = arith.constant 0 : index
    %c0_0 = arith.constant 0 : index
    %0 = vector.load %arg1[%c0, %c0_0] : memref<32x288xbf16, #tpu.memory_space<vmem>>, vector<32x288xbf16>
    %c0_1 = arith.constant 0 : index
    %c0_2 = arith.constant 0 : index
    %1 = vector.load %arg2[%c0_1, %c0_2] : memref<288x128xbf16, #tpu.memory_space<vmem>>, vector<288x128xbf16>
    %cst = arith.constant dense<0.000000e+00> : vector<32x128xf32>
    %2 = tpu.matmul %0, %1, %cst {dimension_numbers = #tpu.dot_dimension_numbers<[1], [0], [0], [1], [0, 0, 1, 1], [], []>} : vector<32x288xbf16>, vector<288x128xbf16>, vector<32x128xf32> -> vector<32x128xf32>
    %c0_3 = arith.constant 0 : index
    %c0_4 = arith.constant 0 : index
    %3 = vector.load %arg3[%c0_3, %c0_4] : memref<1x128xf32, #tpu.memory_space<vmem>>, vector<1x128xf32>
    %4 = vector.broadcast %3 : vector<1x128xf32> to vector<32x128xf32>
    %5 = arith.addf %2, %4 : vector<32x128xf32>
    %6 = arith.negf %5 : vector<32x128xf32>
    %7 = math.exp %6 : vector<32x128xf32>
    %cst_5 = arith.constant 1.000000e+00 : f32
    %8 = vector.broadcast %cst_5 : f32 to vector<32x128xf32>
    %9 = arith.addf %8, %7 : vector<32x128xf32>
    %10 = arith.divf %8, %9 : vector<32x128xf32>
    %11 = arith.mulf %5, %10 : vector<32x128xf32>
    %12 = arith.truncf %11 : vector<32x128xf32> to vector<32x128xbf16>
    %c0_6 = arith.constant 0 : index
    %c0_7 = arith.constant 0 : index
    %13 = vector.load %arg4[%c0_6, %c0_7] : memref<32x128xbf16, #tpu.memory_space<vmem>>, vector<32x128xbf16>
    tpu.vector_store %arg4[%c0_6, %c0_7], %12 {strides = array<i32>} : memref<32x128xbf16, #tpu.memory_space<vmem>>, vector<32x128xbf16>,
    return
  }
  func.func @transform_0(%arg0: i32) -> (i32, i32) {
    %c0_i32 = arith.constant 0 : i32
    %c0_i32_0 = arith.constant 0 : i32
    return %arg0, %c0_i32 : i32, i32
  }
  func.func @transform_1(%arg0: i32) -> (i32, i32) {
    %c0_i32 = arith.constant 0 : i32
    %c0_i32_0 = arith.constant 0 : i32
    %c0_i32_1 = arith.constant 0 : i32
    return %c0_i32, %c0_i32_0 : i32, i32
  }
  func.func @transform_2(%arg0: i32) -> (i32, i32) {
    %c0_i32 = arith.constant 0 : i32
    %c0_i32_0 = arith.constant 0 : i32
    %c0_i32_1 = arith.constant 0 : i32
    return %c0_i32, %c0_i32_0 : i32, i32
  }
  func.func @transform_3(%arg0: i32) -> (i32, i32) {
    %c0_i32 = arith.constant 0 : i32
    %c0_i32_0 = arith.constant 0 : i32
    return %arg0, %c0_i32 : i32, i32
  }
}

module attributes {stable_mosaic.version = 11 : i64} {
  func.func @_matmul_bias_act_kernel(%arg0: i32, %arg1: memref<8x576xbf16, #tpu.memory_space<vmem>>, %arg2: memref<576x128xbf16, #tpu.memory_space<vmem>>, %arg3: memref<1x128xf32, #tpu.memory_space<vmem>>, %arg4: memref<8x128xbf16, #tpu.memory_space<vmem>>) attributes {dimension_semantics = [#tpu.dimension_semantics<parallel>], iteration_bounds = array<i64: 1>, scalar_prefetch = 0 : i64, scratch_operands = 0 : i64, tpu.core_type = #tpu.core_type<tc>, window_params = [{transform_indices = @transform_0, window_bounds = array<i64: 8, 576>}, {pipeline_mode = #tpu.pipeline_mode<synchronous>, transform_indices = @transform_1, window_bounds = array<i64: 576, 128>}, {pipeline_mode = #tpu.pipeline_mode<synchronous>, transform_indices = @transform_2, window_bounds = array<i64: 1, 128>}, {transform_indices = @transform_3, window_bounds = array<i64: 8, 128>}]} {
    %c0 = arith.constant 0 : index
    %c0_0 = arith.constant 0 : index
    %0 = vector.load %arg1[%c0, %c0_0] : memref<8x576xbf16, #tpu.memory_space<vmem>>, vector<8x576xbf16>
    %c0_1 = arith.constant 0 : index
    %c0_2 = arith.constant 0 : index
    %1 = vector.load %arg2[%c0_1, %c0_2] : memref<576x128xbf16, #tpu.memory_space<vmem>>, vector<576x128xbf16>
    %cst = arith.constant dense<0.000000e+00> : vector<8x128xf32>
    %2 = tpu.matmul %0, %1, %cst {dimension_numbers = #tpu.dot_dimension_numbers<[1], [0], [0], [1], [0, 0, 1, 1], [], []>} : vector<8x576xbf16>, vector<576x128xbf16>, vector<8x128xf32> -> vector<8x128xf32>
    %c0_3 = arith.constant 0 : index
    %c0_4 = arith.constant 0 : index
    %3 = vector.load %arg3[%c0_3, %c0_4] : memref<1x128xf32, #tpu.memory_space<vmem>>, vector<1x128xf32>
    %4 = vector.broadcast %3 : vector<1x128xf32> to vector<8x128xf32>
    %5 = arith.addf %2, %4 : vector<8x128xf32>
    %6 = arith.negf %5 : vector<8x128xf32>
    %7 = math.exp %6 : vector<8x128xf32>
    %cst_5 = arith.constant 1.000000e+00 : f32
    %8 = vector.broadcast %cst_5 : f32 to vector<8x128xf32>
    %9 = arith.addf %8, %7 : vector<8x128xf32>
    %10 = arith.divf %8, %9 : vector<8x128xf32>
    %11 = arith.mulf %5, %10 : vector<8x128xf32>
    %12 = arith.truncf %11 : vector<8x128xf32> to vector<8x128xbf16>
    %c0_6 = arith.constant 0 : index
    %c0_7 = arith.constant 0 : index
    %13 = vector.load %arg4[%c0_6, %c0_7] : memref<8x128xbf16, #tpu.memory_space<vmem>>, vector<8x128xbf16>
    tpu.vector_store %arg4[%c0_6, %c0_7], %12 {strides = array<i32>} : memref<8x128xbf16, #tpu.memory_space<vmem>>, vector<8x128xbf16>,
    return
  }
  func.func @transform_0(%arg0: i32) -> (i32, i32) {
    %c0_i32 = arith.constant 0 : i32
    %c0_i32_0 = arith.constant 0 : i32
    return %arg0, %c0_i32 : i32, i32
  }
  func.func @transform_1(%arg0: i32) -> (i32, i32) {
    %c0_i32 = arith.constant 0 : i32
    %c0_i32_0 = arith.constant 0 : i32
    %c0_i32_1 = arith.constant 0 : i32
    return %c0_i32, %c0_i32_0 : i32, i32
  }
  func.func @transform_2(%arg0: i32) -> (i32, i32) {
    %c0_i32 = arith.constant 0 : i32
    %c0_i32_0 = arith.constant 0 : i32
    %c0_i32_1 = arith.constant 0 : i32
    return %c0_i32, %c0_i32_0 : i32, i32
  }
  func.func @transform_3(%arg0: i32) -> (i32, i32) {
    %c0_i32 = arith.constant 0 : i32
    %c0_i32_0 = arith.constant 0 : i32
    return %arg0, %c0_i32 : i32, i32
  }
}

module attributes {stable_mosaic.version = 11 : i64} {
  func.func @_detect_decode_kernel(%arg0: i32, %arg1: memref<8x64xbf16, #tpu.memory_space<vmem>>, %arg2: memref<64x128xbf16, #tpu.memory_space<vmem>>, %arg3: memref<1x128xf32, #tpu.memory_space<vmem>>, %arg4: memref<8x1xf32, #tpu.memory_space<vmem>>, %arg5: memref<8x1xf32, #tpu.memory_space<vmem>>, %arg6: memref<1x128xf32, #tpu.memory_space<vmem>>, %arg7: memref<1x128xf32, #tpu.memory_space<vmem>>, %arg8: memref<1x128xf32, #tpu.memory_space<vmem>>, %arg9: memref<1x128xf32, #tpu.memory_space<vmem>>, %arg10: memref<8x128xf32, #tpu.memory_space<vmem>>, %arg11: memref<8x128xf32, #tpu.memory_space<vmem>>) attributes {dimension_semantics = [#tpu.dimension_semantics<parallel>], iteration_bounds = array<i64: 1>, scalar_prefetch = 0 : i64, scratch_operands = 0 : i64, tpu.core_type = #tpu.core_type<tc>, window_params = [{transform_indices = @transform_0, window_bounds = array<i64: 8, 64>}, {pipeline_mode = #tpu.pipeline_mode<synchronous>, transform_indices = @transform_1, window_bounds = array<i64: 64, 128>}, {pipeline_mode = #tpu.pipeline_mode<synchronous>, transform_indices = @transform_2, window_bounds = array<i64: 1, 128>}, {transform_indices = @transform_3, window_bounds = array<i64: 8, 1>}, {transform_indices = @transform_4, window_bounds = array<i64: 8, 1>}, {pipeline_mode = #tpu.pipeline_mode<synchronous>, transform_indices = @transform_5, window_bounds = array<i64: 1, 128>}, {pipeline_mode = #tpu.pipeline_mode<synchronous>, transform_indices = @transform_6, window_bounds = array<i64: 1, 128>}, {pipeline_mode = #tpu.pipeline_mode<synchronous>, transform_indices = @transform_7, window_bounds = array<i64: 1, 128>}, {pipeline_mode = #tpu.pipeline_mode<synchronous>, transform_indices = @transform_8, window_bounds = array<i64: 1, 128>}, {transform_indices = @transform_9, window_bounds = array<i64: 8, 128>}, {transform_indices = @transform_10, window_bounds = array<i64: 8, 128>}]} {
    %c0 = arith.constant 0 : index
    %c0_0 = arith.constant 0 : index
    %0 = vector.load %arg1[%c0, %c0_0] : memref<8x64xbf16, #tpu.memory_space<vmem>>, vector<8x64xbf16>
    %c0_1 = arith.constant 0 : index
    %c0_2 = arith.constant 0 : index
    %1 = vector.load %arg2[%c0_1, %c0_2] : memref<64x128xbf16, #tpu.memory_space<vmem>>, vector<64x128xbf16>
    %cst = arith.constant dense<0.000000e+00> : vector<8x128xf32>
    %2 = tpu.matmul %0, %1, %cst {dimension_numbers = #tpu.dot_dimension_numbers<[1], [0], [0], [1], [0, 0, 1, 1], [], []>} : vector<8x64xbf16>, vector<64x128xbf16>, vector<8x128xf32> -> vector<8x128xf32>
    %c0_3 = arith.constant 0 : index
    %c0_4 = arith.constant 0 : index
    %3 = vector.load %arg3[%c0_3, %c0_4] : memref<1x128xf32, #tpu.memory_space<vmem>>, vector<1x128xf32>
    %4 = vector.broadcast %3 : vector<1x128xf32> to vector<8x128xf32>
    %5 = arith.addf %2, %4 : vector<8x128xf32>
    %c0_5 = arith.constant 0 : index
    %c0_6 = arith.constant 0 : index
    %6 = vector.load %arg10[%c0_5, %c0_6] : memref<8x128xf32, #tpu.memory_space<vmem>>, vector<8x128xf32>
    tpu.vector_store %arg10[%c0_5, %c0_6], %5 {strides = array<i32>} : memref<8x128xf32, #tpu.memory_space<vmem>>, vector<8x128xf32>,
    %7 = arith.negf %5 : vector<8x128xf32>
    %8 = math.exp %7 : vector<8x128xf32>
    %cst_7 = arith.constant 1.000000e+00 : f32
    %9 = vector.broadcast %cst_7 : f32 to vector<8x128xf32>
    %10 = arith.addf %9, %8 : vector<8x128xf32>
    %11 = arith.divf %9, %10 : vector<8x128xf32>
    %c0_8 = arith.constant 0 : index
    %c0_9 = arith.constant 0 : index
    %12 = vector.load %arg6[%c0_8, %c0_9] : memref<1x128xf32, #tpu.memory_space<vmem>>, vector<1x128xf32>
    %c0_10 = arith.constant 0 : index
    %c0_11 = arith.constant 0 : index
    %13 = vector.load %arg7[%c0_10, %c0_11] : memref<1x128xf32, #tpu.memory_space<vmem>>, vector<1x128xf32>
    %c0_12 = arith.constant 0 : index
    %c0_13 = arith.constant 0 : index
    %14 = vector.load %arg8[%c0_12, %c0_13] : memref<1x128xf32, #tpu.memory_space<vmem>>, vector<1x128xf32>
    %c0_14 = arith.constant 0 : index
    %c0_15 = arith.constant 0 : index
    %15 = vector.load %arg9[%c0_14, %c0_15] : memref<1x128xf32, #tpu.memory_space<vmem>>, vector<1x128xf32>
    %16 = arith.addf %12, %13 : vector<1x128xf32>
    %c0_16 = arith.constant 0 : index
    %c0_17 = arith.constant 0 : index
    %17 = vector.load %arg4[%c0_16, %c0_17] : memref<8x1xf32, #tpu.memory_space<vmem>>, vector<8x1xf32>
    %18 = vector.broadcast %12 : vector<1x128xf32> to vector<8x128xf32>
    %19 = vector.broadcast %17 : vector<8x1xf32> to vector<8x128xf32>
    %20 = arith.mulf %18, %19 : vector<8x128xf32>
    %c0_18 = arith.constant 0 : index
    %c0_19 = arith.constant 0 : index
    %21 = vector.load %arg5[%c0_18, %c0_19] : memref<8x1xf32, #tpu.memory_space<vmem>>, vector<8x1xf32>
    %22 = vector.broadcast %13 : vector<1x128xf32> to vector<8x128xf32>
    %23 = vector.broadcast %21 : vector<8x1xf32> to vector<8x128xf32>
    %24 = arith.mulf %22, %23 : vector<8x128xf32>
    %25 = arith.addf %20, %24 : vector<8x128xf32>
    %cst_20 = arith.constant 2.000000e+00 : f32
    %26 = vector.broadcast %cst_20 : f32 to vector<8x128xf32>
    %27 = arith.mulf %11, %26 : vector<8x128xf32>
    %cst_21 = arith.constant 5.000000e-01 : f32
    %28 = vector.broadcast %cst_21 : f32 to vector<8x128xf32>
    %29 = arith.subf %27, %28 : vector<8x128xf32>
    %30 = arith.addf %29, %25 : vector<8x128xf32>
    %cst_22 = arith.constant 3.200000e+01 : f32
    %31 = vector.broadcast %cst_22 : f32 to vector<8x128xf32>
    %32 = arith.mulf %30, %31 : vector<8x128xf32>
    %cst_23 = arith.constant 2.000000e+00 : f32
    %33 = vector.broadcast %cst_23 : f32 to vector<8x128xf32>
    %34 = arith.mulf %11, %33 : vector<8x128xf32>
    %35 = arith.mulf %34, %34 : vector<8x128xf32>
    %36 = vector.broadcast %15 : vector<1x128xf32> to vector<8x128xf32>
    %37 = arith.mulf %35, %36 : vector<8x128xf32>
    %38 = vector.broadcast %16 : vector<1x128xf32> to vector<8x128xf32>
    %39 = arith.mulf %38, %32 : vector<8x128xf32>
    %40 = vector.broadcast %14 : vector<1x128xf32> to vector<8x128xf32>
    %41 = arith.mulf %40, %37 : vector<8x128xf32>
    %42 = arith.addf %39, %41 : vector<8x128xf32>
    %cst_24 = arith.constant 1.000000e+00 : f32
    %43 = vector.broadcast %cst_24 : f32 to vector<1x128xf32>
    %44 = arith.subf %43, %16 : vector<1x128xf32>
    %45 = arith.subf %44, %14 : vector<1x128xf32>
    %46 = vector.broadcast %45 : vector<1x128xf32> to vector<8x128xf32>
    %47 = arith.mulf %46, %11 : vector<8x128xf32>
    %48 = arith.addf %42, %47 : vector<8x128xf32>
    %c0_25 = arith.constant 0 : index
    %c0_26 = arith.constant 0 : index
    %49 = vector.load %arg11[%c0_25, %c0_26] : memref<8x128xf32, #tpu.memory_space<vmem>>, vector<8x128xf32>
    tpu.vector_store %arg11[%c0_25, %c0_26], %48 {strides = array<i32>} : memref<8x128xf32, #tpu.memory_space<vmem>>, vector<8x128xf32>,
    return
  }
  func.func @transform_0(%arg0: i32) -> (i32, i32) {
    %c0_i32 = arith.constant 0 : i32
    %c0_i32_0 = arith.constant 0 : i32
    return %arg0, %c0_i32 : i32, i32
  }
  func.func @transform_1(%arg0: i32) -> (i32, i32) {
    %c0_i32 = arith.constant 0 : i32
    %c0_i32_0 = arith.constant 0 : i32
    %c0_i32_1 = arith.constant 0 : i32
    return %c0_i32, %c0_i32_0 : i32, i32
  }
  func.func @transform_2(%arg0: i32) -> (i32, i32) {
    %c0_i32 = arith.constant 0 : i32
    %c0_i32_0 = arith.constant 0 : i32
    %c0_i32_1 = arith.constant 0 : i32
    return %c0_i32, %c0_i32_0 : i32, i32
  }
  func.func @transform_3(%arg0: i32) -> (i32, i32) {
    %c0_i32 = arith.constant 0 : i32
    %c0_i32_0 = arith.constant 0 : i32
    return %arg0, %c0_i32 : i32, i32
  }
  func.func @transform_4(%arg0: i32) -> (i32, i32) {
    %c0_i32 = arith.constant 0 : i32
    %c0_i32_0 = arith.constant 0 : i32
    return %arg0, %c0_i32 : i32, i32
  }
  func.func @transform_5(%arg0: i32) -> (i32, i32) {
    %c0_i32 = arith.constant 0 : i32
    %c0_i32_0 = arith.constant 0 : i32
    %c0_i32_1 = arith.constant 0 : i32
    return %c0_i32, %c0_i32_0 : i32, i32
  }
  func.func @transform_6(%arg0: i32) -> (i32, i32) {
    %c0_i32 = arith.constant 0 : i32
    %c0_i32_0 = arith.constant 0 : i32
    %c0_i32_1 = arith.constant 0 : i32
    return %c0_i32, %c0_i32_0 : i32, i32
  }
  func.func @transform_7(%arg0: i32) -> (i32, i32) {
    %c0_i32 = arith.constant 0 : i32
    %c0_i32_0 = arith.constant 0 : i32
    %c0_i32_1 = arith.constant 0 : i32
    return %c0_i32, %c0_i32_0 : i32, i32
  }
  func.func @transform_8(%arg0: i32) -> (i32, i32) {
    %c0_i32 = arith.constant 0 : i32
    %c0_i32_0 = arith.constant 0 : i32
    %c0_i32_1 = arith.constant 0 : i32
    return %c0_i32, %c0_i32_0 : i32, i32
  }
  func.func @transform_9(%arg0: i32) -> (i32, i32) {
    %c0_i32 = arith.constant 0 : i32
    %c0_i32_0 = arith.constant 0 : i32
    return %arg0, %c0_i32 : i32, i32
  }
  func.func @transform_10(%arg0: i32) -> (i32, i32) {
    %c0_i32 = arith.constant 0 : i32
    %c0_i32_0 = arith.constant 0 : i32
    return %arg0, %c0_i32 : i32, i32
  }
}

module attributes {stable_mosaic.version = 11 : i64} {
  func.func @_detect_decode_kernel(%arg0: i32, %arg1: memref<128x32xbf16, #tpu.memory_space<vmem>>, %arg2: memref<32x128xbf16, #tpu.memory_space<vmem>>, %arg3: memref<1x128xf32, #tpu.memory_space<vmem>>, %arg4: memref<128x1xf32, #tpu.memory_space<vmem>>, %arg5: memref<128x1xf32, #tpu.memory_space<vmem>>, %arg6: memref<1x128xf32, #tpu.memory_space<vmem>>, %arg7: memref<1x128xf32, #tpu.memory_space<vmem>>, %arg8: memref<1x128xf32, #tpu.memory_space<vmem>>, %arg9: memref<1x128xf32, #tpu.memory_space<vmem>>, %arg10: memref<128x128xf32, #tpu.memory_space<vmem>>, %arg11: memref<128x128xf32, #tpu.memory_space<vmem>>) attributes {dimension_semantics = [#tpu.dimension_semantics<parallel>], iteration_bounds = array<i64: 1>, scalar_prefetch = 0 : i64, scratch_operands = 0 : i64, tpu.core_type = #tpu.core_type<tc>, window_params = [{transform_indices = @transform_0, window_bounds = array<i64: 128, 32>}, {pipeline_mode = #tpu.pipeline_mode<synchronous>, transform_indices = @transform_1, window_bounds = array<i64: 32, 128>}, {pipeline_mode = #tpu.pipeline_mode<synchronous>, transform_indices = @transform_2, window_bounds = array<i64: 1, 128>}, {transform_indices = @transform_3, window_bounds = array<i64: 128, 1>}, {transform_indices = @transform_4, window_bounds = array<i64: 128, 1>}, {pipeline_mode = #tpu.pipeline_mode<synchronous>, transform_indices = @transform_5, window_bounds = array<i64: 1, 128>}, {pipeline_mode = #tpu.pipeline_mode<synchronous>, transform_indices = @transform_6, window_bounds = array<i64: 1, 128>}, {pipeline_mode = #tpu.pipeline_mode<synchronous>, transform_indices = @transform_7, window_bounds = array<i64: 1, 128>}, {pipeline_mode = #tpu.pipeline_mode<synchronous>, transform_indices = @transform_8, window_bounds = array<i64: 1, 128>}, {transform_indices = @transform_9, window_bounds = array<i64: 128, 128>}, {transform_indices = @transform_10, window_bounds = array<i64: 128, 128>}]} {
    %c0 = arith.constant 0 : index
    %c0_0 = arith.constant 0 : index
    %0 = vector.load %arg1[%c0, %c0_0] : memref<128x32xbf16, #tpu.memory_space<vmem>>, vector<128x32xbf16>
    %c0_1 = arith.constant 0 : index
    %c0_2 = arith.constant 0 : index
    %1 = vector.load %arg2[%c0_1, %c0_2] : memref<32x128xbf16, #tpu.memory_space<vmem>>, vector<32x128xbf16>
    %cst = arith.constant dense<0.000000e+00> : vector<128x128xf32>
    %2 = tpu.matmul %0, %1, %cst {dimension_numbers = #tpu.dot_dimension_numbers<[1], [0], [0], [1], [0, 0, 1, 1], [], []>} : vector<128x32xbf16>, vector<32x128xbf16>, vector<128x128xf32> -> vector<128x128xf32>
    %c0_3 = arith.constant 0 : index
    %c0_4 = arith.constant 0 : index
    %3 = vector.load %arg3[%c0_3, %c0_4] : memref<1x128xf32, #tpu.memory_space<vmem>>, vector<1x128xf32>
    %4 = vector.broadcast %3 : vector<1x128xf32> to vector<128x128xf32>
    %5 = arith.addf %2, %4 : vector<128x128xf32>
    %c0_5 = arith.constant 0 : index
    %c0_6 = arith.constant 0 : index
    %6 = vector.load %arg10[%c0_5, %c0_6] : memref<128x128xf32, #tpu.memory_space<vmem>>, vector<128x128xf32>
    tpu.vector_store %arg10[%c0_5, %c0_6], %5 {strides = array<i32>} : memref<128x128xf32, #tpu.memory_space<vmem>>, vector<128x128xf32>,
    %7 = arith.negf %5 : vector<128x128xf32>
    %8 = math.exp %7 : vector<128x128xf32>
    %cst_7 = arith.constant 1.000000e+00 : f32
    %9 = vector.broadcast %cst_7 : f32 to vector<128x128xf32>
    %10 = arith.addf %9, %8 : vector<128x128xf32>
    %11 = arith.divf %9, %10 : vector<128x128xf32>
    %c0_8 = arith.constant 0 : index
    %c0_9 = arith.constant 0 : index
    %12 = vector.load %arg6[%c0_8, %c0_9] : memref<1x128xf32, #tpu.memory_space<vmem>>, vector<1x128xf32>
    %c0_10 = arith.constant 0 : index
    %c0_11 = arith.constant 0 : index
    %13 = vector.load %arg7[%c0_10, %c0_11] : memref<1x128xf32, #tpu.memory_space<vmem>>, vector<1x128xf32>
    %c0_12 = arith.constant 0 : index
    %c0_13 = arith.constant 0 : index
    %14 = vector.load %arg8[%c0_12, %c0_13] : memref<1x128xf32, #tpu.memory_space<vmem>>, vector<1x128xf32>
    %c0_14 = arith.constant 0 : index
    %c0_15 = arith.constant 0 : index
    %15 = vector.load %arg9[%c0_14, %c0_15] : memref<1x128xf32, #tpu.memory_space<vmem>>, vector<1x128xf32>
    %16 = arith.addf %12, %13 : vector<1x128xf32>
    %c0_16 = arith.constant 0 : index
    %c0_17 = arith.constant 0 : index
    %17 = vector.load %arg4[%c0_16, %c0_17] : memref<128x1xf32, #tpu.memory_space<vmem>>, vector<128x1xf32>
    %18 = vector.broadcast %12 : vector<1x128xf32> to vector<128x128xf32>
    %19 = vector.broadcast %17 : vector<128x1xf32> to vector<128x128xf32>
    %20 = arith.mulf %18, %19 : vector<128x128xf32>
    %c0_18 = arith.constant 0 : index
    %c0_19 = arith.constant 0 : index
    %21 = vector.load %arg5[%c0_18, %c0_19] : memref<128x1xf32, #tpu.memory_space<vmem>>, vector<128x1xf32>
    %22 = vector.broadcast %13 : vector<1x128xf32> to vector<128x128xf32>
    %23 = vector.broadcast %21 : vector<128x1xf32> to vector<128x128xf32>
    %24 = arith.mulf %22, %23 : vector<128x128xf32>
    %25 = arith.addf %20, %24 : vector<128x128xf32>
    %cst_20 = arith.constant 2.000000e+00 : f32
    %26 = vector.broadcast %cst_20 : f32 to vector<128x128xf32>
    %27 = arith.mulf %11, %26 : vector<128x128xf32>
    %cst_21 = arith.constant 5.000000e-01 : f32
    %28 = vector.broadcast %cst_21 : f32 to vector<128x128xf32>
    %29 = arith.subf %27, %28 : vector<128x128xf32>
    %30 = arith.addf %29, %25 : vector<128x128xf32>
    %cst_22 = arith.constant 8.000000e+00 : f32
    %31 = vector.broadcast %cst_22 : f32 to vector<128x128xf32>
    %32 = arith.mulf %30, %31 : vector<128x128xf32>
    %cst_23 = arith.constant 2.000000e+00 : f32
    %33 = vector.broadcast %cst_23 : f32 to vector<128x128xf32>
    %34 = arith.mulf %11, %33 : vector<128x128xf32>
    %35 = arith.mulf %34, %34 : vector<128x128xf32>
    %36 = vector.broadcast %15 : vector<1x128xf32> to vector<128x128xf32>
    %37 = arith.mulf %35, %36 : vector<128x128xf32>
    %38 = vector.broadcast %16 : vector<1x128xf32> to vector<128x128xf32>
    %39 = arith.mulf %38, %32 : vector<128x128xf32>
    %40 = vector.broadcast %14 : vector<1x128xf32> to vector<128x128xf32>
    %41 = arith.mulf %40, %37 : vector<128x128xf32>
    %42 = arith.addf %39, %41 : vector<128x128xf32>
    %cst_24 = arith.constant 1.000000e+00 : f32
    %43 = vector.broadcast %cst_24 : f32 to vector<1x128xf32>
    %44 = arith.subf %43, %16 : vector<1x128xf32>
    %45 = arith.subf %44, %14 : vector<1x128xf32>
    %46 = vector.broadcast %45 : vector<1x128xf32> to vector<128x128xf32>
    %47 = arith.mulf %46, %11 : vector<128x128xf32>
    %48 = arith.addf %42, %47 : vector<128x128xf32>
    %c0_25 = arith.constant 0 : index
    %c0_26 = arith.constant 0 : index
    %49 = vector.load %arg11[%c0_25, %c0_26] : memref<128x128xf32, #tpu.memory_space<vmem>>, vector<128x128xf32>
    tpu.vector_store %arg11[%c0_25, %c0_26], %48 {strides = array<i32>} : memref<128x128xf32, #tpu.memory_space<vmem>>, vector<128x128xf32>,
    return
  }
  func.func @transform_0(%arg0: i32) -> (i32, i32) {
    %c0_i32 = arith.constant 0 : i32
    %c0_i32_0 = arith.constant 0 : i32
    return %arg0, %c0_i32 : i32, i32
  }
  func.func @transform_1(%arg0: i32) -> (i32, i32) {
    %c0_i32 = arith.constant 0 : i32
    %c0_i32_0 = arith.constant 0 : i32
    %c0_i32_1 = arith.constant 0 : i32
    return %c0_i32, %c0_i32_0 : i32, i32
  }
  func.func @transform_2(%arg0: i32) -> (i32, i32) {
    %c0_i32 = arith.constant 0 : i32
    %c0_i32_0 = arith.constant 0 : i32
    %c0_i32_1 = arith.constant 0 : i32
    return %c0_i32, %c0_i32_0 : i32, i32
  }
  func.func @transform_3(%arg0: i32) -> (i32, i32) {
    %c0_i32 = arith.constant 0 : i32
    %c0_i32_0 = arith.constant 0 : i32
    return %arg0, %c0_i32 : i32, i32
  }
  func.func @transform_4(%arg0: i32) -> (i32, i32) {
    %c0_i32 = arith.constant 0 : i32
    %c0_i32_0 = arith.constant 0 : i32
    return %arg0, %c0_i32 : i32, i32
  }
  func.func @transform_5(%arg0: i32) -> (i32, i32) {
    %c0_i32 = arith.constant 0 : i32
    %c0_i32_0 = arith.constant 0 : i32
    %c0_i32_1 = arith.constant 0 : i32
    return %c0_i32, %c0_i32_0 : i32, i32
  }
  func.func @transform_6(%arg0: i32) -> (i32, i32) {
    %c0_i32 = arith.constant 0 : i32
    %c0_i32_0 = arith.constant 0 : i32
    %c0_i32_1 = arith.constant 0 : i32
    return %c0_i32, %c0_i32_0 : i32, i32
  }
  func.func @transform_7(%arg0: i32) -> (i32, i32) {
    %c0_i32 = arith.constant 0 : i32
    %c0_i32_0 = arith.constant 0 : i32
    %c0_i32_1 = arith.constant 0 : i32
    return %c0_i32, %c0_i32_0 : i32, i32
  }
  func.func @transform_8(%arg0: i32) -> (i32, i32) {
    %c0_i32 = arith.constant 0 : i32
    %c0_i32_0 = arith.constant 0 : i32
    %c0_i32_1 = arith.constant 0 : i32
    return %c0_i32, %c0_i32_0 : i32, i32
  }
  func.func @transform_9(%arg0: i32) -> (i32, i32) {
    %c0_i32 = arith.constant 0 : i32
    %c0_i32_0 = arith.constant 0 : i32
    return %arg0, %c0_i32 : i32, i32
  }
  func.func @transform_10(%arg0: i32) -> (i32, i32) {
    %c0_i32 = arith.constant 0 : i32
    %c0_i32_0 = arith.constant 0 : i32
    return %arg0, %c0_i32 : i32, i32
  }
}

module attributes {stable_mosaic.version = 11 : i64} {
  func.func @_detect_decode_kernel(%arg0: i32, %arg1: memref<32x64xbf16, #tpu.memory_space<vmem>>, %arg2: memref<64x128xbf16, #tpu.memory_space<vmem>>, %arg3: memref<1x128xf32, #tpu.memory_space<vmem>>, %arg4: memref<32x1xf32, #tpu.memory_space<vmem>>, %arg5: memref<32x1xf32, #tpu.memory_space<vmem>>, %arg6: memref<1x128xf32, #tpu.memory_space<vmem>>, %arg7: memref<1x128xf32, #tpu.memory_space<vmem>>, %arg8: memref<1x128xf32, #tpu.memory_space<vmem>>, %arg9: memref<1x128xf32, #tpu.memory_space<vmem>>, %arg10: memref<32x128xf32, #tpu.memory_space<vmem>>, %arg11: memref<32x128xf32, #tpu.memory_space<vmem>>) attributes {dimension_semantics = [#tpu.dimension_semantics<parallel>], iteration_bounds = array<i64: 1>, scalar_prefetch = 0 : i64, scratch_operands = 0 : i64, tpu.core_type = #tpu.core_type<tc>, window_params = [{transform_indices = @transform_0, window_bounds = array<i64: 32, 64>}, {pipeline_mode = #tpu.pipeline_mode<synchronous>, transform_indices = @transform_1, window_bounds = array<i64: 64, 128>}, {pipeline_mode = #tpu.pipeline_mode<synchronous>, transform_indices = @transform_2, window_bounds = array<i64: 1, 128>}, {transform_indices = @transform_3, window_bounds = array<i64: 32, 1>}, {transform_indices = @transform_4, window_bounds = array<i64: 32, 1>}, {pipeline_mode = #tpu.pipeline_mode<synchronous>, transform_indices = @transform_5, window_bounds = array<i64: 1, 128>}, {pipeline_mode = #tpu.pipeline_mode<synchronous>, transform_indices = @transform_6, window_bounds = array<i64: 1, 128>}, {pipeline_mode = #tpu.pipeline_mode<synchronous>, transform_indices = @transform_7, window_bounds = array<i64: 1, 128>}, {pipeline_mode = #tpu.pipeline_mode<synchronous>, transform_indices = @transform_8, window_bounds = array<i64: 1, 128>}, {transform_indices = @transform_9, window_bounds = array<i64: 32, 128>}, {transform_indices = @transform_10, window_bounds = array<i64: 32, 128>}]} {
    %c0 = arith.constant 0 : index
    %c0_0 = arith.constant 0 : index
    %0 = vector.load %arg1[%c0, %c0_0] : memref<32x64xbf16, #tpu.memory_space<vmem>>, vector<32x64xbf16>
    %c0_1 = arith.constant 0 : index
    %c0_2 = arith.constant 0 : index
    %1 = vector.load %arg2[%c0_1, %c0_2] : memref<64x128xbf16, #tpu.memory_space<vmem>>, vector<64x128xbf16>
    %cst = arith.constant dense<0.000000e+00> : vector<32x128xf32>
    %2 = tpu.matmul %0, %1, %cst {dimension_numbers = #tpu.dot_dimension_numbers<[1], [0], [0], [1], [0, 0, 1, 1], [], []>} : vector<32x64xbf16>, vector<64x128xbf16>, vector<32x128xf32> -> vector<32x128xf32>
    %c0_3 = arith.constant 0 : index
    %c0_4 = arith.constant 0 : index
    %3 = vector.load %arg3[%c0_3, %c0_4] : memref<1x128xf32, #tpu.memory_space<vmem>>, vector<1x128xf32>
    %4 = vector.broadcast %3 : vector<1x128xf32> to vector<32x128xf32>
    %5 = arith.addf %2, %4 : vector<32x128xf32>
    %c0_5 = arith.constant 0 : index
    %c0_6 = arith.constant 0 : index
    %6 = vector.load %arg10[%c0_5, %c0_6] : memref<32x128xf32, #tpu.memory_space<vmem>>, vector<32x128xf32>
    tpu.vector_store %arg10[%c0_5, %c0_6], %5 {strides = array<i32>} : memref<32x128xf32, #tpu.memory_space<vmem>>, vector<32x128xf32>,
    %7 = arith.negf %5 : vector<32x128xf32>
    %8 = math.exp %7 : vector<32x128xf32>
    %cst_7 = arith.constant 1.000000e+00 : f32
    %9 = vector.broadcast %cst_7 : f32 to vector<32x128xf32>
    %10 = arith.addf %9, %8 : vector<32x128xf32>
    %11 = arith.divf %9, %10 : vector<32x128xf32>
    %c0_8 = arith.constant 0 : index
    %c0_9 = arith.constant 0 : index
    %12 = vector.load %arg6[%c0_8, %c0_9] : memref<1x128xf32, #tpu.memory_space<vmem>>, vector<1x128xf32>
    %c0_10 = arith.constant 0 : index
    %c0_11 = arith.constant 0 : index
    %13 = vector.load %arg7[%c0_10, %c0_11] : memref<1x128xf32, #tpu.memory_space<vmem>>, vector<1x128xf32>
    %c0_12 = arith.constant 0 : index
    %c0_13 = arith.constant 0 : index
    %14 = vector.load %arg8[%c0_12, %c0_13] : memref<1x128xf32, #tpu.memory_space<vmem>>, vector<1x128xf32>
    %c0_14 = arith.constant 0 : index
    %c0_15 = arith.constant 0 : index
    %15 = vector.load %arg9[%c0_14, %c0_15] : memref<1x128xf32, #tpu.memory_space<vmem>>, vector<1x128xf32>
    %16 = arith.addf %12, %13 : vector<1x128xf32>
    %c0_16 = arith.constant 0 : index
    %c0_17 = arith.constant 0 : index
    %17 = vector.load %arg4[%c0_16, %c0_17] : memref<32x1xf32, #tpu.memory_space<vmem>>, vector<32x1xf32>
    %18 = vector.broadcast %12 : vector<1x128xf32> to vector<32x128xf32>
    %19 = vector.broadcast %17 : vector<32x1xf32> to vector<32x128xf32>
    %20 = arith.mulf %18, %19 : vector<32x128xf32>
    %c0_18 = arith.constant 0 : index
    %c0_19 = arith.constant 0 : index
    %21 = vector.load %arg5[%c0_18, %c0_19] : memref<32x1xf32, #tpu.memory_space<vmem>>, vector<32x1xf32>
    %22 = vector.broadcast %13 : vector<1x128xf32> to vector<32x128xf32>
    %23 = vector.broadcast %21 : vector<32x1xf32> to vector<32x128xf32>
    %24 = arith.mulf %22, %23 : vector<32x128xf32>
    %25 = arith.addf %20, %24 : vector<32x128xf32>
    %cst_20 = arith.constant 2.000000e+00 : f32
    %26 = vector.broadcast %cst_20 : f32 to vector<32x128xf32>
    %27 = arith.mulf %11, %26 : vector<32x128xf32>
    %cst_21 = arith.constant 5.000000e-01 : f32
    %28 = vector.broadcast %cst_21 : f32 to vector<32x128xf32>
    %29 = arith.subf %27, %28 : vector<32x128xf32>
    %30 = arith.addf %29, %25 : vector<32x128xf32>
    %cst_22 = arith.constant 1.600000e+01 : f32
    %31 = vector.broadcast %cst_22 : f32 to vector<32x128xf32>
    %32 = arith.mulf %30, %31 : vector<32x128xf32>
    %cst_23 = arith.constant 2.000000e+00 : f32
    %33 = vector.broadcast %cst_23 : f32 to vector<32x128xf32>
    %34 = arith.mulf %11, %33 : vector<32x128xf32>
    %35 = arith.mulf %34, %34 : vector<32x128xf32>
    %36 = vector.broadcast %15 : vector<1x128xf32> to vector<32x128xf32>
    %37 = arith.mulf %35, %36 : vector<32x128xf32>
    %38 = vector.broadcast %16 : vector<1x128xf32> to vector<32x128xf32>
    %39 = arith.mulf %38, %32 : vector<32x128xf32>
    %40 = vector.broadcast %14 : vector<1x128xf32> to vector<32x128xf32>
    %41 = arith.mulf %40, %37 : vector<32x128xf32>
    %42 = arith.addf %39, %41 : vector<32x128xf32>
    %cst_24 = arith.constant 1.000000e+00 : f32
    %43 = vector.broadcast %cst_24 : f32 to vector<1x128xf32>
    %44 = arith.subf %43, %16 : vector<1x128xf32>
    %45 = arith.subf %44, %14 : vector<1x128xf32>
    %46 = vector.broadcast %45 : vector<1x128xf32> to vector<32x128xf32>
    %47 = arith.mulf %46, %11 : vector<32x128xf32>
    %48 = arith.addf %42, %47 : vector<32x128xf32>
    %c0_25 = arith.constant 0 : index
    %c0_26 = arith.constant 0 : index
    %49 = vector.load %arg11[%c0_25, %c0_26] : memref<32x128xf32, #tpu.memory_space<vmem>>, vector<32x128xf32>
    tpu.vector_store %arg11[%c0_25, %c0_26], %48 {strides = array<i32>} : memref<32x128xf32, #tpu.memory_space<vmem>>, vector<32x128xf32>,
    return
  }
  func.func @transform_0(%arg0: i32) -> (i32, i32) {
    %c0_i32 = arith.constant 0 : i32
    %c0_i32_0 = arith.constant 0 : i32
    return %arg0, %c0_i32 : i32, i32
  }
  func.func @transform_1(%arg0: i32) -> (i32, i32) {
    %c0_i32 = arith.constant 0 : i32
    %c0_i32_0 = arith.constant 0 : i32
    %c0_i32_1 = arith.constant 0 : i32
    return %c0_i32, %c0_i32_0 : i32, i32
  }
  func.func @transform_2(%arg0: i32) -> (i32, i32) {
    %c0_i32 = arith.constant 0 : i32
    %c0_i32_0 = arith.constant 0 : i32
    %c0_i32_1 = arith.constant 0 : i32
    return %c0_i32, %c0_i32_0 : i32, i32
  }
  func.func @transform_3(%arg0: i32) -> (i32, i32) {
    %c0_i32 = arith.constant 0 : i32
    %c0_i32_0 = arith.constant 0 : i32
    return %arg0, %c0_i32 : i32, i32
  }
  func.func @transform_4(%arg0: i32) -> (i32, i32) {
    %c0_i32 = arith.constant 0 : i32
    %c0_i32_0 = arith.constant 0 : i32
    return %arg0, %c0_i32 : i32, i32
  }
  func.func @transform_5(%arg0: i32) -> (i32, i32) {
    %c0_i32 = arith.constant 0 : i32
    %c0_i32_0 = arith.constant 0 : i32
    %c0_i32_1 = arith.constant 0 : i32
    return %c0_i32, %c0_i32_0 : i32, i32
  }
  func.func @transform_6(%arg0: i32) -> (i32, i32) {
    %c0_i32 = arith.constant 0 : i32
    %c0_i32_0 = arith.constant 0 : i32
    %c0_i32_1 = arith.constant 0 : i32
    return %c0_i32, %c0_i32_0 : i32, i32
  }
  func.func @transform_7(%arg0: i32) -> (i32, i32) {
    %c0_i32 = arith.constant 0 : i32
    %c0_i32_0 = arith.constant 0 : i32
    %c0_i32_1 = arith.constant 0 : i32
    return %c0_i32, %c0_i32_0 : i32, i32
  }
  func.func @transform_8(%arg0: i32) -> (i32, i32) {
    %c0_i32 = arith.constant 0 : i32
    %c0_i32_0 = arith.constant 0 : i32
    %c0_i32_1 = arith.constant 0 : i32
    return %c0_i32, %c0_i32_0 : i32, i32
  }
  func.func @transform_9(%arg0: i32) -> (i32, i32) {
    %c0_i32 = arith.constant 0 : i32
    %c0_i32_0 = arith.constant 0 : i32
    return %arg0, %c0_i32 : i32, i32
  }
  func.func @transform_10(%arg0: i32) -> (i32, i32) {
    %c0_i32 = arith.constant 0 : i32
    %c0_i32_0 = arith.constant 0 : i32
    return %arg0, %c0_i32 : i32, i32
  }
}

</mosaic_0001>

<llo_original>
// kernel: model_forward.8
$region0: #{model_forward.8}
  #allocation0 [shape = 'u32[]', space=smem, size = 0x4, offset = 0x4, fixed_abs, tag = 'smem constant byte address 0x4 - core index']
  #allocation1 [shape = 'u32[144,128]{1,0:T(1,128)}', space=vmem, size = 0x12000, scoped, tag = 'internal scratch']
  %s0 = inlined_call_operand.vmem [shape: bf16[2048,27], index: 0, kind: input, shape index: {}]
  %s1 = inlined_call_operand.vmem [shape: bf16[27,128], index: 1, kind: input, shape index: {}]
  %s2 = inlined_call_operand.vmem [shape: f32[1,128], index: 2, kind: input, shape index: {}]
  %s3 = inlined_call_operand.vmem [shape: bf16[2048,128], index: 3, kind: output, shape index: {}]
  %s4 = sld [smem:[#allocation0]]
  $region45: #{model_forward.8} parent=0
    _
  %s6 = ssub.s32 1, %s4
  %s7 = scalar_select 0, %s6, %s4
  loop: start=0, step=1, limit=6
  $region2: #{model_forward.8} parent=0 // loop_pre_header
    _
  $region3: #{model_forward.8} parent=0 // loop_header
    %s9 = sphi 0, %s13
    %p10 = scmp.ge.s32.totalorder %s9, 6
    %s19 = sphi 0, %s21
    %s22 = sphi 0, %s19
    %s23 = sphi 0, %s22
    %s39 = sphi 0, %s23
    %s43 = sphi 0, %s43
    %s45 = sphi 0, %s43
    %s46 = sphi 0, %s45
    %s60 = sphi 0, %s46
    %s64 = sphi 0, %s64
    %s66 = sphi 0, %s64
    %s67 = sphi 0, %s66
    %s81 = sphi 0, %s67
    %s87 = sphi 0, %s89
    %s90 = sphi 0, %s87
    %s91 = sphi 0, %s90
    %s107 = sphi 0, %s91
  $region4: #{model_forward.8} parent=0 // loop_header_branch
    %12 = sbr.rel (%p10) target = $region8
  $region5: #{model_forward.8} parent=0 // loop_body
    %s14 = ssub.s32 %s9, 1
    %s15 = ssub.s32 %s9, 2
    %s16 = sadd.s32 %s9, 1
    %s17 = ssub.s32 %s9, %s16
    %p18 = scmp.eq.s32.totalorder %s17, 0
    %s20 = sadd.s32 %s19, 1
    %s21 = scalar_select %p18, %s19, %s20
    %p24 = pneg %p18
    %p25 = scmp.eq.s32.totalorder %s9, 3
    %p26 = por %p24, %p25
    %p27 = scmp.ne.s32.totalorder %s19, %s22
    %p28 = scmp.eq.s32.totalorder %s9, 0
    %p29 = por %p27, %p28
    %p30 = scmp.ne.s32.totalorder %s19, %s22
    %p31 = scmp.eq.s32.totalorder %s14, 3
    %p32 = por %p30, %p31
    %p33 = scmp.ne.s32.totalorder %s22, %s23
    %p34 = scmp.eq.s32.totalorder %s14, 0
    %p35 = por %p33, %p34
    %p36 = scmp.ne.s32.totalorder %s22, %s23
    %p37 = scmp.eq.s32.totalorder %s15, 3
    %p38 = por %p36, %p37
    %p40 = scmp.ne.s32.totalorder %s23, %s39
    %p41 = scmp.eq.s32.totalorder %s15, 0
    %p42 = por %p40, %p41
    %s44 = sadd.s32 %s43, 1
    %p47 = scmp.eq.s32.totalorder %s9, 3
    %p48 = scmp.ne.s32.totalorder %s43, %s45
    %p49 = scmp.eq.s32.totalorder %s9, 0
    %p50 = por %p48, %p49
    %p51 = scmp.ne.s32.totalorder %s43, %s45
    %p52 = scmp.eq.s32.totalorder %s14, 3
    %p53 = por %p51, %p52
    %p54 = scmp.ne.s32.totalorder %s45, %s46
    %p55 = scmp.eq.s32.totalorder %s14, 0
    %p56 = por %p54, %p55
    %p57 = scmp.ne.s32.totalorder %s45, %s46
    %p58 = scmp.eq.s32.totalorder %s15, 3
    %p59 = por %p57, %p58
    %p61 = scmp.ne.s32.totalorder %s46, %s60
    %p62 = scmp.eq.s32.totalorder %s15, 0
    %p63 = por %p61, %p62
    %s65 = sadd.s32 %s64, 1
    %p68 = scmp.eq.s32.totalorder %s9, 3
    %p69 = scmp.ne.s32.totalorder %s64, %s66
    %p70 = scmp.eq.s32.totalorder %s9, 0
    %p71 = por %p69, %p70
    %p72 = scmp.ne.s32.totalorder %s64, %s66
    %p73 = scmp.eq.s32.totalorder %s14, 3
    %p74 = por %p72, %p73
    %p75 = scmp.ne.s32.totalorder %s66, %s67
    %p76 = scmp.eq.s32.totalorder %s14, 0
    %p77 = por %p75, %p76
    %p78 = scmp.ne.s32.totalorder %s66, %s67
    %p79 = scmp.eq.s32.totalorder %s15, 3
    %p80 = por %p78, %p79
    %p82 = scmp.ne.s32.totalorder %s67, %s81
    %p83 = scmp.eq.s32.totalorder %s15, 0
    %p84 = por %p82, %p83
    %s85 = ssub.s32 %s9, %s16
    %p86 = scmp.eq.s32.totalorder %s85, 0
    %s88 = sadd.s32 %s87, 1
    %s89 = scalar_select %p86, %s87, %s88
    %p92 = pneg %p86
    %p93 = scmp.eq.s32.totalorder %s9, 3
    %p94 = por %p92, %p93
    %p95 = scmp.ne.s32.totalorder %s87, %s90
    %p96 = scmp.eq.s32.totalorder %s9, 0
    %p97 = por %p95, %p96
    %p98 = scmp.ne.s32.totalorder %s87, %s90
    %p99 = scmp.eq.s32.totalorder %s14, 3
    %p100 = por %p98, %p99
    %p101 = scmp.ne.s32.totalorder %s90, %s91
    %p102 = scmp.eq.s32.totalorder %s14, 0
    %p103 = por %p101, %p102
    %p104 = scmp.ne.s32.totalorder %s90, %s91
    %p105 = scmp.eq.s32.totalorder %s15, 3
    %p106 = por %p104, %p105
    %p108 = scmp.ne.s32.totalorder %s91, %s107
    %p109 = scmp.eq.s32.totalorder %s15, 0
    %p110 = por %p108, %p109
    %p111 = scmp.le.s32.totalorder 1, %s9
    %p112 = scmp.lt.s32.totalorder %s9, 5
    %p113 = pnand %p111, %p112
    %p114 = pneg %p113
    // Predicated region
    $region9: #{model_forward.8} parent=5 // pred_check
      _
    $region10: #{model_forward.8} parent=5 // pred_check_branch
      %116 = sbr.rel (%p113) target = $region12
    $region11: #{model_forward.8} parent=5 // pred_region
      %s117 = ssub.s32 %s9, 1
      // Predicated region
      $region13: #{model_forward.8} parent=11 // pred_check
        %p118 = pneg %p56
      $region14: #{model_forward.8} parent=11 // pred_check_branch
        %120 = sbr.rel (%p118) target = $region16
      $region15: #{model_forward.8} parent=11 // pred_region
        _
      $region16: #{model_forward.8} parent=11 // pred_fallthru
        _
      // Predicated region
      $region17: #{model_forward.8} parent=11 // pred_check
        %p121 = pneg %p77
      $region18: #{model_forward.8} parent=11 // pred_check_branch
        %123 = sbr.rel (%p121) target = $region20
      $region19: #{model_forward.8} parent=11 // pred_region
        _
      $region20: #{model_forward.8} parent=11 // pred_fallthru
        _
    $region12: #{model_forward.8} parent=5 // pred_fallthru
      _
    %p124 = scmp.lt.s32.totalorder %s9, 4
    // Predicated region
    $region21: #{model_forward.8} parent=5 // pred_check
      %p125 = pneg %p124
    $region22: #{model_forward.8} parent=5 // pred_check_branch
      %127 = sbr.rel (%p125) target = $region24
    $region23: #{model_forward.8} parent=5 // pred_region
      // Predicated region
      $region25: #{model_forward.8} parent=23 // pred_check
        %p128 = pneg %p29
      $region26: #{model_forward.8} parent=23 // pred_check_branch
        %130 = sbr.rel (%p128) target = $region28
      $region27: #{model_forward.8} parent=23 // pred_region
        %s131 = smul.u32 64, %s9
        %p132 = scmp.lt.s32.totalorder %s131, 255
        %s133 = scalar_select %p132, %s131, 255
        %s134 = smul.addr %s133, 4
        %s135 = scalar_lea.vmem %s0, %s134
        %s136 = smul.u32 64, %s9
      $region28: #{model_forward.8} parent=23 // pred_fallthru
        _
    $region24: #{model_forward.8} parent=5 // pred_fallthru
      _
    %p137 = scmp.le.s32.totalorder 1, %s9
    %p138 = scmp.lt.s32.totalorder %s9, 5
    %p139 = pnand %p137, %p138
    %p140 = pneg %p139
    // Predicated region
    $region29: #{model_forward.8} parent=5 // pred_check
      _
    $region30: #{model_forward.8} parent=5 // pred_check_branch
      %142 = sbr.rel (%p139) target = $region32
    $region31: #{model_forward.8} parent=5 // pred_region
      %s143 = ssub.s32 %s9, 1
      %s144 = smul.u32 64, %s14
      %p145 = scmp.lt.s32.totalorder %s144, 255
      %s146 = scalar_select %p145, %s144, 255
      %s147 = smul.addr %s146, 4
      %s148 = scalar_lea.vmem %s0, %s147
      %p149 = pneg %p35
      %p150 = pneg %p32
      %p151 = pneg %p56
      %p152 = pneg %p53
      %p153 = pneg %p77
      %p154 = pneg %p74
      %p155 = pneg %p103
      %p156 = pneg %p100
      %s157 = smul.u32 64, %s14
      %p158 = scmp.lt.s32.totalorder %s157, 255
      %s159 = scalar_select %p158, %s157, 255
      %s160 = smul.addr %s159, 4
      %s161 = scalar_lea.vmem %s3, %s160
      %s162 = smul.u32 64, %s14
      %p163 = scmp.lt.s32.totalorder %s162, 255
      %s164 = scalar_select %p163, %s162, 255
      %s165 = smul.addr %s164, 4
      %s166 = scalar_lea.vmem %s0, %s165
      %s167 = smul.u32 64, %s14
      %s168 = smul.u32 64, %s14
      %p169 = scmp.lt.s32.totalorder %s168, 255
      %s170 = scalar_select %p169, %s168, 255
      %s171 = smul.addr %s170, 4
      %s172 = scalar_lea.vmem %s3, %s171
      %s173 = smul.u32 64, %s14
      %v175 = vld [vmem:[%s166] sm:$0xf]
      %v176 = vld [vmem:[%s166 + $0x4] sm:$0xf]
      %v177 = vld [vmem:[%s166 + $0x8] sm:$0xf]
      %v178 = vld [vmem:[%s166 + $0xc] sm:$0xf]
      %v179 = vld [vmem:[%s166 + $0x10] sm:$0xf]
      %v180 = vld [vmem:[%s166 + $0x14] sm:$0xf]
      %v181 = vld [vmem:[%s166 + $0x18] sm:$0xf]
      %v182 = vld [vmem:[%s166 + $0x1c] sm:$0xf]
      %v183 = vld [vmem:[%s166 + $0x20] sm:$0xf]
      %v184 = vld [vmem:[%s166 + $0x24] sm:$0xf]
      %v185 = vld [vmem:[%s166 + $0x28] sm:$0xf]
      %v186 = vld [vmem:[%s166 + $0x2c] sm:$0xf]
      %v187 = vld [vmem:[%s166 + $0x30] sm:$0xf]
      %v188 = vld [vmem:[%s166 + $0x34] sm:$0xf]
      %v189 = vld [vmem:[%s166 + $0x38] sm:$0xf]
      %v190 = vld [vmem:[%s166 + $0x3c] sm:$0xf]
      %v191 = vld [vmem:[%s166 + $0x40] sm:$0xf]
      %v192 = vld [vmem:[%s166 + $0x44] sm:$0xf]
      %v193 = vld [vmem:[%s166 + $0x48] sm:$0xf]
      %v194 = vld [vmem:[%s166 + $0x4c] sm:$0xf]
      %v195 = vld [vmem:[%s166 + $0x50] sm:$0xf]
      %v196 = vld [vmem:[%s166 + $0x54] sm:$0xf]
      %v197 = vld [vmem:[%s166 + $0x58] sm:$0xf]
      %v198 = vld [vmem:[%s166 + $0x5c] sm:$0xf]
      %v199 = vld [vmem:[%s166 + $0x60] sm:$0xf]
      %v200 = vld [vmem:[%s166 + $0x64] sm:$0xf]
      %v201 = vld [vmem:[%s166 + $0x68] sm:$0xf]
      %v202 = vld [vmem:[%s166 + $0x6c] sm:$0xf]
      %v203 = vld [vmem:[%s166 + $0x70] sm:$0xf]
      %v204 = vld [vmem:[%s166 + $0x74] sm:$0xf]
      %v205 = vld [vmem:[%s166 + $0x78] sm:$0xf]
      %v206 = vld [vmem:[%s166 + $0x7c] sm:$0xf]
      %v207 = vld [vmem:[%s166 + $0x80] sm:$0xf]
      %v208 = vld [vmem:[%s166 + $0x84] sm:$0xf]
      %v209 = vld [vmem:[%s166 + $0x88] sm:$0xf]
      %v210 = vld [vmem:[%s166 + $0x8c] sm:$0xf]
      %v211 = vld [vmem:[%s166 + $0x90] sm:$0xf]
      %v212 = vld [vmem:[%s166 + $0x94] sm:$0xf]
      %v213 = vld [vmem:[%s166 + $0x98] sm:$0xf]
      %v214 = vld [vmem:[%s166 + $0x9c] sm:$0xf]
      %v215 = vld [vmem:[%s166 + $0xa0] sm:$0xf]
      %v216 = vld [vmem:[%s166 + $0xa4] sm:$0xf]
      %v217 = vld [vmem:[%s166 + $0xa8] sm:$0xf]
      %v218 = vld [vmem:[%s166 + $0xac] sm:$0xf]
      %v219 = vld [vmem:[%s166 + $0xb0] sm:$0xf]
      %v220 = vld [vmem:[%s166 + $0xb4] sm:$0xf]
      %v221 = vld [vmem:[%s166 + $0xb8] sm:$0xf]
      %v222 = vld [vmem:[%s166 + $0xbc] sm:$0xf]
      %v223 = vld [vmem:[%s166 + $0xc0] sm:$0xf]
      %v224 = vld [vmem:[%s166 + $0xc4] sm:$0xf]
      %v225 = vld [vmem:[%s166 + $0xc8] sm:$0xf]
      %v226 = vld [vmem:[%s166 + $0xcc] sm:$0xf]
      %v227 = vld [vmem:[%s166 + $0xd0] sm:$0xf]
      %v228 = vld [vmem:[%s166 + $0xd4] sm:$0xf]
      %v229 = vld [vmem:[%s166 + $0xd8] sm:$0xf]
      %v230 = vld [vmem:[%s166 + $0xdc] sm:$0xf]
      %v231 = vld [vmem:[%s166 + $0xe0] sm:$0xf]
      %v232 = vld [vmem:[%s166 + $0xe4] sm:$0xf]
      %v233 = vld [vmem:[%s166 + $0xe8] sm:$0xf]
      %v234 = vld [vmem:[%s166 + $0xec] sm:$0xf]
      %v235 = vld [vmem:[%s166 + $0xf0] sm:$0xf]
      %v236 = vld [vmem:[%s166 + $0xf4] sm:$0xf]
      %v237 = vld [vmem:[%s166 + $0xf8] sm:$0xf]
      %v238 = vld [vmem:[%s166 + $0xfc] sm:$0xf]
      %v239 = vld [vmem:[%s1] sm:$0xf]
      %v240 = vld [vmem:[%s1 + $0x4] sm:$0xf]
      %v241 = vld [vmem:[%s1 + $0x8] sm:$0xf]
      %v242 = vld [vmem:[%s1 + $0xc] sm:$0x3]
      %v243 = vld [vmem:[%s2] sm:$0x1]
      %v245 = vlaneseq
      %v246 = vshrl.u32 %v245, 7
      %v247 = vsub.s32 0, %v246
      %v248 = vrot.slane %v243, %v247
      %v314 = vunpack.c.l.b16 %v175
      %v315 = vunpack.c.l.b16 %v176
      %v316 = vunpack.c.l.b16 %v177
      %v317 = vunpack.c.l.b16 %v178
      %v318 = vunpack.c.l.b16 %v179
      %v319 = vunpack.c.l.b16 %v180
      %v320 = vunpack.c.l.b16 %v181
      %v321 = vunpack.c.l.b16 %v182
      %v322 = vunpack.c.l.b16 %v183
      %v323 = vunpack.c.l.b16 %v184
      %v324 = vunpack.c.l.b16 %v185
      %v325 = vunpack.c.l.b16 %v186
      %v326 = vunpack.c.l.b16 %v187
      %v327 = vunpack.c.l.b16 %v188
      %v328 = vunpack.c.l.b16 %v189
      %v329 = vunpack.c.l.b16 %v190
      %v330 = vunpack.c.l.b16 %v191
      %v331 = vunpack.c.l.b16 %v192
      %v332 = vunpack.c.l.b16 %v193
      %v333 = vunpack.c.l.b16 %v194
      %v334 = vunpack.c.l.b16 %v195
      %v335 = vunpack.c.l.b16 %v196
      %v336 = vunpack.c.l.b16 %v197
      %v337 = vunpack.c.l.b16 %v198
      %v338 = vunpack.c.l.b16 %v199
      %v339 = vunpack.c.l.b16 %v200
      %v340 = vunpack.c.l.b16 %v201
      %v341 = vunpack.c.l.b16 %v202
      %v342 = vunpack.c.l.b16 %v203
      %v343 = vunpack.c.l.b16 %v204
      %v344 = vunpack.c.l.b16 %v205
      %v345 = vunpack.c.l.b16 %v206
      %v346 = vunpack.c.l.b16 %v207
      %v347 = vunpack.c.l.b16 %v208
      %v348 = vunpack.c.l.b16 %v209
      %v349 = vunpack.c.l.b16 %v210
      %v350 = vunpack.c.l.b16 %v211
      %v351 = vunpack.c.l.b16 %v212
      %v352 = vunpack.c.l.b16 %v213
      %v353 = vunpack.c.l.b16 %v214
      %v354 = vunpack.c.l.b16 %v215
      %v355 = vunpack.c.l.b16 %v216
      %v356 = vunpack.c.l.b16 %v217
      %v357 = vunpack.c.l.b16 %v218
      %v358 = vunpack.c.l.b16 %v219
      %v359 = vunpack.c.l.b16 %v220
      %v360 = vunpack.c.l.b16 %v221
      %v361 = vunpack.c.l.b16 %v222
      %v362 = vunpack.c.l.b16 %v223
      %v363 = vunpack.c.l.b16 %v224
      %v364 = vunpack.c.l.b16 %v225
      %v365 = vunpack.c.l.b16 %v226
      %v366 = vunpack.c.l.b16 %v227
      %v367 = vunpack.c.l.b16 %v228
      %v368 = vunpack.c.l.b16 %v229
      %v369 = vunpack.c.l.b16 %v230
      %v370 = vunpack.c.l.b16 %v231
      %v371 = vunpack.c.l.b16 %v232
      %v372 = vunpack.c.l.b16 %v233
      %v373 = vunpack.c.l.b16 %v234
      %v374 = vunpack.c.l.b16 %v235
      %v375 = vunpack.c.l.b16 %v236
      %v376 = vunpack.c.l.b16 %v237
      %v377 = vunpack.c.l.b16 %v238
      %v378 = vpack.c.b16 %v315, %v314
      %v379 = vpack.c.b16 %v317, %v316
      %v380 = vpack.c.b16 %v319, %v318
      %v381 = vpack.c.b16 %v321, %v320
      %v382 = vpack.c.b16 %v323, %v322
      %v383 = vpack.c.b16 %v325, %v324
      %v384 = vpack.c.b16 %v327, %v326
      %v385 = vpack.c.b16 %v329, %v328
      %v386 = vpack.c.b16 %v331, %v330
      %v387 = vpack.c.b16 %v333, %v332
      %v388 = vpack.c.b16 %v335, %v334
      %v389 = vpack.c.b16 %v337, %v336
      %v390 = vpack.c.b16 %v339, %v338
      %v391 = vpack.c.b16 %v341, %v340
      %v392 = vpack.c.b16 %v343, %v342
      %v393 = vpack.c.b16 %v345, %v344
      %v394 = vpack.c.b16 %v347, %v346
      %v395 = vpack.c.b16 %v349, %v348
      %v396 = vpack.c.b16 %v351, %v350
      %v397 = vpack.c.b16 %v353, %v352
      %v398 = vpack.c.b16 %v355, %v354
      %v399 = vpack.c.b16 %v357, %v356
      %v400 = vpack.c.b16 %v359, %v358
      %v401 = vpack.c.b16 %v361, %v360
      %v402 = vpack.c.b16 %v363, %v362
      %v403 = vpack.c.b16 %v365, %v364
      %v404 = vpack.c.b16 %v367, %v366
      %v405 = vpack.c.b16 %v369, %v368
      %v406 = vpack.c.b16 %v371, %v370
      %v407 = vpack.c.b16 %v373, %v372
      %v408 = vpack.c.b16 %v375, %v374
      %v409 = vpack.c.b16 %v377, %v376
      %v414 = vunpack.c.l.b16 %v239
      %v415 = vunpack.c.l.b16 %v240
      %v416 = vunpack.c.l.b16 %v241
      %v417 = vunpack.c.l.b16 %v242
      %v418 = vpack.c.b16 %v415, %v414
      %v419 = vpack.c.b16 %v417, %v416
      %vm421 = vcmask 220160
      %v423 = vsel %vm421, %v378, 0
      %v426 = vsel %vm421, %v379, 0
      %v429 = vsel %vm421, %v380, 0
      %v432 = vsel %vm421, %v381, 0
      %v435 = vsel %vm421, %v382, 0
      %v438 = vsel %vm421, %v383, 0
      %v441 = vsel %vm421, %v384, 0
      %v444 = vsel %vm421, %v385, 0
      %v447 = vsel %vm421, %v386, 0
      %v450 = vsel %vm421, %v387, 0
      %v453 = vsel %vm421, %v388, 0
      %v456 = vsel %vm421, %v389, 0
      %v459 = vsel %vm421, %v390, 0
      %v462 = vsel %vm421, %v391, 0
      %v465 = vsel %vm421, %v392, 0
      %v468 = vsel %vm421, %v393, 0
      %v471 = vsel %vm421, %v394, 0
      %v474 = vsel %vm421, %v395, 0
      %v477 = vsel %vm421, %v396, 0
      %v480 = vsel %vm421, %v397, 0
      %v483 = vsel %vm421, %v398, 0
      %v486 = vsel %vm421, %v399, 0
      %v489 = vsel %vm421, %v400, 0
      %v492 = vsel %vm421, %v401, 0
      %v495 = vsel %vm421, %v402, 0
      %v498 = vsel %vm421, %v403, 0
      %v501 = vsel %vm421, %v404, 0
      %v504 = vsel %vm421, %v405, 0
      %v507 = vsel %vm421, %v406, 0
      %v510 = vsel %vm421, %v407, 0
      %v513 = vsel %vm421, %v408, 0
      %v516 = vsel %vm421, %v409, 0
      %vm518 = vcmask 1044480
      %vm519 = vcmask 1045504
      %v520 = vsel %vm518, 4294967295, 65535
      %v521 = vsel %vm519, %v520, 0
      %v523 = vand.u32 %v419, %v521
      %525 = vmatprep.subr.bf16.mxu0 0
      %526 = vmatpush1.bf16.msra.mxu0 %v418
      %527 = vmatprep.subr.bf16.mxu0 0
      %528 = vmatpush1.bf16.msra.mxu0 %v523
      %529 = vmatprep.subr.bf16.mxu0 0
      %530 = vmatpush1.bf16.msra.mxu0 0
      %531 = vmatprep.subr.bf16.mxu0 0
      %532 = vmatpush1.bf16.msra.mxu0 0
      %533 = vmatprep.subr.bf16.mxu0 0
      %534 = vmatpush1.bf16.msra.mxu0 0
      %535 = vmatprep.subr.bf16.mxu0 0
      %536 = vmatpush1.bf16.msra.mxu0 0
      %537 = vmatprep.subr.bf16.mxu0 0
      %538 = vmatpush1.bf16.msra.mxu0 0
      %539 = vmatprep.subr.bf16.mxu0 0
      %540 = vmatpush1.bf16.msra.mxu0 0
      %541 = vmatprep.subr.bf16.mxu0 0
      %542 = vmatpush1.bf16.msra.mxu0 0
      %543 = vmatprep.subr.bf16.mxu0 0
      %544 = vmatpush1.bf16.msra.mxu0 0
      %545 = vmatprep.subr.bf16.mxu0 0
      %546 = vmatpush1.bf16.msra.mxu0 0
      %547 = vmatprep.subr.bf16.mxu0 0
      %548 = vmatpush1.bf16.msra.mxu0 0
      %549 = vmatprep.subr.bf16.mxu0 0
      %550 = vmatpush1.bf16.msra.mxu0 0
      %551 = vmatprep.subr.bf16.mxu0 0
      %552 = vmatpush1.bf16.msra.mxu0 0
      %553 = vmatprep.subr.bf16.mxu0 0
      %554 = vmatpush1.bf16.msra.mxu0 0
      %555 = vmatprep.subr.bf16.mxu0 0
      %556 = vmatpush1.bf16.msra.mxu0 0
      %557 = vmatprep.mubr.bf16.mxu0 0
      %558 = vmatmul.mubr.bf16.gmra.mrb[0].mxu0 %v423
      %v559 = vpop.f32.mrb[0].mxu0
      %v560 = vadd.f32 %v248, %v559
      %v561 = vpop.f32.mrb[0].mxu0
      %v562 = vpop.f32.mrb[0].mxu0
      %v563 = vadd.f32 %v248, %v562
      %v564 = vpop.f32.mrb[0].mxu0
      %565 = vmatprep.mubr.bf16.mxu0 0
      %566 = vmatmul.mubr.bf16.gmra.mrb[0].mxu0 %v426
      %v567 = vpop.f32.mrb[0].mxu0
      %v568 = vadd.f32 %v248, %v567
      %v569 = vpop.f32.mrb[0].mxu0
      %v570 = vpop.f32.mrb[0].mxu0
      %v571 = vadd.f32 %v248, %v570
      %v572 = vpop.f32.mrb[0].mxu0
      %573 = vmatprep.mubr.bf16.mxu0 0
      %574 = vmatmul.mubr.bf16.gmra.mrb[0].mxu0 %v429
      %v575 = vpop.f32.mrb[0].mxu0
      %v576 = vadd.f32 %v248, %v575
      %v577 = vpop.f32.mrb[0].mxu0
      %v578 = vpop.f32.mrb[0].mxu0
      %v579 = vadd.f32 %v248, %v578
      %v580 = vpop.f32.mrb[0].mxu0
      %581 = vmatprep.mubr.bf16.mxu0 0
      %582 = vmatmul.mubr.bf16.gmra.mrb[0].mxu0 %v432
      %v583 = vpop.f32.mrb[0].mxu0
      %v584 = vadd.f32 %v248, %v583
      %v585 = vpop.f32.mrb[0].mxu0
      %v586 = vpop.f32.mrb[0].mxu0
      %v587 = vadd.f32 %v248, %v586
      %v588 = vpop.f32.mrb[0].mxu0
      %589 = vmatprep.mubr.bf16.mxu0 0
      %590 = vmatmul.mubr.bf16.gmra.mrb[0].mxu0 %v435
      %v591 = vpop.f32.mrb[0].mxu0
      %v592 = vadd.f32 %v248, %v591
      %v593 = vpop.f32.mrb[0].mxu0
      %v594 = vpop.f32.mrb[0].mxu0
      %v595 = vadd.f32 %v248, %v594
      %v596 = vpop.f32.mrb[0].mxu0
      %597 = vmatprep.mubr.bf16.mxu0 0
      %598 = vmatmul.mubr.bf16.gmra.mrb[0].mxu0 %v438
      %v599 = vpop.f32.mrb[0].mxu0
      %v600 = vadd.f32 %v248, %v599
      %v601 = vpop.f32.mrb[0].mxu0
      %v602 = vpop.f32.mrb[0].mxu0
      %v603 = vadd.f32 %v248, %v602
      %v604 = vpop.f32.mrb[0].mxu0
      %605 = vmatprep.mubr.bf16.mxu0 0
      %606 = vmatmul.mubr.bf16.gmra.mrb[0].mxu0 %v441
      %v607 = vpop.f32.mrb[0].mxu0
      %v608 = vadd.f32 %v248, %v607
      %v609 = vpop.f32.mrb[0].mxu0
      %v610 = vpop.f32.mrb[0].mxu0
      %v611 = vadd.f32 %v248, %v610
      %v612 = vpop.f32.mrb[0].mxu0
      %613 = vmatprep.mubr.bf16.mxu0 0
      %614 = vmatmul.mubr.bf16.gmra.mrb[0].mxu0 %v444
      %v615 = vpop.f32.mrb[0].mxu0
      %v616 = vadd.f32 %v248, %v615
      %v617 = vpop.f32.mrb[0].mxu0
      %v618 = vpop.f32.mrb[0].mxu0
      %v619 = vadd.f32 %v248, %v618
      %v620 = vpop.f32.mrb[0].mxu0
      %621 = vmatprep.mubr.bf16.mxu0 0
      %622 = vmatmul.mubr.bf16.gmra.mrb[0].mxu0 %v447
      %v623 = vpop.f32.mrb[0].mxu0
      %v624 = vadd.f32 %v248, %v623
      %v625 = vpop.f32.mrb[0].mxu0
      %v626 = vpop.f32.mrb[0].mxu0
      %v627 = vadd.f32 %v248, %v626
      %v628 = vpop.f32.mrb[0].mxu0
      %629 = vmatprep.mubr.bf16.mxu0 0
      %630 = vmatmul.mubr.bf16.gmra.mrb[0].mxu0 %v450
      %v631 = vpop.f32.mrb[0].mxu0
      %v632 = vadd.f32 %v248, %v631
      %v633 = vpop.f32.mrb[0].mxu0
      %v634 = vpop.f32.mrb[0].mxu0
      %v635 = vadd.f32 %v248, %v634
      %v636 = vpop.f32.mrb[0].mxu0
      %637 = vmatprep.mubr.bf16.mxu0 0
      %638 = vmatmul.mubr.bf16.gmra.mrb[0].mxu0 %v453
      %v639 = vpop.f32.mrb[0].mxu0
      %v640 = vadd.f32 %v248, %v639
      %v641 = vpop.f32.mrb[0].mxu0
      %v642 = vpop.f32.mrb[0].mxu0
      %v643 = vadd.f32 %v248, %v642
      %v644 = vpop.f32.mrb[0].mxu0
      %645 = vmatprep.mubr.bf16.mxu0 0
      %646 = vmatmul.mubr.bf16.gmra.mrb[0].mxu0 %v456
      %v647 = vpop.f32.mrb[0].mxu0
      %v648 = vadd.f32 %v248, %v647
      %v649 = vpop.f32.mrb[0].mxu0
      %v650 = vpop.f32.mrb[0].mxu0
      %v651 = vadd.f32 %v248, %v650
      %v652 = vpop.f32.mrb[0].mxu0
      %653 = vmatprep.mubr.bf16.mxu0 0
      %654 = vmatmul.mubr.bf16.gmra.mrb[0].mxu0 %v459
      %v655 = vpop.f32.mrb[0].mxu0
      %v656 = vadd.f32 %v248, %v655
      %v657 = vpop.f32.mrb[0].mxu0
      %v658 = vpop.f32.mrb[0].mxu0
      %v659 = vadd.f32 %v248, %v658
      %v660 = vpop.f32.mrb[0].mxu0
      %661 = vmatprep.mubr.bf16.mxu0 0
      %662 = vmatmul.mubr.bf16.gmra.mrb[0].mxu0 %v462
      %v663 = vpop.f32.mrb[0].mxu0
      %v664 = vadd.f32 %v248, %v663
      %v665 = vpop.f32.mrb[0].mxu0
      %v666 = vpop.f32.mrb[0].mxu0
      %v667 = vadd.f32 %v248, %v666
      %v668 = vpop.f32.mrb[0].mxu0
      %669 = vmatprep.mubr.bf16.mxu0 0
      %670 = vmatmul.mubr.bf16.gmra.mrb[0].mxu0 %v465
      %v671 = vpop.f32.mrb[0].mxu0
      %v672 = vadd.f32 %v248, %v671
      %v673 = vpop.f32.mrb[0].mxu0
      %v674 = vpop.f32.mrb[0].mxu0
      %v675 = vadd.f32 %v248, %v674
      %v676 = vpop.f32.mrb[0].mxu0
      %677 = vmatprep.mubr.bf16.mxu0 0
      %678 = vmatmul.mubr.bf16.gmra.mrb[0].mxu0 %v468
      %v679 = vpop.f32.mrb[0].mxu0
      %v680 = vadd.f32 %v248, %v679
      %v681 = vpop.f32.mrb[0].mxu0
      %v682 = vpop.f32.mrb[0].mxu0
      %v683 = vadd.f32 %v248, %v682
      %v684 = vpop.f32.mrb[0].mxu0
      %685 = vmatprep.mubr.bf16.mxu0 0
      %686 = vmatmul.mubr.bf16.gmra.mrb[0].mxu0 %v471
      %v687 = vpop.f32.mrb[0].mxu0
      %v688 = vadd.f32 %v248, %v687
      %v689 = vpop.f32.mrb[0].mxu0
      %v690 = vpop.f32.mrb[0].mxu0
      %v691 = vadd.f32 %v248, %v690
      %v692 = vpop.f32.mrb[0].mxu0
      %693 = vmatprep.mubr.bf16.mxu0 0
      %694 = vmatmul.mubr.bf16.gmra.mrb[0].mxu0 %v474
      %v695 = vpop.f32.mrb[0].mxu0
      %v696 = vadd.f32 %v248, %v695
      %v697 = vpop.f32.mrb[0].mxu0
      %v698 = vpop.f32.mrb[0].mxu0
      %v699 = vadd.f32 %v248, %v698
      %v700 = vpop.f32.mrb[0].mxu0
      %701 = vmatprep.mubr.bf16.mxu0 0
      %702 = vmatmul.mubr.bf16.gmra.mrb[0].mxu0 %v477
      %v703 = vpop.f32.mrb[0].mxu0
      %v704 = vadd.f32 %v248, %v703
      %v705 = vpop.f32.mrb[0].mxu0
      %v706 = vpop.f32.mrb[0].mxu0
      %v707 = vadd.f32 %v248, %v706
      %v708 = vpop.f32.mrb[0].mxu0
      %709 = vmatprep.mubr.bf16.mxu0 0
      %710 = vmatmul.mubr.bf16.gmra.mrb[0].mxu0 %v480
      %v711 = vpop.f32.mrb[0].mxu0
      %v712 = vadd.f32 %v248, %v711
      %v713 = vpop.f32.mrb[0].mxu0
      %v714 = vpop.f32.mrb[0].mxu0
      %v715 = vadd.f32 %v248, %v714
      %v716 = vpop.f32.mrb[0].mxu0
      %717 = vmatprep.mubr.bf16.mxu0 0
      %718 = vmatmul.mubr.bf16.gmra.mrb[0].mxu0 %v483
      %v719 = vpop.f32.mrb[0].mxu0
      %v720 = vadd.f32 %v248, %v719
      %v721 = vpop.f32.mrb[0].mxu0
      %v722 = vpop.f32.mrb[0].mxu0
      %v723 = vadd.f32 %v248, %v722
      %v724 = vpop.f32.mrb[0].mxu0
      %725 = vmatprep.mubr.bf16.mxu0 0
      %726 = vmatmul.mubr.bf16.gmra.mrb[0].mxu0 %v486
      %v727 = vpop.f32.mrb[0].mxu0
      %v728 = vadd.f32 %v248, %v727
      %v729 = vpop.f32.mrb[0].mxu0
      %v730 = vpop.f32.mrb[0].mxu0
      %v731 = vadd.f32 %v248, %v730
      %v732 = vpop.f32.mrb[0].mxu0
      %733 = vmatprep.mubr.bf16.mxu0 0
      %734 = vmatmul.mubr.bf16.gmra.mrb[0].mxu0 %v489
      %v735 = vpop.f32.mrb[0].mxu0
      %v736 = vadd.f32 %v248, %v735
      %v737 = vpop.f32.mrb[0].mxu0
      %v738 = vpop.f32.mrb[0].mxu0
      %v739 = vadd.f32 %v248, %v738
      %v740 = vpop.f32.mrb[0].mxu0
      %741 = vmatprep.mubr.bf16.mxu0 0
      %742 = vmatmul.mubr.bf16.gmra.mrb[0].mxu0 %v492
      %v743 = vpop.f32.mrb[0].mxu0
      %v744 = vadd.f32 %v248, %v743
      %v745 = vpop.f32.mrb[0].mxu0
      %v746 = vpop.f32.mrb[0].mxu0
      %v747 = vadd.f32 %v248, %v746
      %v748 = vpop.f32.mrb[0].mxu0
      %749 = vmatprep.mubr.bf16.mxu0 0
      %750 = vmatmul.mubr.bf16.gmra.mrb[0].mxu0 %v495
      %v751 = vpop.f32.mrb[0].mxu0
      %v752 = vadd.f32 %v248, %v751
      %v753 = vpop.f32.mrb[0].mxu0
      %v754 = vpop.f32.mrb[0].mxu0
      %v755 = vadd.f32 %v248, %v754
      %v756 = vpop.f32.mrb[0].mxu0
      %757 = vmatprep.mubr.bf16.mxu0 0
      %758 = vmatmul.mubr.bf16.gmra.mrb[0].mxu0 %v498
      %v759 = vpop.f32.mrb[0].mxu0
      %v760 = vadd.f32 %v248, %v759
      %v761 = vpop.f32.mrb[0].mxu0
      %v762 = vpop.f32.mrb[0].mxu0
      %v763 = vadd.f32 %v248, %v762
      %v764 = vpop.f32.mrb[0].mxu0
      %765 = vmatprep.mubr.bf16.mxu0 0
      %766 = vmatmul.mubr.bf16.gmra.mrb[0].mxu0 %v501
      %v767 = vpop.f32.mrb[0].mxu0
      %v768 = vadd.f32 %v248, %v767
      %v769 = vpop.f32.mrb[0].mxu0
      %v770 = vpop.f32.mrb[0].mxu0
      %v771 = vadd.f32 %v248, %v770
      %v772 = vpop.f32.mrb[0].mxu0
      %773 = vmatprep.mubr.bf16.mxu0 0
      %774 = vmatmul.mubr.bf16.gmra.mrb[0].mxu0 %v504
      %v775 = vpop.f32.mrb[0].mxu0
      %v776 = vadd.f32 %v248, %v775
      %v777 = vpop.f32.mrb[0].mxu0
      %v778 = vpop.f32.mrb[0].mxu0
      %v779 = vadd.f32 %v248, %v778
      %v780 = vpop.f32.mrb[0].mxu0
      %781 = vmatprep.mubr.bf16.mxu0 0
      %782 = vmatmul.mubr.bf16.gmra.mrb[0].mxu0 %v507
      %v783 = vpop.f32.mrb[0].mxu0
      %v784 = vadd.f32 %v248, %v783
      %v785 = vpop.f32.mrb[0].mxu0
      %v786 = vpop.f32.mrb[0].mxu0
      %v787 = vadd.f32 %v248, %v786
      %v788 = vpop.f32.mrb[0].mxu0
      %789 = vmatprep.mubr.bf16.mxu0 0
      %790 = vmatmul.mubr.bf16.gmra.mrb[0].mxu0 %v510
      %v791 = vpop.f32.mrb[0].mxu0
      %v792 = vadd.f32 %v248, %v791
      %v793 = vpop.f32.mrb[0].mxu0
      %v794 = vpop.f32.mrb[0].mxu0
      %v795 = vadd.f32 %v248, %v794
      %v796 = vpop.f32.mrb[0].mxu0
      %797 = vmatprep.mubr.bf16.mxu0 0
      %798 = vmatmul.mubr.bf16.gmra.mrb[0].mxu0 %v513
      %v799 = vpop.f32.mrb[0].mxu0
      %v800 = vadd.f32 %v248, %v799
      %v801 = vpop.f32.mrb[0].mxu0
      %v802 = vpop.f32.mrb[0].mxu0
      %v803 = vadd.f32 %v248, %v802
      %v804 = vpop.f32.mrb[0].mxu0
      %805 = vmatprep.mubr.bf16.mxu0 0
      %806 = vmatmul.mubr.bf16.gmra.mrb[0].mxu0 %v516
      %v807 = vpop.f32.mrb[0].mxu0
      %v808 = vadd.f32 %v248, %v807
      %v809 = vpop.f32.mrb[0].mxu0
      %v810 = vpop.f32.mrb[0].mxu0
      %v811 = vadd.f32 %v248, %v810
      %v812 = vpop.f32.mrb[0].mxu0
      %813 = vdwg.mxu0
      %v814 = vxor.u32 %v560, 2147483648
      %v815 = vxor.u32 %v563, 2147483648
      %v816 = vxor.u32 %v568, 2147483648
      %v817 = vxor.u32 %v571, 2147483648
      %v818 = vxor.u32 %v576, 2147483648
      %v819 = vxor.u32 %v579, 2147483648
      %v820 = vxor.u32 %v584, 2147483648
      %v821 = vxor.u32 %v587, 2147483648
      %v822 = vxor.u32 %v592, 2147483648
      %v823 = vxor.u32 %v595, 2147483648
      %v824 = vxor.u32 %v600, 2147483648
      %v825 = vxor.u32 %v603, 2147483648
      %v826 = vxor.u32 %v608, 2147483648
      %v827 = vxor.u32 %v611, 2147483648
      %v828 = vxor.u32 %v616, 2147483648
      %v829 = vxor.u32 %v619, 2147483648
      %v830 = vxor.u32 %v624, 2147483648
      %v831 = vxor.u32 %v627, 2147483648
      %v832 = vxor.u32 %v632, 2147483648
      %v833 = vxor.u32 %v635, 2147483648
      %v834 = vxor.u32 %v640, 2147483648
      %v835 = vxor.u32 %v643, 2147483648
      %v836 = vxor.u32 %v648, 2147483648
      %v837 = vxor.u32 %v651, 2147483648
      %v838 = vxor.u32 %v656, 2147483648
      %v839 = vxor.u32 %v659, 2147483648
      %v840 = vxor.u32 %v664, 2147483648
      %v841 = vxor.u32 %v667, 2147483648
      %v842 = vxor.u32 %v672, 2147483648
      %v843 = vxor.u32 %v675, 2147483648
      %v844 = vxor.u32 %v680, 2147483648
      %v845 = vxor.u32 %v683, 2147483648
      %v846 = vxor.u32 %v688, 2147483648
      %v847 = vxor.u32 %v691, 2147483648
      %v848 = vxor.u32 %v696, 2147483648
      %v849 = vxor.u32 %v699, 2147483648
      %v850 = vxor.u32 %v704, 2147483648
      %v851 = vxor.u32 %v707, 2147483648
      %v852 = vxor.u32 %v712, 2147483648
      %v853 = vxor.u32 %v715, 2147483648
      %v854 = vxor.u32 %v720, 2147483648
      %v855 = vxor.u32 %v723, 2147483648
      %v856 = vxor.u32 %v728, 2147483648
      %v857 = vxor.u32 %v731, 2147483648
      %v858 = vxor.u32 %v736, 2147483648
      %v859 = vxor.u32 %v739, 2147483648
      %v860 = vxor.u32 %v744, 2147483648
      %v861 = vxor.u32 %v747, 2147483648
      %v862 = vxor.u32 %v752, 2147483648
      %v863 = vxor.u32 %v755, 2147483648
      %v864 = vxor.u32 %v760, 2147483648
      %v865 = vxor.u32 %v763, 2147483648
      %v866 = vxor.u32 %v768, 2147483648
      %v867 = vxor.u32 %v771, 2147483648
      %v868 = vxor.u32 %v776, 2147483648
      %v869 = vxor.u32 %v779, 2147483648
      %v870 = vxor.u32 %v784, 2147483648
      %v871 = vxor.u32 %v787, 2147483648
      %v872 = vxor.u32 %v792, 2147483648
      %v873 = vxor.u32 %v795, 2147483648
      %v874 = vxor.u32 %v800, 2147483648
      %v875 = vxor.u32 %v803, 2147483648
      %v876 = vxor.u32 %v808, 2147483648
      %v877 = vxor.u32 %v811, 2147483648
      %v878 = vmul.f32 %v814, 1.442695
      %v879 = vpow.pop %v878
      %v880 = vmul.f32 %v815, 1.442695
      %v881 = vpow.pop %v880
      %v882 = vmul.f32 %v816, 1.442695
      %v883 = vpow.pop %v882
      %v884 = vmul.f32 %v817, 1.442695
      %v885 = vpow.pop %v884
      %v886 = vmul.f32 %v818, 1.442695
      %v887 = vpow.pop %v886
      %v888 = vmul.f32 %v819, 1.442695
      %v889 = vpow.pop %v888
      %v890 = vmul.f32 %v820, 1.442695
      %v891 = vpow.pop %v890
      %v892 = vmul.f32 %v821, 1.442695
      %v893 = vpow.pop %v892
      %v894 = vmul.f32 %v822, 1.442695
      %v895 = vpow.pop %v894
      %v896 = vmul.f32 %v823, 1.442695
      %v897 = vpow.pop %v896
      %v898 = vmul.f32 %v824, 1.442695
      %v899 = vpow.pop %v898
      %v900 = vmul.f32 %v825, 1.442695
      %v901 = vpow.pop %v900
      %v902 = vmul.f32 %v826, 1.442695
      %v903 = vpow.pop %v902
      %v904 = vmul.f32 %v827, 1.442695
      %v905 = vpow.pop %v904
      %v906 = vmul.f32 %v828, 1.442695
      %v907 = vpow.pop %v906
      %v908 = vmul.f32 %v829, 1.442695
      %v909 = vpow.pop %v908
      %v910 = vmul.f32 %v830, 1.442695
      %v911 = vpow.pop %v910
      %v912 = vmul.f32 %v831, 1.442695
      %v913 = vpow.pop %v912
      %v914 = vmul.f32 %v832, 1.442695
      %v915 = vpow.pop %v914
      %v916 = vmul.f32 %v833, 1.442695
      %v917 = vpow.pop %v916
      %v918 = vmul.f32 %v834, 1.442695
      %v919 = vpow.pop %v918
      %v920 = vmul.f32 %v835, 1.442695
      %v921 = vpow.pop %v920
      %v922 = vmul.f32 %v836, 1.442695
      %v923 = vpow.pop %v922
      %v924 = vmul.f32 %v837, 1.442695
      %v925 = vpow.pop %v924
      %v926 = vmul.f32 %v838, 1.442695
      %v927 = vpow.pop %v926
      %v928 = vmul.f32 %v839, 1.442695
      %v929 = vpow.pop %v928
      %v930 = vmul.f32 %v840, 1.442695
      %v931 = vpow.pop %v930
      %v932 = vmul.f32 %v841, 1.442695
      %v933 = vpow.pop %v932
      %v934 = vmul.f32 %v842, 1.442695
      %v935 = vpow.pop %v934
      %v936 = vmul.f32 %v843, 1.442695
      %v937 = vpow.pop %v936
      %v938 = vmul.f32 %v844, 1.442695
      %v939 = vpow.pop %v938
      %v940 = vmul.f32 %v845, 1.442695
      %v941 = vpow.pop %v940
      %v942 = vmul.f32 %v846, 1.442695
      %v943 = vpow.pop %v942
      %v944 = vmul.f32 %v847, 1.442695
      %v945 = vpow.pop %v944
      %v946 = vmul.f32 %v848, 1.442695
      %v947 = vpow.pop %v946
      %v948 = vmul.f32 %v849, 1.442695
      %v949 = vpow.pop %v948
      %v950 = vmul.f32 %v850, 1.442695
      %v951 = vpow.pop %v950
      %v952 = vmul.f32 %v851, 1.442695
      %v953 = vpow.pop %v952
      %v954 = vmul.f32 %v852, 1.442695
      %v955 = vpow.pop %v954
      %v956 = vmul.f32 %v853, 1.442695
      %v957 = vpow.pop %v956
      %v958 = vmul.f32 %v854, 1.442695
      %v959 = vpow.pop %v958
      %v960 = vmul.f32 %v855, 1.442695
      %v961 = vpow.pop %v960
      %v962 = vmul.f32 %v856, 1.442695
      %v963 = vpow.pop %v962
      %v964 = vmul.f32 %v857, 1.442695
      %v965 = vpow.pop %v964
      %v966 = vmul.f32 %v858, 1.442695
      %v967 = vpow.pop %v966
      %v968 = vmul.f32 %v859, 1.442695
      %v969 = vpow.pop %v968
      %v970 = vmul.f32 %v860, 1.442695
      %v971 = vpow.pop %v970
      %v972 = vmul.f32 %v861, 1.442695
      %v973 = vpow.pop %v972
      %v974 = vmul.f32 %v862, 1.442695
      %v975 = vpow.pop %v974
      %v976 = vmul.f32 %v863, 1.442695
      %v977 = vpow.pop %v976
      %v978 = vmul.f32 %v864, 1.442695
      %v979 = vpow.pop %v978
      %v980 = vmul.f32 %v865, 1.442695
      %v981 = vpow.pop %v980
      %v982 = vmul.f32 %v866, 1.442695
      %v983 = vpow.pop %v982
      %v984 = vmul.f32 %v867, 1.442695
      %v985 = vpow.pop %v984
      %v986 = vmul.f32 %v868, 1.442695
      %v987 = vpow.pop %v986
      %v988 = vmul.f32 %v869, 1.442695
      %v989 = vpow.pop %v988
      %v990 = vmul.f32 %v870, 1.442695
      %v991 = vpow.pop %v990
      %v992 = vmul.f32 %v871, 1.442695
      %v993 = vpow.pop %v992
      %v994 = vmul.f32 %v872, 1.442695
      %v995 = vpow.pop %v994
      %v996 = vmul.f32 %v873, 1.442695
      %v997 = vpow.pop %v996
      %v998 = vmul.f32 %v874, 1.442695
      %v999 = vpow.pop %v998
      %v1000 = vmul.f32 %v875, 1.442695
      %v1001 = vpow.pop %v1000
      %v1002 = vmul.f32 %v876, 1.442695
      %v1003 = vpow.pop %v1002
      %v1004 = vmul.f32 %v877, 1.442695
      %v1005 = vpow.pop %v1004
      %v1006 = vadd.f32 %v879, 1.0
      %v1007 = vadd.f32 %v881, 1.0
      %v1008 = vadd.f32 %v883, 1.0
      %v1009 = vadd.f32 %v885, 1.0
      %v1010 = vadd.f32 %v887, 1.0
      %v1011 = vadd.f32 %v889, 1.0
      %v1012 = vadd.f32 %v891, 1.0
      %v1013 = vadd.f32 %v893, 1.0
      %v1014 = vadd.f32 %v895, 1.0
      %v1015 = vadd.f32 %v897, 1.0
      %v1016 = vadd.f32 %v899, 1.0
      %v1017 = vadd.f32 %v901, 1.0
      %v1018 = vadd.f32 %v903, 1.0
      %v1019 = vadd.f32 %v905, 1.0
      %v1020 = vadd.f32 %v907, 1.0
      %v1021 = vadd.f32 %v909, 1.0
      %v1022 = vadd.f32 %v911, 1.0
      %v1023 = vadd.f32 %v913, 1.0
      %v1024 = vadd.f32 %v915, 1.0
      %v1025 = vadd.f32 %v917, 1.0
      %v1026 = vadd.f32 %v919, 1.0
      %v1027 = vadd.f32 %v921, 1.0
      %v1028 = vadd.f32 %v923, 1.0
      %v1029 = vadd.f32 %v925, 1.0
      %v1030 = vadd.f32 %v927, 1.0
      %v1031 = vadd.f32 %v929, 1.0
      %v1032 = vadd.f32 %v931, 1.0
      %v1033 = vadd.f32 %v933, 1.0
      %v1034 = vadd.f32 %v935, 1.0
      %v1035 = vadd.f32 %v937, 1.0
      %v1036 = vadd.f32 %v939, 1.0
      %v1037 = vadd.f32 %v941, 1.0
      %v1038 = vadd.f32 %v943, 1.0
      %v1039 = vadd.f32 %v945, 1.0
      %v1040 = vadd.f32 %v947, 1.0
      %v1041 = vadd.f32 %v949, 1.0
      %v1042 = vadd.f32 %v951, 1.0
      %v1043 = vadd.f32 %v953, 1.0
      %v1044 = vadd.f32 %v955, 1.0
      %v1045 = vadd.f32 %v957, 1.0
      %v1046 = vadd.f32 %v959, 1.0
      %v1047 = vadd.f32 %v961, 1.0
      %v1048 = vadd.f32 %v963, 1.0
      %v1049 = vadd.f32 %v965, 1.0
      %v1050 = vadd.f32 %v967, 1.0
      %v1051 = vadd.f32 %v969, 1.0
      %v1052 = vadd.f32 %v971, 1.0
      %v1053 = vadd.f32 %v973, 1.0
      %v1054 = vadd.f32 %v975, 1.0
      %v1055 = vadd.f32 %v977, 1.0
      %v1056 = vadd.f32 %v979, 1.0
      %v1057 = vadd.f32 %v981, 1.0
      %v1058 = vadd.f32 %v983, 1.0
      %v1059 = vadd.f32 %v985, 1.0
      %v1060 = vadd.f32 %v987, 1.0
      %v1061 = vadd.f32 %v989, 1.0
      %v1062 = vadd.f32 %v991, 1.0
      %v1063 = vadd.f32 %v993, 1.0
      %v1064 = vadd.f32 %v995, 1.0
      %v1065 = vadd.f32 %v997, 1.0
      %v1066 = vadd.f32 %v999, 1.0
      %v1067 = vadd.f32 %v1001, 1.0
      %v1068 = vadd.f32 %v1003, 1.0
      %v1069 = vadd.f32 %v1005, 1.0
      %v1070 = vrcp.pop %v1006
      %v1071 = vmul.f32 1.0, %v1070
      %v1072 = vrcp.pop %v1007
      %v1073 = vmul.f32 1.0, %v1072
      %v1074 = vrcp.pop %v1008
      %v1075 = vmul.f32 1.0, %v1074
      %v1076 = vrcp.pop %v1009
      %v1077 = vmul.f32 1.0, %v1076
      %v1078 = vrcp.pop %v1010
      %v1079 = vmul.f32 1.0, %v1078
      %v1080 = vrcp.pop %v1011
      %v1081 = vmul.f32 1.0, %v1080
      %v1082 = vrcp.pop %v1012
      %v1083 = vmul.f32 1.0, %v1082
      %v1084 = vrcp.pop %v1013
      %v1085 = vmul.f32 1.0, %v1084
      %v1086 = vrcp.pop %v1014
      %v1087 = vmul.f32 1.0, %v1086
      %v1088 = vrcp.pop %v1015
      %v1089 = vmul.f32 1.0, %v1088
      %v1090 = vrcp.pop %v1016
      %v1091 = vmul.f32 1.0, %v1090
      %v1092 = vrcp.pop %v1017
      %v1093 = vmul.f32 1.0, %v1092
      %v1094 = vrcp.pop %v1018
      %v1095 = vmul.f32 1.0, %v1094
      %v1096 = vrcp.pop %v1019
      %v1097 = vmul.f32 1.0, %v1096
      %v1098 = vrcp.pop %v1020
      %v1099 = vmul.f32 1.0, %v1098
      %v1100 = vrcp.pop %v1021
      %v1101 = vmul.f32 1.0, %v1100
      %v1102 = vrcp.pop %v1022
      %v1103 = vmul.f32 1.0, %v1102
      %v1104 = vrcp.pop %v1023
      %v1105 = vmul.f32 1.0, %v1104
      %v1106 = vrcp.pop %v1024
      %v1107 = vmul.f32 1.0, %v1106
      %v1108 = vrcp.pop %v1025
      %v1109 = vmul.f32 1.0, %v1108
      %v1110 = vrcp.pop %v1026
      %v1111 = vmul.f32 1.0, %v1110
      %v1112 = vrcp.pop %v1027
      %v1113 = vmul.f32 1.0, %v1112
      %v1114 = vrcp.pop %v1028
      %v1115 = vmul.f32 1.0, %v1114
      %v1116 = vrcp.pop %v1029
      %v1117 = vmul.f32 1.0, %v1116
      %v1118 = vrcp.pop %v1030
      %v1119 = vmul.f32 1.0, %v1118
      %v1120 = vrcp.pop %v1031
      %v1121 = vmul.f32 1.0, %v1120
      %v1122 = vrcp.pop %v1032
      %v1123 = vmul.f32 1.0, %v1122
      %v1124 = vrcp.pop %v1033
      %v1125 = vmul.f32 1.0, %v1124
      %v1126 = vrcp.pop %v1034
      %v1127 = vmul.f32 1.0, %v1126
      %v1128 = vrcp.pop %v1035
      %v1129 = vmul.f32 1.0, %v1128
      %v1130 = vrcp.pop %v1036
      %v1131 = vmul.f32 1.0, %v1130
      %v1132 = vrcp.pop %v1037
      %v1133 = vmul.f32 1.0, %v1132
      %v1134 = vrcp.pop %v1038
      %v1135 = vmul.f32 1.0, %v1134
      %v1136 = vrcp.pop %v1039
      %v1137 = vmul.f32 1.0, %v1136
      %v1138 = vrcp.pop %v1040
      %v1139 = vmul.f32 1.0, %v1138
      %v1140 = vrcp.pop %v1041
      %v1141 = vmul.f32 1.0, %v1140
      %v1142 = vrcp.pop %v1042
      %v1143 = vmul.f32 1.0, %v1142
      %v1144 = vrcp.pop %v1043
      %v1145 = vmul.f32 1.0, %v1144
      %v1146 = vrcp.pop %v1044
      %v1147 = vmul.f32 1.0, %v1146
      %v1148 = vrcp.pop %v1045
      %v1149 = vmul.f32 1.0, %v1148
      %v1150 = vrcp.pop %v1046
      %v1151 = vmul.f32 1.0, %v1150
      %v1152 = vrcp.pop %v1047
      %v1153 = vmul.f32 1.0, %v1152
      %v1154 = vrcp.pop %v1048
      %v1155 = vmul.f32 1.0, %v1154
      %v1156 = vrcp.pop %v1049
      %v1157 = vmul.f32 1.0, %v1156
      %v1158 = vrcp.pop %v1050
      %v1159 = vmul.f32 1.0, %v1158
      %v1160 = vrcp.pop %v1051
      %v1161 = vmul.f32 1.0, %v1160
      %v1162 = vrcp.pop %v1052
      %v1163 = vmul.f32 1.0, %v1162
      %v1164 = vrcp.pop %v1053
      %v1165 = vmul.f32 1.0, %v1164
      %v1166 = vrcp.pop %v1054
      %v1167 = vmul.f32 1.0, %v1166
      %v1168 = vrcp.pop %v1055
      %v1169 = vmul.f32 1.0, %v1168
      %v1170 = vrcp.pop %v1056
      %v1171 = vmul.f32 1.0, %v1170
      %v1172 = vrcp.pop %v1057
      %v1173 = vmul.f32 1.0, %v1172
      %v1174 = vrcp.pop %v1058
      %v1175 = vmul.f32 1.0, %v1174
      %v1176 = vrcp.pop %v1059
      %v1177 = vmul.f32 1.0, %v1176
      %v1178 = vrcp.pop %v1060
      %v1179 = vmul.f32 1.0, %v1178
      %v1180 = vrcp.pop %v1061
      %v1181 = vmul.f32 1.0, %v1180
      %v1182 = vrcp.pop %v1062
      %v1183 = vmul.f32 1.0, %v1182
      %v1184 = vrcp.pop %v1063
      %v1185 = vmul.f32 1.0, %v1184
      %v1186 = vrcp.pop %v1064
      %v1187 = vmul.f32 1.0, %v1186
      %v1188 = vrcp.pop %v1065
      %v1189 = vmul.f32 1.0, %v1188
      %v1190 = vrcp.pop %v1066
      %v1191 = vmul.f32 1.0, %v1190
      %v1192 = vrcp.pop %v1067
      %v1193 = vmul.f32 1.0, %v1192
      %v1194 = vrcp.pop %v1068
      %v1195 = vmul.f32 1.0, %v1194
      %v1196 = vrcp.pop %v1069
      %v1197 = vmul.f32 1.0, %v1196
      %v1198 = vmul.f32 %v560, %v1071
      %v1199 = vmul.f32 %v563, %v1073
      %v1200 = vmul.f32 %v568, %v1075
      %v1201 = vmul.f32 %v571, %v1077
      %v1202 = vmul.f32 %v576, %v1079
      %v1203 = vmul.f32 %v579, %v1081
      %v1204 = vmul.f32 %v584, %v1083
      %v1205 = vmul.f32 %v587, %v1085
      %v1206 = vmul.f32 %v592, %v1087
      %v1207 = vmul.f32 %v595, %v1089
      %v1208 = vmul.f32 %v600, %v1091
      %v1209 = vmul.f32 %v603, %v1093
      %v1210 = vmul.f32 %v608, %v1095
      %v1211 = vmul.f32 %v611, %v1097
      %v1212 = vmul.f32 %v616, %v1099
      %v1213 = vmul.f32 %v619, %v1101
      %v1214 = vmul.f32 %v624, %v1103
      %v1215 = vmul.f32 %v627, %v1105
      %v1216 = vmul.f32 %v632, %v1107
      %v1217 = vmul.f32 %v635, %v1109
      %v1218 = vmul.f32 %v640, %v1111
      %v1219 = vmul.f32 %v643, %v1113
      %v1220 = vmul.f32 %v648, %v1115
      %v1221 = vmul.f32 %v651, %v1117
      %v1222 = vmul.f32 %v656, %v1119
      %v1223 = vmul.f32 %v659, %v1121
      %v1224 = vmul.f32 %v664, %v1123
      %v1225 = vmul.f32 %v667, %v1125
      %v1226 = vmul.f32 %v672, %v1127
      %v1227 = vmul.f32 %v675, %v1129
      %v1228 = vmul.f32 %v680, %v1131
      %v1229 = vmul.f32 %v683, %v1133
      %v1230 = vmul.f32 %v688, %v1135
      %v1231 = vmul.f32 %v691, %v1137
      %v1232 = vmul.f32 %v696, %v1139
      %v1233 = vmul.f32 %v699, %v1141
      %v1234 = vmul.f32 %v704, %v1143
      %v1235 = vmul.f32 %v707, %v1145
      %v1236 = vmul.f32 %v712, %v1147
      %v1237 = vmul.f32 %v715, %v1149
      %v1238 = vmul.f32 %v720, %v1151
      %v1239 = vmul.f32 %v723, %v1153
      %v1240 = vmul.f32 %v728, %v1155
      %v1241 = vmul.f32 %v731, %v1157
      %v1242 = vmul.f32 %v736, %v1159
      %v1243 = vmul.f32 %v739, %v1161
      %v1244 = vmul.f32 %v744, %v1163
      %v1245 = vmul.f32 %v747, %v1165
      %v1246 = vmul.f32 %v752, %v1167
      %v1247 = vmul.f32 %v755, %v1169
      %v1248 = vmul.f32 %v760, %v1171
      %v1249 = vmul.f32 %v763, %v1173
      %v1250 = vmul.f32 %v768, %v1175
      %v1251 = vmul.f32 %v771, %v1177
      %v1252 = vmul.f32 %v776, %v1179
      %v1253 = vmul.f32 %v779, %v1181
      %v1254 = vmul.f32 %v784, %v1183
      %v1255 = vmul.f32 %v787, %v1185
      %v1256 = vmul.f32 %v792, %v1187
      %v1257 = vmul.f32 %v795, %v1189
      %v1258 = vmul.f32 %v800, %v1191
      %v1259 = vmul.f32 %v803, %v1193
      %v1260 = vmul.f32 %v808, %v1195
      %v1261 = vmul.f32 %v811, %v1197
      %v1262 = vpack.c.bf16 %v1199, %v1198
      %v1263 = vpack.c.bf16 %v1201, %v1200
      %v1264 = vpack.c.bf16 %v1203, %v1202
      %v1265 = vpack.c.bf16 %v1205, %v1204
      %v1266 = vpack.c.bf16 %v1207, %v1206
      %v1267 = vpack.c.bf16 %v1209, %v1208
      %v1268 = vpack.c.bf16 %v1211, %v1210
      %v1269 = vpack.c.bf16 %v1213, %v1212
      %v1270 = vpack.c.bf16 %v1215, %v1214
      %v1271 = vpack.c.bf16 %v1217, %v1216
      %v1272 = vpack.c.bf16 %v1219, %v1218
      %v1273 = vpack.c.bf16 %v1221, %v1220
      %v1274 = vpack.c.bf16 %v1223, %v1222
      %v1275 = vpack.c.bf16 %v1225, %v1224
      %v1276 = vpack.c.bf16 %v1227, %v1226
      %v1277 = vpack.c.bf16 %v1229, %v1228
      %v1278 = vpack.c.bf16 %v1231, %v1230
      %v1279 = vpack.c.bf16 %v1233, %v1232
      %v1280 = vpack.c.bf16 %v1235, %v1234
      %v1281 = vpack.c.bf16 %v1237, %v1236
      %v1282 = vpack.c.bf16 %v1239, %v1238
      %v1283 = vpack.c.bf16 %v1241, %v1240
      %v1284 = vpack.c.bf16 %v1243, %v1242
      %v1285 = vpack.c.bf16 %v1245, %v1244
      %v1286 = vpack.c.bf16 %v1247, %v1246
      %v1287 = vpack.c.bf16 %v1249, %v1248
      %v1288 = vpack.c.bf16 %v1251, %v1250
      %v1289 = vpack.c.bf16 %v1253, %v1252
      %v1290 = vpack.c.bf16 %v1255, %v1254
      %v1291 = vpack.c.bf16 %v1257, %v1256
      %v1292 = vpack.c.bf16 %v1259, %v1258
      %v1293 = vpack.c.bf16 %v1261, %v1260
      %v1326 = vunpack.c.l.b16 %v1262
      %v1327 = vunpack.c.h.b16 %v1262
      %v1328 = vunpack.c.l.b16 %v1263
      %v1329 = vunpack.c.h.b16 %v1263
      %v1330 = vunpack.c.l.b16 %v1264
      %v1331 = vunpack.c.h.b16 %v1264
      %v1332 = vunpack.c.l.b16 %v1265
      %v1333 = vunpack.c.h.b16 %v1265
      %v1334 = vunpack.c.l.b16 %v1266
      %v1335 = vunpack.c.h.b16 %v1266
      %v1336 = vunpack.c.l.b16 %v1267
      %v1337 = vunpack.c.h.b16 %v1267
      %v1338 = vunpack.c.l.b16 %v1268
      %v1339 = vunpack.c.h.b16 %v1268
      %v1340 = vunpack.c.l.b16 %v1269
      %v1341 = vunpack.c.h.b16 %v1269
      %v1342 = vunpack.c.l.b16 %v1270
      %v1343 = vunpack.c.h.b16 %v1270
      %v1344 = vunpack.c.l.b16 %v1271
      %v1345 = vunpack.c.h.b16 %v1271
      %v1346 = vunpack.c.l.b16 %v1272
      %v1347 = vunpack.c.h.b16 %v1272
      %v1348 = vunpack.c.l.b16 %v1273
      %v1349 = vunpack.c.h.b16 %v1273
      %v1350 = vunpack.c.l.b16 %v1274
      %v1351 = vunpack.c.h.b16 %v1274
      %v1352 = vunpack.c.l.b16 %v1275
      %v1353 = vunpack.c.h.b16 %v1275
      %v1354 = vunpack.c.l.b16 %v1276
      %v1355 = vunpack.c.h.b16 %v1276
      %v1356 = vunpack.c.l.b16 %v1277
      %v1357 = vunpack.c.h.b16 %v1277
      %v1358 = vunpack.c.l.b16 %v1278
      %v1359 = vunpack.c.h.b16 %v1278
      %v1360 = vunpack.c.l.b16 %v1279
      %v1361 = vunpack.c.h.b16 %v1279
      %v1362 = vunpack.c.l.b16 %v1280
      %v1363 = vunpack.c.h.b16 %v1280
      %v1364 = vunpack.c.l.b16 %v1281
      %v1365 = vunpack.c.h.b16 %v1281
      %v1366 = vunpack.c.l.b16 %v1282
      %v1367 = vunpack.c.h.b16 %v1282
      %v1368 = vunpack.c.l.b16 %v1283
      %v1369 = vunpack.c.h.b16 %v1283
      %v1370 = vunpack.c.l.b16 %v1284
      %v1371 = vunpack.c.h.b16 %v1284
      %v1372 = vunpack.c.l.b16 %v1285
      %v1373 = vunpack.c.h.b16 %v1285
      %v1374 = vunpack.c.l.b16 %v1286
      %v1375 = vunpack.c.h.b16 %v1286
      %v1376 = vunpack.c.l.b16 %v1287
      %v1377 = vunpack.c.h.b16 %v1287
      %v1378 = vunpack.c.l.b16 %v1288
      %v1379 = vunpack.c.h.b16 %v1288
      %v1380 = vunpack.c.l.b16 %v1289
      %v1381 = vunpack.c.h.b16 %v1289
      %v1382 = vunpack.c.l.b16 %v1290
      %v1383 = vunpack.c.h.b16 %v1290
      %v1384 = vunpack.c.l.b16 %v1291
      %v1385 = vunpack.c.h.b16 %v1291
      %v1386 = vunpack.c.l.b16 %v1292
      %v1387 = vunpack.c.h.b16 %v1292
      %v1388 = vunpack.c.l.b16 %v1293
      %v1389 = vunpack.c.h.b16 %v1293
      %v1390 = vpack.c.b16 %v1326, %v1326
      %v1391 = vpack.c.b16 %v1327, %v1327
      %v1392 = vpack.c.b16 %v1328, %v1328
      %v1393 = vpack.c.b16 %v1329, %v1329
      %v1394 = vpack.c.b16 %v1330, %v1330
      %v1395 = vpack.c.b16 %v1331, %v1331
      %v1396 = vpack.c.b16 %v1332, %v1332
      %v1397 = vpack.c.b16 %v1333, %v1333
      %v1398 = vpack.c.b16 %v1334, %v1334
      %v1399 = vpack.c.b16 %v1335, %v1335
      %v1400 = vpack.c.b16 %v1336, %v1336
      %v1401 = vpack.c.b16 %v1337, %v1337
      %v1402 = vpack.c.b16 %v1338, %v1338
      %v1403 = vpack.c.b16 %v1339, %v1339
      %v1404 = vpack.c.b16 %v1340, %v1340
      %v1405 = vpack.c.b16 %v1341, %v1341
      %v1406 = vpack.c.b16 %v1342, %v1342
      %v1407 = vpack.c.b16 %v1343, %v1343
      %v1408 = vpack.c.b16 %v1344, %v1344
      %v1409 = vpack.c.b16 %v1345, %v1345
      %v1410 = vpack.c.b16 %v1346, %v1346
      %v1411 = vpack.c.b16 %v1347, %v1347
      %v1412 = vpack.c.b16 %v1348, %v1348
      %v1413 = vpack.c.b16 %v1349, %v1349
      %v1414 = vpack.c.b16 %v1350, %v1350
      %v1415 = vpack.c.b16 %v1351, %v1351
      %v1416 = vpack.c.b16 %v1352, %v1352
      %v1417 = vpack.c.b16 %v1353, %v1353
      %v1418 = vpack.c.b16 %v1354, %v1354
      %v1419 = vpack.c.b16 %v1355, %v1355
      %v1420 = vpack.c.b16 %v1356, %v1356
      %v1421 = vpack.c.b16 %v1357, %v1357
      %v1422 = vpack.c.b16 %v1358, %v1358
      %v1423 = vpack.c.b16 %v1359, %v1359
      %v1424 = vpack.c.b16 %v1360, %v1360
      %v1425 = vpack.c.b16 %v1361, %v1361
      %v1426 = vpack.c.b16 %v1362, %v1362
      %v1427 = vpack.c.b16 %v1363, %v1363
      %v1428 = vpack.c.b16 %v1364, %v1364
      %v1429 = vpack.c.b16 %v1365, %v1365
      %v1430 = vpack.c.b16 %v1366, %v1366
      %v1431 = vpack.c.b16 %v1367, %v1367
      %v1432 = vpack.c.b16 %v1368, %v1368
      %v1433 = vpack.c.b16 %v1369, %v1369
      %v1434 = vpack.c.b16 %v1370, %v1370
      %v1435 = vpack.c.b16 %v1371, %v1371
      %v1436 = vpack.c.b16 %v1372, %v1372
      %v1437 = vpack.c.b16 %v1373, %v1373
      %v1438 = vpack.c.b16 %v1374, %v1374
      %v1439 = vpack.c.b16 %v1375, %v1375
      %v1440 = vpack.c.b16 %v1376, %v1376
      %v1441 = vpack.c.b16 %v1377, %v1377
      %v1442 = vpack.c.b16 %v1378, %v1378
      %v1443 = vpack.c.b16 %v1379, %v1379
      %v1444 = vpack.c.b16 %v1380, %v1380
      %v1445 = vpack.c.b16 %v1381, %v1381
      %v1446 = vpack.c.b16 %v1382, %v1382
      %v1447 = vpack.c.b16 %v1383, %v1383
      %v1448 = vpack.c.b16 %v1384, %v1384
      %v1449 = vpack.c.b16 %v1385, %v1385
      %v1450 = vpack.c.b16 %v1386, %v1386
      %v1451 = vpack.c.b16 %v1387, %v1387
      %v1452 = vpack.c.b16 %v1388, %v1388
      %v1453 = vpack.c.b16 %v1389, %v1389
      %1518 = vst [vmem:[%s172] sm:$0xf] %v1390
      %1519 = vst [vmem:[%s172 + $0x4] sm:$0xf] %v1391
      %1520 = vst [vmem:[%s172 + $0x8] sm:$0xf] %v1392
      %1521 = vst [vmem:[%s172 + $0xc] sm:$0xf] %v1393
      %1522 = vst [vmem:[%s172 + $0x10] sm:$0xf] %v1394
      %1523 = vst [vmem:[%s172 + $0x14] sm:$0xf] %v1395
      %1524 = vst [vmem:[%s172 + $0x18] sm:$0xf] %v1396
      %1525 = vst [vmem:[%s172 + $0x1c] sm:$0xf] %v1397
      %1526 = vst [vmem:[%s172 + $0x20] sm:$0xf] %v1398
      %1527 = vst [vmem:[%s172 + $0x24] sm:$0xf] %v1399
      %1528 = vst [vmem:[%s172 + $0x28] sm:$0xf] %v1400
      %1529 = vst [vmem:[%s172 + $0x2c] sm:$0xf] %v1401
      %1530 = vst [vmem:[%s172 + $0x30] sm:$0xf] %v1402
      %1531 = vst [vmem:[%s172 + $0x34] sm:$0xf] %v1403
      %1532 = vst [vmem:[%s172 + $0x38] sm:$0xf] %v1404
      %1533 = vst [vmem:[%s172 + $0x3c] sm:$0xf] %v1405
      %1534 = vst [vmem:[%s172 + $0x40] sm:$0xf] %v1406
      %1535 = vst [vmem:[%s172 + $0x44] sm:$0xf] %v1407
      %1536 = vst [vmem:[%s172 + $0x48] sm:$0xf] %v1408
      %1537 = vst [vmem:[%s172 + $0x4c] sm:$0xf] %v1409
      %1538 = vst [vmem:[%s172 + $0x50] sm:$0xf] %v1410
      %1539 = vst [vmem:[%s172 + $0x54] sm:$0xf] %v1411
      %1540 = vst [vmem:[%s172 + $0x58] sm:$0xf] %v1412
      %1541 = vst [vmem:[%s172 + $0x5c] sm:$0xf] %v1413
      %1542 = vst [vmem:[%s172 + $0x60] sm:$0xf] %v1414
      %1543 = vst [vmem:[%s172 + $0x64] sm:$0xf] %v1415
      %1544 = vst [vmem:[%s172 + $0x68] sm:$0xf] %v1416
      %1545 = vst [vmem:[%s172 + $0x6c] sm:$0xf] %v1417
      %1546 = vst [vmem:[%s172 + $0x70] sm:$0xf] %v1418
      %1547 = vst [vmem:[%s172 + $0x74] sm:$0xf] %v1419
      %1548 = vst [vmem:[%s172 + $0x78] sm:$0xf] %v1420
      %1549 = vst [vmem:[%s172 + $0x7c] sm:$0xf] %v1421
      %1550 = vst [vmem:[%s172 + $0x80] sm:$0xf] %v1422
      %1551 = vst [vmem:[%s172 + $0x84] sm:$0xf] %v1423
      %1552 = vst [vmem:[%s172 + $0x88] sm:$0xf] %v1424
      %1553 = vst [vmem:[%s172 + $0x8c] sm:$0xf] %v1425
      %1554 = vst [vmem:[%s172 + $0x90] sm:$0xf] %v1426
      %1555 = vst [vmem:[%s172 + $0x94] sm:$0xf] %v1427
      %1556 = vst [vmem:[%s172 + $0x98] sm:$0xf] %v1428
      %1557 = vst [vmem:[%s172 + $0x9c] sm:$0xf] %v1429
      %1558 = vst [vmem:[%s172 + $0xa0] sm:$0xf] %v1430
      %1559 = vst [vmem:[%s172 + $0xa4] sm:$0xf] %v1431
      %1560 = vst [vmem:[%s172 + $0xa8] sm:$0xf] %v1432
      %1561 = vst [vmem:[%s172 + $0xac] sm:$0xf] %v1433
      %1562 = vst [vmem:[%s172 + $0xb0] sm:$0xf] %v1434
      %1563 = vst [vmem:[%s172 + $0xb4] sm:$0xf] %v1435
      %1564 = vst [vmem:[%s172 + $0xb8] sm:$0xf] %v1436
      %1565 = vst [vmem:[%s172 + $0xbc] sm:$0xf] %v1437
      %1566 = vst [vmem:[%s172 + $0xc0] sm:$0xf] %v1438
      %1567 = vst [vmem:[%s172 + $0xc4] sm:$0xf] %v1439
      %1568 = vst [vmem:[%s172 + $0xc8] sm:$0xf] %v1440
      %1569 = vst [vmem:[%s172 + $0xcc] sm:$0xf] %v1441
      %1570 = vst [vmem:[%s172 + $0xd0] sm:$0xf] %v1442
      %1571 = vst [vmem:[%s172 + $0xd4] sm:$0xf] %v1443
      %1572 = vst [vmem:[%s172 + $0xd8] sm:$0xf] %v1444
      %1573 = vst [vmem:[%s172 + $0xdc] sm:$0xf] %v1445
      %1574 = vst [vmem:[%s172 + $0xe0] sm:$0xf] %v1446
      %1575 = vst [vmem:[%s172 + $0xe4] sm:$0xf] %v1447
      %1576 = vst [vmem:[%s172 + $0xe8] sm:$0xf] %v1448
      %1577 = vst [vmem:[%s172 + $0xec] sm:$0xf] %v1449
      %1578 = vst [vmem:[%s172 + $0xf0] sm:$0xf] %v1450
      %1579 = vst [vmem:[%s172 + $0xf4] sm:$0xf] %v1451
      %1580 = vst [vmem:[%s172 + $0xf8] sm:$0xf] %v1452
      %1581 = vst [vmem:[%s172 + $0xfc] sm:$0xf] %v1453
      %s1582 = smul.u32 64, %s14
      %p1583 = scmp.lt.s32.totalorder %s1582, 255
      %s1584 = scalar_select %p1583, %s1582, 255
      %s1585 = smul.addr %s1584, 4
      %s1586 = scalar_lea.vmem %s3, %s1585
      // Predicated region
      $region33: #{model_forward.8} parent=31 // pred_check
        %p1587 = pneg %p100
      $region34: #{model_forward.8} parent=31 // pred_check_branch
        %1589 = sbr.rel (%p1587) target = $region36
      $region35: #{model_forward.8} parent=31 // pred_region
        %s1590 = smul.u32 64, %s14
      $region36: #{model_forward.8} parent=31 // pred_fallthru
        _
    $region32: #{model_forward.8} parent=5 // pred_fallthru
      _
    %p1591 = scmp.le.s32.totalorder 2, %s9
    // Predicated region
    $region37: #{model_forward.8} parent=5 // pred_check
      %p1592 = pneg %p1591
    $region38: #{model_forward.8} parent=5 // pred_check_branch
      %1594 = sbr.rel (%p1592) target = $region40
    $region39: #{model_forward.8} parent=5 // pred_region
      %s1595 = ssub.s32 %s9, 2
      // Predicated region
      $region41: #{model_forward.8} parent=39 // pred_check
        %p1596 = pneg %p106
      $region42: #{model_forward.8} parent=39 // pred_check_branch
        %1598 = sbr.rel (%p1596) target = $region44
      $region43: #{model_forward.8} parent=39 // pred_region
        %s1599 = smul.u32 64, %s15
        %p1600 = scmp.lt.s32.totalorder %s1599, 255
        %s1601 = scalar_select %p1600, %s1599, 255
        %s1602 = smul.addr %s1601, 4
        %s1603 = scalar_lea.vmem %s3, %s1602
      $region44: #{model_forward.8} parent=39 // pred_fallthru
        _
    $region40: #{model_forward.8} parent=5 // pred_fallthru
      _
  $region6: #{model_forward.8} parent=0 // loop_footer
    %s13 = sadd.s32 1, %s9
  $region7: #{model_forward.8} parent=0 // loop_footer_branch
    %8 = sbr.rel target = $region3
  $region8: #{model_forward.8} parent=0 // loop_exit
    _

// kernel: model_forward.9
$region0: #{model_forward.9}
  #allocation0 [shape = 'u32[]', space=smem, size = 0x4, offset = 0x4, fixed_abs, tag = 'smem constant byte address 0x4 - core index']
  #allocation1 [shape = 'u32[144,128]{1,0:T(1,128)}', space=vmem, size = 0x12000, scoped, tag = 'internal scratch']
  %s0 = inlined_call_operand.vmem [shape: bf16[512,144], index: 0, kind: input, shape index: {}]
  %s1 = inlined_call_operand.vmem [shape: bf16[144,128], index: 1, kind: input, shape index: {}]
  %s2 = inlined_call_operand.vmem [shape: f32[1,128], index: 2, kind: input, shape index: {}]
  %s3 = inlined_call_operand.vmem [shape: bf16[512,128], index: 3, kind: output, shape index: {}]
  %s4 = sld [smem:[#allocation0]]
  $region22: #{model_forward.9} parent=0
    _
  %s6 = ssub.s32 1, %s4
  %s7 = scalar_select 0, %s6, %s4
  // Predicated region
  $region2: #{model_forward.9} parent=0 // pred_check
    _
  $region3: #{model_forward.9} parent=0 // pred_check_branch
    %9 = sbr.rel (0) target = $region5
  $region4: #{model_forward.9} parent=0 // pred_region
    _
  $region5: #{model_forward.9} parent=0 // pred_fallthru
    _
  // Predicated region
  $region6: #{model_forward.9} parent=0 // pred_check
    _
  $region7: #{model_forward.9} parent=0 // pred_check_branch
    %11 = sbr.rel (0) target = $region9
  $region8: #{model_forward.9} parent=0 // pred_region
    _
  $region9: #{model_forward.9} parent=0 // pred_fallthru
    _
  // Predicated region
  $region10: #{model_forward.9} parent=0 // pred_check
    _
  $region11: #{model_forward.9} parent=0 // pred_check_branch
    %13 = sbr.rel (0) target = $region13
  $region12: #{model_forward.9} parent=0 // pred_region
    _
  $region13: #{model_forward.9} parent=0 // pred_fallthru
    _
  %v15 = vld [vmem:[%s0] sm:$0xff]
  %v16 = vld [vmem:[%s0 + $0x8] sm:$0xff]
  %v17 = vld [vmem:[%s0 + $0x10] sm:$0xff]
  %v18 = vld [vmem:[%s0 + $0x18] sm:$0xff]
  %v19 = vld [vmem:[%s0 + $0x20] sm:$0xff]
  %v20 = vld [vmem:[%s0 + $0x28] sm:$0xff]
  %v21 = vld [vmem:[%s0 + $0x30] sm:$0xff]
  %v22 = vld [vmem:[%s0 + $0x38] sm:$0xff]
  %v23 = vld [vmem:[%s0 + $0x40] sm:$0xff]
  %v24 = vld [vmem:[%s0 + $0x48] sm:$0xff]
  %v25 = vld [vmem:[%s0 + $0x50] sm:$0xff]
  %v26 = vld [vmem:[%s0 + $0x58] sm:$0xff]
  %v27 = vld [vmem:[%s0 + $0x60] sm:$0xff]
  %v28 = vld [vmem:[%s0 + $0x68] sm:$0xff]
  %v29 = vld [vmem:[%s0 + $0x70] sm:$0xff]
  %v30 = vld [vmem:[%s0 + $0x78] sm:$0xff]
  %v31 = vld [vmem:[%s0 + $0x80] sm:$0xff]
  %v32 = vld [vmem:[%s0 + $0x88] sm:$0xff]
  %v33 = vld [vmem:[%s0 + $0x90] sm:$0xff]
  %v34 = vld [vmem:[%s0 + $0x98] sm:$0xff]
  %v35 = vld [vmem:[%s0 + $0xa0] sm:$0xff]
  %v36 = vld [vmem:[%s0 + $0xa8] sm:$0xff]
  %v37 = vld [vmem:[%s0 + $0xb0] sm:$0xff]
  %v38 = vld [vmem:[%s0 + $0xb8] sm:$0xff]
  %v39 = vld [vmem:[%s0 + $0xc0] sm:$0xff]
  %v40 = vld [vmem:[%s0 + $0xc8] sm:$0xff]
  %v41 = vld [vmem:[%s0 + $0xd0] sm:$0xff]
  %v42 = vld [vmem:[%s0 + $0xd8] sm:$0xff]
  %v43 = vld [vmem:[%s0 + $0xe0] sm:$0xff]
  %v44 = vld [vmem:[%s0 + $0xe8] sm:$0xff]
  %v45 = vld [vmem:[%s0 + $0xf0] sm:$0xff]
  %v46 = vld [vmem:[%s0 + $0xf8] sm:$0xff]
  %v47 = vld [vmem:[%s0 + $0x100] sm:$0xff]
  %v48 = vld [vmem:[%s0 + $0x108] sm:$0xff]
  %v49 = vld [vmem:[%s0 + $0x110] sm:$0xff]
  %v50 = vld [vmem:[%s0 + $0x118] sm:$0xff]
  %v51 = vld [vmem:[%s0 + $0x120] sm:$0xff]
  %v52 = vld [vmem:[%s0 + $0x128] sm:$0xff]
  %v53 = vld [vmem:[%s0 + $0x130] sm:$0xff]
  %v54 = vld [vmem:[%s0 + $0x138] sm:$0xff]
  %v55 = vld [vmem:[%s0 + $0x140] sm:$0xff]
  %v56 = vld [vmem:[%s0 + $0x148] sm:$0xff]
  %v57 = vld [vmem:[%s0 + $0x150] sm:$0xff]
  %v58 = vld [vmem:[%s0 + $0x158] sm:$0xff]
  %v59 = vld [vmem:[%s0 + $0x160] sm:$0xff]
  %v60 = vld [vmem:[%s0 + $0x168] sm:$0xff]
  %v61 = vld [vmem:[%s0 + $0x170] sm:$0xff]
  %v62 = vld [vmem:[%s0 + $0x178] sm:$0xff]
  %v63 = vld [vmem:[%s0 + $0x180] sm:$0xff]
  %v64 = vld [vmem:[%s0 + $0x188] sm:$0xff]
  %v65 = vld [vmem:[%s0 + $0x190] sm:$0xff]
  %v66 = vld [vmem:[%s0 + $0x198] sm:$0xff]
  %v67 = vld [vmem:[%s0 + $0x1a0] sm:$0xff]
  %v68 = vld [vmem:[%s0 + $0x1a8] sm:$0xff]
  %v69 = vld [vmem:[%s0 + $0x1b0] sm:$0xff]
  %v70 = vld [vmem:[%s0 + $0x1b8] sm:$0xff]
  %v71 = vld [vmem:[%s0 + $0x1c0] sm:$0xff]
  %v72 = vld [vmem:[%s0 + $0x1c8] sm:$0xff]
  %v73 = vld [vmem:[%s0 + $0x1d0] sm:$0xff]
  %v74 = vld [vmem:[%s0 + $0x1d8] sm:$0xff]
  %v75 = vld [vmem:[%s0 + $0x1e0] sm:$0xff]
  %v76 = vld [vmem:[%s0 + $0x1e8] sm:$0xff]
  %v77 = vld [vmem:[%s0 + $0x1f0] sm:$0xff]
  %v78 = vld [vmem:[%s0 + $0x1f8] sm:$0xff]
  %v79 = vld [vmem:[%s1] sm:$0xf]
  %v80 = vld [vmem:[%s1 + $0x4] sm:$0xf]
  %v81 = vld [vmem:[%s1 + $0x8] sm:$0xf]
  %v82 = vld [vmem:[%s1 + $0xc] sm:$0xf]
  %v83 = vld [vmem:[%s1 + $0x10] sm:$0xf]
  %v84 = vld [vmem:[%s1 + $0x14] sm:$0xf]
  %v85 = vld [vmem:[%s1 + $0x18] sm:$0xf]
  %v86 = vld [vmem:[%s1 + $0x1c] sm:$0xf]
  %v87 = vld [vmem:[%s1 + $0x20] sm:$0xf]
  %v88 = vld [vmem:[%s1 + $0x24] sm:$0xf]
  %v89 = vld [vmem:[%s1 + $0x28] sm:$0xf]
  %v90 = vld [vmem:[%s1 + $0x2c] sm:$0xf]
  %v91 = vld [vmem:[%s1 + $0x30] sm:$0xf]
  %v92 = vld [vmem:[%s1 + $0x34] sm:$0xf]
  %v93 = vld [vmem:[%s1 + $0x38] sm:$0xf]
  %v94 = vld [vmem:[%s1 + $0x3c] sm:$0xf]
  %v95 = vld [vmem:[%s1 + $0x40] sm:$0xf]
  %v96 = vld [vmem:[%s1 + $0x44] sm:$0xf]
  %v97 = vld [vmem:[%s2] sm:$0x1]
  %v99 = vlaneseq
  %v100 = vshrl.u32 %v99, 7
  %v101 = vsub.s32 0, %v100
  %v102 = vrot.slane %v97, %v101
  %v168 = vunpack.c.l.b16 %v15
  %v169 = vunpack.c.h.b16 %v15
  %v170 = vunpack.c.l.b16 %v16
  %v171 = vunpack.c.h.b16 %v16
  %v172 = vunpack.c.l.b16 %v17
  %v173 = vunpack.c.h.b16 %v17
  %v174 = vunpack.c.l.b16 %v18
  %v175 = vunpack.c.h.b16 %v18
  %v176 = vunpack.c.l.b16 %v19
  %v177 = vunpack.c.h.b16 %v19
  %v178 = vunpack.c.l.b16 %v20
  %v179 = vunpack.c.h.b16 %v20
  %v180 = vunpack.c.l.b16 %v21
  %v181 = vunpack.c.h.b16 %v21
  %v182 = vunpack.c.l.b16 %v22
  %v183 = vunpack.c.h.b16 %v22
  %v184 = vunpack.c.l.b16 %v23
  %v185 = vunpack.c.h.b16 %v23
  %v186 = vunpack.c.l.b16 %v24
  %v187 = vunpack.c.h.b16 %v24
  %v188 = vunpack.c.l.b16 %v25
  %v189 = vunpack.c.h.b16 %v25
  %v190 = vunpack.c.l.b16 %v26
  %v191 = vunpack.c.h.b16 %v26
  %v192 = vunpack.c.l.b16 %v27
  %v193 = vunpack.c.h.b16 %v27
  %v194 = vunpack.c.l.b16 %v28
  %v195 = vunpack.c.h.b16 %v28
  %v196 = vunpack.c.l.b16 %v29
  %v197 = vunpack.c.h.b16 %v29
  %v198 = vunpack.c.l.b16 %v30
  %v199 = vunpack.c.h.b16 %v30
  %v200 = vunpack.c.l.b16 %v31
  %v201 = vunpack.c.h.b16 %v31
  %v202 = vunpack.c.l.b16 %v32
  %v203 = vunpack.c.h.b16 %v32
  %v204 = vunpack.c.l.b16 %v33
  %v205 = vunpack.c.h.b16 %v33
  %v206 = vunpack.c.l.b16 %v34
  %v207 = vunpack.c.h.b16 %v34
  %v208 = vunpack.c.l.b16 %v35
  %v209 = vunpack.c.h.b16 %v35
  %v210 = vunpack.c.l.b16 %v36
  %v211 = vunpack.c.h.b16 %v36
  %v212 = vunpack.c.l.b16 %v37
  %v213 = vunpack.c.h.b16 %v37
  %v214 = vunpack.c.l.b16 %v38
  %v215 = vunpack.c.h.b16 %v38
  %v216 = vunpack.c.l.b16 %v39
  %v217 = vunpack.c.h.b16 %v39
  %v218 = vunpack.c.l.b16 %v40
  %v219 = vunpack.c.h.b16 %v40
  %v220 = vunpack.c.l.b16 %v41
  %v221 = vunpack.c.h.b16 %v41
  %v222 = vunpack.c.l.b16 %v42
  %v223 = vunpack.c.h.b16 %v42
  %v224 = vunpack.c.l.b16 %v43
  %v225 = vunpack.c.h.b16 %v43
  %v226 = vunpack.c.l.b16 %v44
  %v227 = vunpack.c.h.b16 %v44
  %v228 = vunpack.c.l.b16 %v45
  %v229 = vunpack.c.h.b16 %v45
  %v230 = vunpack.c.l.b16 %v46
  %v231 = vunpack.c.h.b16 %v46
  %v232 = vunpack.c.l.b16 %v47
  %v233 = vunpack.c.h.b16 %v47
  %v234 = vunpack.c.l.b16 %v48
  %v235 = vunpack.c.h.b16 %v48
  %v236 = vunpack.c.l.b16 %v49
  %v237 = vunpack.c.h.b16 %v49
  %v238 = vunpack.c.l.b16 %v50
  %v239 = vunpack.c.h.b16 %v50
  %v240 = vunpack.c.l.b16 %v51
  %v241 = vunpack.c.h.b16 %v51
  %v242 = vunpack.c.l.b16 %v52
  %v243 = vunpack.c.h.b16 %v52
  %v244 = vunpack.c.l.b16 %v53
  %v245 = vunpack.c.h.b16 %v53
  %v246 = vunpack.c.l.b16 %v54
  %v247 = vunpack.c.h.b16 %v54
  %v248 = vunpack.c.l.b16 %v55
  %v249 = vunpack.c.h.b16 %v55
  %v250 = vunpack.c.l.b16 %v56
  %v251 = vunpack.c.h.b16 %v56
  %v252 = vunpack.c.l.b16 %v57
  %v253 = vunpack.c.h.b16 %v57
  %v254 = vunpack.c.l.b16 %v58
  %v255 = vunpack.c.h.b16 %v58
  %v256 = vunpack.c.l.b16 %v59
  %v257 = vunpack.c.h.b16 %v59
  %v258 = vunpack.c.l.b16 %v60
  %v259 = vunpack.c.h.b16 %v60
  %v260 = vunpack.c.l.b16 %v61
  %v261 = vunpack.c.h.b16 %v61
  %v262 = vunpack.c.l.b16 %v62
  %v263 = vunpack.c.h.b16 %v62
  %v264 = vunpack.c.l.b16 %v63
  %v265 = vunpack.c.h.b16 %v63
  %v266 = vunpack.c.l.b16 %v64
  %v267 = vunpack.c.h.b16 %v64
  %v268 = vunpack.c.l.b16 %v65
  %v269 = vunpack.c.h.b16 %v65
  %v270 = vunpack.c.l.b16 %v66
  %v271 = vunpack.c.h.b16 %v66
  %v272 = vunpack.c.l.b16 %v67
  %v273 = vunpack.c.h.b16 %v67
  %v274 = vunpack.c.l.b16 %v68
  %v275 = vunpack.c.h.b16 %v68
  %v276 = vunpack.c.l.b16 %v69
  %v277 = vunpack.c.h.b16 %v69
  %v278 = vunpack.c.l.b16 %v70
  %v279 = vunpack.c.h.b16 %v70
  %v280 = vunpack.c.l.b16 %v71
  %v281 = vunpack.c.h.b16 %v71
  %v282 = vunpack.c.l.b16 %v72
  %v283 = vunpack.c.h.b16 %v72
  %v284 = vunpack.c.l.b16 %v73
  %v285 = vunpack.c.h.b16 %v73
  %v286 = vunpack.c.l.b16 %v74
  %v287 = vunpack.c.h.b16 %v74
  %v288 = vunpack.c.l.b16 %v75
  %v289 = vunpack.c.h.b16 %v75
  %v290 = vunpack.c.l.b16 %v76
  %v291 = vunpack.c.h.b16 %v76
  %v292 = vunpack.c.l.b16 %v77
  %v293 = vunpack.c.h.b16 %v77
  %v294 = vunpack.c.l.b16 %v78
  %v295 = vunpack.c.h.b16 %v78
  %v296 = vpack.c.b16 %v170, %v168
  %v297 = vpack.c.b16 %v171, %v169
  %v298 = vpack.c.b16 %v174, %v172
  %v299 = vpack.c.b16 %v175, %v173
  %v300 = vpack.c.b16 %v178, %v176
  %v301 = vpack.c.b16 %v179, %v177
  %v302 = vpack.c.b16 %v182, %v180
  %v303 = vpack.c.b16 %v183, %v181
  %v304 = vpack.c.b16 %v186, %v184
  %v305 = vpack.c.b16 %v187, %v185
  %v306 = vpack.c.b16 %v190, %v188
  %v307 = vpack.c.b16 %v191, %v189
  %v308 = vpack.c.b16 %v194, %v192
  %v309 = vpack.c.b16 %v195, %v193
  %v310 = vpack.c.b16 %v198, %v196
  %v311 = vpack.c.b16 %v199, %v197
  %v312 = vpack.c.b16 %v202, %v200
  %v313 = vpack.c.b16 %v203, %v201
  %v314 = vpack.c.b16 %v206, %v204
  %v315 = vpack.c.b16 %v207, %v205
  %v316 = vpack.c.b16 %v210, %v208
  %v317 = vpack.c.b16 %v211, %v209
  %v318 = vpack.c.b16 %v214, %v212
  %v319 = vpack.c.b16 %v215, %v213
  %v320 = vpack.c.b16 %v218, %v216
  %v321 = vpack.c.b16 %v219, %v217
  %v322 = vpack.c.b16 %v222, %v220
  %v323 = vpack.c.b16 %v223, %v221
  %v324 = vpack.c.b16 %v226, %v224
  %v325 = vpack.c.b16 %v227, %v225
  %v326 = vpack.c.b16 %v230, %v228
  %v327 = vpack.c.b16 %v231, %v229
  %v328 = vpack.c.b16 %v234, %v232
  %v329 = vpack.c.b16 %v235, %v233
  %v330 = vpack.c.b16 %v238, %v236
  %v331 = vpack.c.b16 %v239, %v237
  %v332 = vpack.c.b16 %v242, %v240
  %v333 = vpack.c.b16 %v243, %v241
  %v334 = vpack.c.b16 %v246, %v244
  %v335 = vpack.c.b16 %v247, %v245
  %v336 = vpack.c.b16 %v250, %v248
  %v337 = vpack.c.b16 %v251, %v249
  %v338 = vpack.c.b16 %v254, %v252
  %v339 = vpack.c.b16 %v255, %v253
  %v340 = vpack.c.b16 %v258, %v256
  %v341 = vpack.c.b16 %v259, %v257
  %v342 = vpack.c.b16 %v262, %v260
  %v343 = vpack.c.b16 %v263, %v261
  %v344 = vpack.c.b16 %v266, %v264
  %v345 = vpack.c.b16 %v267, %v265
  %v346 = vpack.c.b16 %v270, %v268
  %v347 = vpack.c.b16 %v271, %v269
  %v348 = vpack.c.b16 %v274, %v272
  %v349 = vpack.c.b16 %v275, %v273
  %v350 = vpack.c.b16 %v278, %v276
  %v351 = vpack.c.b16 %v279, %v277
  %v352 = vpack.c.b16 %v282, %v280
  %v353 = vpack.c.b16 %v283, %v281
  %v354 = vpack.c.b16 %v286, %v284
  %v355 = vpack.c.b16 %v287, %v285
  %v356 = vpack.c.b16 %v290, %v288
  %v357 = vpack.c.b16 %v291, %v289
  %v358 = vpack.c.b16 %v294, %v292
  %v359 = vpack.c.b16 %v295, %v293
  %v410 = vunpack.c.l.b16 %v79
  %v411 = vunpack.c.l.b16 %v80
  %v412 = vunpack.c.l.b16 %v81
  %v413 = vunpack.c.l.b16 %v82
  %v414 = vunpack.c.l.b16 %v83
  %v415 = vunpack.c.l.b16 %v84
  %v416 = vunpack.c.l.b16 %v85
  %v417 = vunpack.c.l.b16 %v86
  %v418 = vunpack.c.l.b16 %v87
  %v419 = vunpack.c.l.b16 %v88
  %v420 = vunpack.c.l.b16 %v89
  %v421 = vunpack.c.l.b16 %v90
  %v422 = vunpack.c.l.b16 %v91
  %v423 = vunpack.c.l.b16 %v92
  %v424 = vunpack.c.l.b16 %v93
  %v425 = vunpack.c.l.b16 %v94
  %v426 = vunpack.c.l.b16 %v95
  %v427 = vunpack.c.l.b16 %v96
  %v428 = vpack.c.b16 %v411, %v410
  %v429 = vpack.c.b16 %v413, %v412
  %v430 = vpack.c.b16 %v415, %v414
  %v431 = vpack.c.b16 %v417, %v416
  %v432 = vpack.c.b16 %v419, %v418
  %v433 = vpack.c.b16 %v421, %v420
  %v434 = vpack.c.b16 %v423, %v422
  %v435 = vpack.c.b16 %v425, %v424
  %v436 = vpack.c.b16 %v427, %v426
  %vm446 = vcmask 130048
  %v448 = vsel %vm446, %v297, 0
  %v451 = vsel %vm446, %v299, 0
  %v454 = vsel %vm446, %v301, 0
  %v457 = vsel %vm446, %v303, 0
  %v460 = vsel %vm446, %v305, 0
  %v463 = vsel %vm446, %v307, 0
  %v466 = vsel %vm446, %v309, 0
  %v469 = vsel %vm446, %v311, 0
  %v472 = vsel %vm446, %v313, 0
  %v475 = vsel %vm446, %v315, 0
  %v478 = vsel %vm446, %v317, 0
  %v481 = vsel %vm446, %v319, 0
  %v484 = vsel %vm446, %v321, 0
  %v487 = vsel %vm446, %v323, 0
  %v490 = vsel %vm446, %v325, 0
  %v493 = vsel %vm446, %v327, 0
  %v496 = vsel %vm446, %v329, 0
  %v499 = vsel %vm446, %v331, 0
  %v502 = vsel %vm446, %v333, 0
  %v505 = vsel %vm446, %v335, 0
  %v508 = vsel %vm446, %v337, 0
  %v511 = vsel %vm446, %v339, 0
  %v514 = vsel %vm446, %v341, 0
  %v517 = vsel %vm446, %v343, 0
  %v520 = vsel %vm446, %v345, 0
  %v523 = vsel %vm446, %v347, 0
  %v526 = vsel %vm446, %v349, 0
  %v529 = vsel %vm446, %v351, 0
  %v532 = vsel %vm446, %v353, 0
  %v535 = vsel %vm446, %v355, 0
  %v538 = vsel %vm446, %v357, 0
  %v541 = vsel %vm446, %v359, 0
  %543 = vmatprep.subr.bf16.mxu0 0
  %544 = vmatpush1.bf16.msra.mxu0 %v428
  %545 = vmatprep.subr.bf16.mxu0 0
  %546 = vmatpush1.bf16.msra.mxu0 %v429
  %547 = vmatprep.subr.bf16.mxu0 0
  %548 = vmatpush1.bf16.msra.mxu0 %v430
  %549 = vmatprep.subr.bf16.mxu0 0
  %550 = vmatpush1.bf16.msra.mxu0 %v431
  %551 = vmatprep.subr.bf16.mxu0 0
  %552 = vmatpush1.bf16.msra.mxu0 %v432
  %553 = vmatprep.subr.bf16.mxu0 0
  %554 = vmatpush1.bf16.msra.mxu0 %v433
  %555 = vmatprep.subr.bf16.mxu0 0
  %556 = vmatpush1.bf16.msra.mxu0 %v434
  %557 = vmatprep.subr.bf16.mxu0 0
  %558 = vmatpush1.bf16.msra.mxu0 %v435
  %559 = vmatprep.subr.bf16.mxu0 0
  %560 = vmatpush1.bf16.msra.mxu0 %v436
  %561 = vmatprep.subr.bf16.mxu0 0
  %562 = vmatpush1.bf16.msra.mxu0 0
  %563 = vmatprep.subr.bf16.mxu0 0
  %564 = vmatpush1.bf16.msra.mxu0 0
  %565 = vmatprep.subr.bf16.mxu0 0
  %566 = vmatpush1.bf16.msra.mxu0 0
  %567 = vmatprep.subr.bf16.mxu0 0
  %568 = vmatpush1.bf16.msra.mxu0 0
  %569 = vmatprep.subr.bf16.mxu0 0
  %570 = vmatpush1.bf16.msra.mxu0 0
  %571 = vmatprep.subr.bf16.mxu0 0
  %572 = vmatpush1.bf16.msra.mxu0 0
  %573 = vmatprep.subr.bf16.mxu0 0
  %574 = vmatpush1.bf16.msra.mxu0 0
  %575 = vmatprep.mubr.bf16.mxu0 %v448
  %576 = vmatmul.mubr.bf16.gmra.mrb[0].mxu0 %v296
  %v577 = vpop.f32.mrb[0].mxu0
  %v578 = vadd.f32 %v102, %v577
  %v579 = vpop.f32.mrb[0].mxu0
  %v580 = vpop.f32.mrb[0].mxu0
  %v581 = vadd.f32 %v102, %v580
  %v582 = vpop.f32.mrb[0].mxu0
  %583 = vmatprep.mubr.bf16.mxu0 %v451
  %584 = vmatmul.mubr.bf16.gmra.mrb[0].mxu0 %v298
  %v585 = vpop.f32.mrb[0].mxu0
  %v586 = vadd.f32 %v102, %v585
  %v587 = vpop.f32.mrb[0].mxu0
  %v588 = vpop.f32.mrb[0].mxu0
  %v589 = vadd.f32 %v102, %v588
  %v590 = vpop.f32.mrb[0].mxu0
  %591 = vmatprep.mubr.bf16.mxu0 %v454
  %592 = vmatmul.mubr.bf16.gmra.mrb[0].mxu0 %v300
  %v593 = vpop.f32.mrb[0].mxu0
  %v594 = vadd.f32 %v102, %v593
  %v595 = vpop.f32.mrb[0].mxu0
  %v596 = vpop.f32.mrb[0].mxu0
  %v597 = vadd.f32 %v102, %v596
  %v598 = vpop.f32.mrb[0].mxu0
  %599 = vmatprep.mubr.bf16.mxu0 %v457
  %600 = vmatmul.mubr.bf16.gmra.mrb[0].mxu0 %v302
  %v601 = vpop.f32.mrb[0].mxu0
  %v602 = vadd.f32 %v102, %v601
  %v603 = vpop.f32.mrb[0].mxu0
  %v604 = vpop.f32.mrb[0].mxu0
  %v605 = vadd.f32 %v102, %v604
  %v606 = vpop.f32.mrb[0].mxu0
  %607 = vmatprep.mubr.bf16.mxu0 %v460
  %608 = vmatmul.mubr.bf16.gmra.mrb[0].mxu0 %v304
  %v609 = vpop.f32.mrb[0].mxu0
  %v610 = vadd.f32 %v102, %v609
  %v611 = vpop.f32.mrb[0].mxu0
  %v612 = vpop.f32.mrb[0].mxu0
  %v613 = vadd.f32 %v102, %v612
  %v614 = vpop.f32.mrb[0].mxu0
  %615 = vmatprep.mubr.bf16.mxu0 %v463
  %616 = vmatmul.mubr.bf16.gmra.mrb[0].mxu0 %v306
  %v617 = vpop.f32.mrb[0].mxu0
  %v618 = vadd.f32 %v102, %v617
  %v619 = vpop.f32.mrb[0].mxu0
  %v620 = vpop.f32.mrb[0].mxu0
  %v621 = vadd.f32 %v102, %v620
  %v622 = vpop.f32.mrb[0].mxu0
  %623 = vmatprep.mubr.bf16.mxu0 %v466
  %624 = vmatmul.mubr.bf16.gmra.mrb[0].mxu0 %v308
  %v625 = vpop.f32.mrb[0].mxu0
  %v626 = vadd.f32 %v102, %v625
  %v627 = vpop.f32.mrb[0].mxu0
  %v628 = vpop.f32.mrb[0].mxu0
  %v629 = vadd.f32 %v102, %v628
  %v630 = vpop.f32.mrb[0].mxu0
  %631 = vmatprep.mubr.bf16.mxu0 %v469
  %632 = vmatmul.mubr.bf16.gmra.mrb[0].mxu0 %v310
  %v633 = vpop.f32.mrb[0].mxu0
  %v634 = vadd.f32 %v102, %v633
  %v635 = vpop.f32.mrb[0].mxu0
  %v636 = vpop.f32.mrb[0].mxu0
  %v637 = vadd.f32 %v102, %v636
  %v638 = vpop.f32.mrb[0].mxu0
  %639 = vmatprep.mubr.bf16.mxu0 %v472
  %640 = vmatmul.mubr.bf16.gmra.mrb[0].mxu0 %v312
  %v641 = vpop.f32.mrb[0].mxu0
  %v642 = vadd.f32 %v102, %v641
  %v643 = vpop.f32.mrb[0].mxu0
  %v644 = vpop.f32.mrb[0].mxu0
  %v645 = vadd.f32 %v102, %v644
  %v646 = vpop.f32.mrb[0].mxu0
  %647 = vmatprep.mubr.bf16.mxu0 %v475
  %648 = vmatmul.mubr.bf16.gmra.mrb[0].mxu0 %v314
  %v649 = vpop.f32.mrb[0].mxu0
  %v650 = vadd.f32 %v102, %v649
  %v651 = vpop.f32.mrb[0].mxu0
  %v652 = vpop.f32.mrb[0].mxu0
  %v653 = vadd.f32 %v102, %v652
  %v654 = vpop.f32.mrb[0].mxu0
  %655 = vmatprep.mubr.bf16.mxu0 %v478
  %656 = vmatmul.mubr.bf16.gmra.mrb[0].mxu0 %v316
  %v657 = vpop.f32.mrb[0].mxu0
  %v658 = vadd.f32 %v102, %v657
  %v659 = vpop.f32.mrb[0].mxu0
  %v660 = vpop.f32.mrb[0].mxu0
  %v661 = vadd.f32 %v102, %v660
  %v662 = vpop.f32.mrb[0].mxu0
  %663 = vmatprep.mubr.bf16.mxu0 %v481
  %664 = vmatmul.mubr.bf16.gmra.mrb[0].mxu0 %v318
  %v665 = vpop.f32.mrb[0].mxu0
  %v666 = vadd.f32 %v102, %v665
  %v667 = vpop.f32.mrb[0].mxu0
  %v668 = vpop.f32.mrb[0].mxu0
  %v669 = vadd.f32 %v102, %v668
  %v670 = vpop.f32.mrb[0].mxu0
  %671 = vmatprep.mubr.bf16.mxu0 %v484
  %672 = vmatmul.mubr.bf16.gmra.mrb[0].mxu0 %v320
  %v673 = vpop.f32.mrb[0].mxu0
  %v674 = vadd.f32 %v102, %v673
  %v675 = vpop.f32.mrb[0].mxu0
  %v676 = vpop.f32.mrb[0].mxu0
  %v677 = vadd.f32 %v102, %v676
  %v678 = vpop.f32.mrb[0].mxu0
  %679 = vmatprep.mubr.bf16.mxu0 %v487
  %680 = vmatmul.mubr.bf16.gmra.mrb[0].mxu0 %v322
  %v681 = vpop.f32.mrb[0].mxu0
  %v682 = vadd.f32 %v102, %v681
  %v683 = vpop.f32.mrb[0].mxu0
  %v684 = vpop.f32.mrb[0].mxu0
  %v685 = vadd.f32 %v102, %v684
  %v686 = vpop.f32.mrb[0].mxu0
  %687 = vmatprep.mubr.bf16.mxu0 %v490
  %688 = vmatmul.mubr.bf16.gmra.mrb[0].mxu0 %v324
  %v689 = vpop.f32.mrb[0].mxu0
  %v690 = vadd.f32 %v102, %v689
  %v691 = vpop.f32.mrb[0].mxu0
  %v692 = vpop.f32.mrb[0].mxu0
  %v693 = vadd.f32 %v102, %v692
  %v694 = vpop.f32.mrb[0].mxu0
  %695 = vmatprep.mubr.bf16.mxu0 %v493
  %696 = vmatmul.mubr.bf16.gmra.mrb[0].mxu0 %v326
  %v697 = vpop.f32.mrb[0].mxu0
  %v698 = vadd.f32 %v102, %v697
  %v699 = vpop.f32.mrb[0].mxu0
  %v700 = vpop.f32.mrb[0].mxu0
  %v701 = vadd.f32 %v102, %v700
  %v702 = vpop.f32.mrb[0].mxu0
  %703 = vmatprep.mubr.bf16.mxu0 %v496
  %704 = vmatmul.mubr.bf16.gmra.mrb[0].mxu0 %v328
  %v705 = vpop.f32.mrb[0].mxu0
  %v706 = vadd.f32 %v102, %v705
  %v707 = vpop.f32.mrb[0].mxu0
  %v708 = vpop.f32.mrb[0].mxu0
  %v709 = vadd.f32 %v102, %v708
  %v710 = vpop.f32.mrb[0].mxu0
  %711 = vmatprep.mubr.bf16.mxu0 %v499
  %712 = vmatmul.mubr.bf16.gmra.mrb[0].mxu0 %v330
  %v713 = vpop.f32.mrb[0].mxu0
  %v714 = vadd.f32 %v102, %v713
  %v715 = vpop.f32.mrb[0].mxu0
  %v716 = vpop.f32.mrb[0].mxu0
  %v717 = vadd.f32 %v102, %v716
  %v718 = vpop.f32.mrb[0].mxu0
  %719 = vmatprep.mubr.bf16.mxu0 %v502
  %720 = vmatmul.mubr.bf16.gmra.mrb[0].mxu0 %v332
  %v721 = vpop.f32.mrb[0].mxu0
  %v722 = vadd.f32 %v102, %v721
  %v723 = vpop.f32.mrb[0].mxu0
  %v724 = vpop.f32.mrb[0].mxu0
  %v725 = vadd.f32 %v102, %v724
  %v726 = vpop.f32.mrb[0].mxu0
  %727 = vmatprep.mubr.bf16.mxu0 %v505
  %728 = vmatmul.mubr.bf16.gmra.mrb[0].mxu0 %v334
  %v729 = vpop.f32.mrb[0].mxu0
  %v730 = vadd.f32 %v102, %v729
  %v731 = vpop.f32.mrb[0].mxu0
  %v732 = vpop.f32.mrb[0].mxu0
  %v733 = vadd.f32 %v102, %v732
  %v734 = vpop.f32.mrb[0].mxu0
  %735 = vmatprep.mubr.bf16.mxu0 %v508
  %736 = vmatmul.mubr.bf16.gmra.mrb[0].mxu0 %v336
  %v737 = vpop.f32.mrb[0].mxu0
  %v738 = vadd.f32 %v102, %v737
  %v739 = vpop.f32.mrb[0].mxu0
  %v740 = vpop.f32.mrb[0].mxu0
  %v741 = vadd.f32 %v102, %v740
  %v742 = vpop.f32.mrb[0].mxu0
  %743 = vmatprep.mubr.bf16.mxu0 %v511
  %744 = vmatmul.mubr.bf16.gmra.mrb[0].mxu0 %v338
  %v745 = vpop.f32.mrb[0].mxu0
  %v746 = vadd.f32 %v102, %v745
  %v747 = vpop.f32.mrb[0].mxu0
  %v748 = vpop.f32.mrb[0].mxu0
  %v749 = vadd.f32 %v102, %v748
  %v750 = vpop.f32.mrb[0].mxu0
  %751 = vmatprep.mubr.bf16.mxu0 %v514
  %752 = vmatmul.mubr.bf16.gmra.mrb[0].mxu0 %v340
  %v753 = vpop.f32.mrb[0].mxu0
  %v754 = vadd.f32 %v102, %v753
  %v755 = vpop.f32.mrb[0].mxu0
  %v756 = vpop.f32.mrb[0].mxu0
  %v757 = vadd.f32 %v102, %v756
  %v758 = vpop.f32.mrb[0].mxu0
  %759 = vmatprep.mubr.bf16.mxu0 %v517
  %760 = vmatmul.mubr.bf16.gmra.mrb[0].mxu0 %v342
  %v761 = vpop.f32.mrb[0].mxu0
  %v762 = vadd.f32 %v102, %v761
  %v763 = vpop.f32.mrb[0].mxu0
  %v764 = vpop.f32.mrb[0].mxu0
  %v765 = vadd.f32 %v102, %v764
  %v766 = vpop.f32.mrb[0].mxu0
  %767 = vmatprep.mubr.bf16.mxu0 %v520
  %768 = vmatmul.mubr.bf16.gmra.mrb[0].mxu0 %v344
  %v769 = vpop.f32.mrb[0].mxu0
  %v770 = vadd.f32 %v102, %v769
  %v771 = vpop.f32.mrb[0].mxu0
  %v772 = vpop.f32.mrb[0].mxu0
  %v773 = vadd.f32 %v102, %v772
  %v774 = vpop.f32.mrb[0].mxu0
  %775 = vmatprep.mubr.bf16.mxu0 %v523
  %776 = vmatmul.mubr.bf16.gmra.mrb[0].mxu0 %v346
  %v777 = vpop.f32.mrb[0].mxu0
  %v778 = vadd.f32 %v102, %v777
  %v779 = vpop.f32.mrb[0].mxu0
  %v780 = vpop.f32.mrb[0].mxu0
  %v781 = vadd.f32 %v102, %v780
  %v782 = vpop.f32.mrb[0].mxu0
  %783 = vmatprep.mubr.bf16.mxu0 %v526
  %784 = vmatmul.mubr.bf16.gmra.mrb[0].mxu0 %v348
  %v785 = vpop.f32.mrb[0].mxu0
  %v786 = vadd.f32 %v102, %v785
  %v787 = vpop.f32.mrb[0].mxu0
  %v788 = vpop.f32.mrb[0].mxu0
  %v789 = vadd.f32 %v102, %v788
  %v790 = vpop.f32.mrb[0].mxu0
  %791 = vmatprep.mubr.bf16.mxu0 %v529
  %792 = vmatmul.mubr.bf16.gmra.mrb[0].mxu0 %v350
  %v793 = vpop.f32.mrb[0].mxu0
  %v794 = vadd.f32 %v102, %v793
  %v795 = vpop.f32.mrb[0].mxu0
  %v796 = vpop.f32.mrb[0].mxu0
  %v797 = vadd.f32 %v102, %v796
  %v798 = vpop.f32.mrb[0].mxu0
  %799 = vmatprep.mubr.bf16.mxu0 %v532
  %800 = vmatmul.mubr.bf16.gmra.mrb[0].mxu0 %v352
  %v801 = vpop.f32.mrb[0].mxu0
  %v802 = vadd.f32 %v102, %v801
  %v803 = vpop.f32.mrb[0].mxu0
  %v804 = vpop.f32.mrb[0].mxu0
  %v805 = vadd.f32 %v102, %v804
  %v806 = vpop.f32.mrb[0].mxu0
  %807 = vmatprep.mubr.bf16.mxu0 %v535
  %808 = vmatmul.mubr.bf16.gmra.mrb[0].mxu0 %v354
  %v809 = vpop.f32.mrb[0].mxu0
  %v810 = vadd.f32 %v102, %v809
  %v811 = vpop.f32.mrb[0].mxu0
  %v812 = vpop.f32.mrb[0].mxu0
  %v813 = vadd.f32 %v102, %v812
  %v814 = vpop.f32.mrb[0].mxu0
  %815 = vmatprep.mubr.bf16.mxu0 %v538
  %816 = vmatmul.mubr.bf16.gmra.mrb[0].mxu0 %v356
  %v817 = vpop.f32.mrb[0].mxu0
  %v818 = vadd.f32 %v102, %v817
  %v819 = vpop.f32.mrb[0].mxu0
  %v820 = vpop.f32.mrb[0].mxu0
  %v821 = vadd.f32 %v102, %v820
  %v822 = vpop.f32.mrb[0].mxu0
  %823 = vmatprep.mubr.bf16.mxu0 %v541
  %824 = vmatmul.mubr.bf16.gmra.mrb[0].mxu0 %v358
  %v825 = vpop.f32.mrb[0].mxu0
  %v826 = vadd.f32 %v102, %v825
  %v827 = vpop.f32.mrb[0].mxu0
  %v828 = vpop.f32.mrb[0].mxu0
  %v829 = vadd.f32 %v102, %v828
  %v830 = vpop.f32.mrb[0].mxu0
  %831 = vdwg.mxu0
  %v832 = vxor.u32 %v578, 2147483648
  %v833 = vxor.u32 %v581, 2147483648
  %v834 = vxor.u32 %v586, 2147483648
  %v835 = vxor.u32 %v589, 2147483648
  %v836 = vxor.u32 %v594, 2147483648
  %v837 = vxor.u32 %v597, 2147483648
  %v838 = vxor.u32 %v602, 2147483648
  %v839 = vxor.u32 %v605, 2147483648
  %v840 = vxor.u32 %v610, 2147483648
  %v841 = vxor.u32 %v613, 2147483648
  %v842 = vxor.u32 %v618, 2147483648
  %v843 = vxor.u32 %v621, 2147483648
  %v844 = vxor.u32 %v626, 2147483648
  %v845 = vxor.u32 %v629, 2147483648
  %v846 = vxor.u32 %v634, 2147483648
  %v847 = vxor.u32 %v637, 2147483648
  %v848 = vxor.u32 %v642, 2147483648
  %v849 = vxor.u32 %v645, 2147483648
  %v850 = vxor.u32 %v650, 2147483648
  %v851 = vxor.u32 %v653, 2147483648
  %v852 = vxor.u32 %v658, 2147483648
  %v853 = vxor.u32 %v661, 2147483648
  %v854 = vxor.u32 %v666, 2147483648
  %v855 = vxor.u32 %v669, 2147483648
  %v856 = vxor.u32 %v674, 2147483648
  %v857 = vxor.u32 %v677, 2147483648
  %v858 = vxor.u32 %v682, 2147483648
  %v859 = vxor.u32 %v685, 2147483648
  %v860 = vxor.u32 %v690, 2147483648
  %v861 = vxor.u32 %v693, 2147483648
  %v862 = vxor.u32 %v698, 2147483648
  %v863 = vxor.u32 %v701, 2147483648
  %v864 = vxor.u32 %v706, 2147483648
  %v865 = vxor.u32 %v709, 2147483648
  %v866 = vxor.u32 %v714, 2147483648
  %v867 = vxor.u32 %v717, 2147483648
  %v868 = vxor.u32 %v722, 2147483648
  %v869 = vxor.u32 %v725, 2147483648
  %v870 = vxor.u32 %v730, 2147483648
  %v871 = vxor.u32 %v733, 2147483648
  %v872 = vxor.u32 %v738, 2147483648
  %v873 = vxor.u32 %v741, 2147483648
  %v874 = vxor.u32 %v746, 2147483648
  %v875 = vxor.u32 %v749, 2147483648
  %v876 = vxor.u32 %v754, 2147483648
  %v877 = vxor.u32 %v757, 2147483648
  %v878 = vxor.u32 %v762, 2147483648
  %v879 = vxor.u32 %v765, 2147483648
  %v880 = vxor.u32 %v770, 2147483648
  %v881 = vxor.u32 %v773, 2147483648
  %v882 = vxor.u32 %v778, 2147483648
  %v883 = vxor.u32 %v781, 2147483648
  %v884 = vxor.u32 %v786, 2147483648
  %v885 = vxor.u32 %v789, 2147483648
  %v886 = vxor.u32 %v794, 2147483648
  %v887 = vxor.u32 %v797, 2147483648
  %v888 = vxor.u32 %v802, 2147483648
  %v889 = vxor.u32 %v805, 2147483648
  %v890 = vxor.u32 %v810, 2147483648
  %v891 = vxor.u32 %v813, 2147483648
  %v892 = vxor.u32 %v818, 2147483648
  %v893 = vxor.u32 %v821, 2147483648
  %v894 = vxor.u32 %v826, 2147483648
  %v895 = vxor.u32 %v829, 2147483648
  %v896 = vmul.f32 %v832, 1.442695
  %v897 = vpow.pop %v896
  %v898 = vmul.f32 %v833, 1.442695
  %v899 = vpow.pop %v898
  %v900 = vmul.f32 %v834, 1.442695
  %v901 = vpow.pop %v900
  %v902 = vmul.f32 %v835, 1.442695
  %v903 = vpow.pop %v902
  %v904 = vmul.f32 %v836, 1.442695
  %v905 = vpow.pop %v904
  %v906 = vmul.f32 %v837, 1.442695
  %v907 = vpow.pop %v906
  %v908 = vmul.f32 %v838, 1.442695
  %v909 = vpow.pop %v908
  %v910 = vmul.f32 %v839, 1.442695
  %v911 = vpow.pop %v910
  %v912 = vmul.f32 %v840, 1.442695
  %v913 = vpow.pop %v912
  %v914 = vmul.f32 %v841, 1.442695
  %v915 = vpow.pop %v914
  %v916 = vmul.f32 %v842, 1.442695
  %v917 = vpow.pop %v916
  %v918 = vmul.f32 %v843, 1.442695
  %v919 = vpow.pop %v918
  %v920 = vmul.f32 %v844, 1.442695
  %v921 = vpow.pop %v920
  %v922 = vmul.f32 %v845, 1.442695
  %v923 = vpow.pop %v922
  %v924 = vmul.f32 %v846, 1.442695
  %v925 = vpow.pop %v924
  %v926 = vmul.f32 %v847, 1.442695
  %v927 = vpow.pop %v926
  %v928 = vmul.f32 %v848, 1.442695
  %v929 = vpow.pop %v928
  %v930 = vmul.f32 %v849, 1.442695
  %v931 = vpow.pop %v930
  %v932 = vmul.f32 %v850, 1.442695
  %v933 = vpow.pop %v932
  %v934 = vmul.f32 %v851, 1.442695
  %v935 = vpow.pop %v934
  %v936 = vmul.f32 %v852, 1.442695
  %v937 = vpow.pop %v936
  %v938 = vmul.f32 %v853, 1.442695
  %v939 = vpow.pop %v938
  %v940 = vmul.f32 %v854, 1.442695
  %v941 = vpow.pop %v940
  %v942 = vmul.f32 %v855, 1.442695
  %v943 = vpow.pop %v942
  %v944 = vmul.f32 %v856, 1.442695
  %v945 = vpow.pop %v944
  %v946 = vmul.f32 %v857, 1.442695
  %v947 = vpow.pop %v946
  %v948 = vmul.f32 %v858, 1.442695
  %v949 = vpow.pop %v948
  %v950 = vmul.f32 %v859, 1.442695
  %v951 = vpow.pop %v950
  %v952 = vmul.f32 %v860, 1.442695
  %v953 = vpow.pop %v952
  %v954 = vmul.f32 %v861, 1.442695
  %v955 = vpow.pop %v954
  %v956 = vmul.f32 %v862, 1.442695
  %v957 = vpow.pop %v956
  %v958 = vmul.f32 %v863, 1.442695
  %v959 = vpow.pop %v958
  %v960 = vmul.f32 %v864, 1.442695
  %v961 = vpow.pop %v960
  %v962 = vmul.f32 %v865, 1.442695
  %v963 = vpow.pop %v962
  %v964 = vmul.f32 %v866, 1.442695
  %v965 = vpow.pop %v964
  %v966 = vmul.f32 %v867, 1.442695
  %v967 = vpow.pop %v966
  %v968 = vmul.f32 %v868, 1.442695
  %v969 = vpow.pop %v968
  %v970 = vmul.f32 %v869, 1.442695
  %v971 = vpow.pop %v970
  %v972 = vmul.f32 %v870, 1.442695
  %v973 = vpow.pop %v972
  %v974 = vmul.f32 %v871, 1.442695
  %v975 = vpow.pop %v974
  %v976 = vmul.f32 %v872, 1.442695
  %v977 = vpow.pop %v976
  %v978 = vmul.f32 %v873, 1.442695
  %v979 = vpow.pop %v978
  %v980 = vmul.f32 %v874, 1.442695
  %v981 = vpow.pop %v980
  %v982 = vmul.f32 %v875, 1.442695
  %v983 = vpow.pop %v982
  %v984 = vmul.f32 %v876, 1.442695
  %v985 = vpow.pop %v984
  %v986 = vmul.f32 %v877, 1.442695
  %v987 = vpow.pop %v986
  %v988 = vmul.f32 %v878, 1.442695
  %v989 = vpow.pop %v988
  %v990 = vmul.f32 %v879, 1.442695
  %v991 = vpow.pop %v990
  %v992 = vmul.f32 %v880, 1.442695
  %v993 = vpow.pop %v992
  %v994 = vmul.f32 %v881, 1.442695
  %v995 = vpow.pop %v994
  %v996 = vmul.f32 %v882, 1.442695
  %v997 = vpow.pop %v996
  %v998 = vmul.f32 %v883, 1.442695
  %v999 = vpow.pop %v998
  %v1000 = vmul.f32 %v884, 1.442695
  %v1001 = vpow.pop %v1000
  %v1002 = vmul.f32 %v885, 1.442695
  %v1003 = vpow.pop %v1002
  %v1004 = vmul.f32 %v886, 1.442695
  %v1005 = vpow.pop %v1004
  %v1006 = vmul.f32 %v887, 1.442695
  %v1007 = vpow.pop %v1006
  %v1008 = vmul.f32 %v888, 1.442695
  %v1009 = vpow.pop %v1008
  %v1010 = vmul.f32 %v889, 1.442695
  %v1011 = vpow.pop %v1010
  %v1012 = vmul.f32 %v890, 1.442695
  %v1013 = vpow.pop %v1012
  %v1014 = vmul.f32 %v891, 1.442695
  %v1015 = vpow.pop %v1014
  %v1016 = vmul.f32 %v892, 1.442695
  %v1017 = vpow.pop %v1016
  %v1018 = vmul.f32 %v893, 1.442695
  %v1019 = vpow.pop %v1018
  %v1020 = vmul.f32 %v894, 1.442695
  %v1021 = vpow.pop %v1020
  %v1022 = vmul.f32 %v895, 1.442695
  %v1023 = vpow.pop %v1022
  %v1024 = vadd.f32 %v897, 1.0
  %v1025 = vadd.f32 %v899, 1.0
  %v1026 = vadd.f32 %v901, 1.0
  %v1027 = vadd.f32 %v903, 1.0
  %v1028 = vadd.f32 %v905, 1.0
  %v1029 = vadd.f32 %v907, 1.0
  %v1030 = vadd.f32 %v909, 1.0
  %v1031 = vadd.f32 %v911, 1.0
  %v1032 = vadd.f32 %v913, 1.0
  %v1033 = vadd.f32 %v915, 1.0
  %v1034 = vadd.f32 %v917, 1.0
  %v1035 = vadd.f32 %v919, 1.0
  %v1036 = vadd.f32 %v921, 1.0
  %v1037 = vadd.f32 %v923, 1.0
  %v1038 = vadd.f32 %v925, 1.0
  %v1039 = vadd.f32 %v927, 1.0
  %v1040 = vadd.f32 %v929, 1.0
  %v1041 = vadd.f32 %v931, 1.0
  %v1042 = vadd.f32 %v933, 1.0
  %v1043 = vadd.f32 %v935, 1.0
  %v1044 = vadd.f32 %v937, 1.0
  %v1045 = vadd.f32 %v939, 1.0
  %v1046 = vadd.f32 %v941, 1.0
  %v1047 = vadd.f32 %v943, 1.0
  %v1048 = vadd.f32 %v945, 1.0
  %v1049 = vadd.f32 %v947, 1.0
  %v1050 = vadd.f32 %v949, 1.0
  %v1051 = vadd.f32 %v951, 1.0
  %v1052 = vadd.f32 %v953, 1.0
  %v1053 = vadd.f32 %v955, 1.0
  %v1054 = vadd.f32 %v957, 1.0
  %v1055 = vadd.f32 %v959, 1.0
  %v1056 = vadd.f32 %v961, 1.0
  %v1057 = vadd.f32 %v963, 1.0
  %v1058 = vadd.f32 %v965, 1.0
  %v1059 = vadd.f32 %v967, 1.0
  %v1060 = vadd.f32 %v969, 1.0
  %v1061 = vadd.f32 %v971, 1.0
  %v1062 = vadd.f32 %v973, 1.0
  %v1063 = vadd.f32 %v975, 1.0
  %v1064 = vadd.f32 %v977, 1.0
  %v1065 = vadd.f32 %v979, 1.0
  %v1066 = vadd.f32 %v981, 1.0
  %v1067 = vadd.f32 %v983, 1.0
  %v1068 = vadd.f32 %v985, 1.0
  %v1069 = vadd.f32 %v987, 1.0
  %v1070 = vadd.f32 %v989, 1.0
  %v1071 = vadd.f32 %v991, 1.0
  %v1072 = vadd.f32 %v993, 1.0
  %v1073 = vadd.f32 %v995, 1.0
  %v1074 = vadd.f32 %v997, 1.0
  %v1075 = vadd.f32 %v999, 1.0
  %v1076 = vadd.f32 %v1001, 1.0
  %v1077 = vadd.f32 %v1003, 1.0
  %v1078 = vadd.f32 %v1005, 1.0
  %v1079 = vadd.f32 %v1007, 1.0
  %v1080 = vadd.f32 %v1009, 1.0
  %v1081 = vadd.f32 %v1011, 1.0
  %v1082 = vadd.f32 %v1013, 1.0
  %v1083 = vadd.f32 %v1015, 1.0
  %v1084 = vadd.f32 %v1017, 1.0
  %v1085 = vadd.f32 %v1019, 1.0
  %v1086 = vadd.f32 %v1021, 1.0
  %v1087 = vadd.f32 %v1023, 1.0
  %v1088 = vrcp.pop %v1024
  %v1089 = vmul.f32 1.0, %v1088
  %v1090 = vrcp.pop %v1025
  %v1091 = vmul.f32 1.0, %v1090
  %v1092 = vrcp.pop %v1026
  %v1093 = vmul.f32 1.0, %v1092
  %v1094 = vrcp.pop %v1027
  %v1095 = vmul.f32 1.0, %v1094
  %v1096 = vrcp.pop %v1028
  %v1097 = vmul.f32 1.0, %v1096
  %v1098 = vrcp.pop %v1029
  %v1099 = vmul.f32 1.0, %v1098
  %v1100 = vrcp.pop %v1030
  %v1101 = vmul.f32 1.0, %v1100
  %v1102 = vrcp.pop %v1031
  %v1103 = vmul.f32 1.0, %v1102
  %v1104 = vrcp.pop %v1032
  %v1105 = vmul.f32 1.0, %v1104
  %v1106 = vrcp.pop %v1033
  %v1107 = vmul.f32 1.0, %v1106
  %v1108 = vrcp.pop %v1034
  %v1109 = vmul.f32 1.0, %v1108
  %v1110 = vrcp.pop %v1035
  %v1111 = vmul.f32 1.0, %v1110
  %v1112 = vrcp.pop %v1036
  %v1113 = vmul.f32 1.0, %v1112
  %v1114 = vrcp.pop %v1037
  %v1115 = vmul.f32 1.0, %v1114
  %v1116 = vrcp.pop %v1038
  %v1117 = vmul.f32 1.0, %v1116
  %v1118 = vrcp.pop %v1039
  %v1119 = vmul.f32 1.0, %v1118
  %v1120 = vrcp.pop %v1040
  %v1121 = vmul.f32 1.0, %v1120
  %v1122 = vrcp.pop %v1041
  %v1123 = vmul.f32 1.0, %v1122
  %v1124 = vrcp.pop %v1042
  %v1125 = vmul.f32 1.0, %v1124
  %v1126 = vrcp.pop %v1043
  %v1127 = vmul.f32 1.0, %v1126
  %v1128 = vrcp.pop %v1044
  %v1129 = vmul.f32 1.0, %v1128
  %v1130 = vrcp.pop %v1045
  %v1131 = vmul.f32 1.0, %v1130
  %v1132 = vrcp.pop %v1046
  %v1133 = vmul.f32 1.0, %v1132
  %v1134 = vrcp.pop %v1047
  %v1135 = vmul.f32 1.0, %v1134
  %v1136 = vrcp.pop %v1048
  %v1137 = vmul.f32 1.0, %v1136
  %v1138 = vrcp.pop %v1049
  %v1139 = vmul.f32 1.0, %v1138
  %v1140 = vrcp.pop %v1050
  %v1141 = vmul.f32 1.0, %v1140
  %v1142 = vrcp.pop %v1051
  %v1143 = vmul.f32 1.0, %v1142
  %v1144 = vrcp.pop %v1052
  %v1145 = vmul.f32 1.0, %v1144
  %v1146 = vrcp.pop %v1053
  %v1147 = vmul.f32 1.0, %v1146
  %v1148 = vrcp.pop %v1054
  %v1149 = vmul.f32 1.0, %v1148
  %v1150 = vrcp.pop %v1055
  %v1151 = vmul.f32 1.0, %v1150
  %v1152 = vrcp.pop %v1056
  %v1153 = vmul.f32 1.0, %v1152
  %v1154 = vrcp.pop %v1057
  %v1155 = vmul.f32 1.0, %v1154
  %v1156 = vrcp.pop %v1058
  %v1157 = vmul.f32 1.0, %v1156
  %v1158 = vrcp.pop %v1059
  %v1159 = vmul.f32 1.0, %v1158
  %v1160 = vrcp.pop %v1060
  %v1161 = vmul.f32 1.0, %v1160
  %v1162 = vrcp.pop %v1061
  %v1163 = vmul.f32 1.0, %v1162
  %v1164 = vrcp.pop %v1062
  %v1165 = vmul.f32 1.0, %v1164
  %v1166 = vrcp.pop %v1063
  %v1167 = vmul.f32 1.0, %v1166
  %v1168 = vrcp.pop %v1064
  %v1169 = vmul.f32 1.0, %v1168
  %v1170 = vrcp.pop %v1065
  %v1171 = vmul.f32 1.0, %v1170
  %v1172 = vrcp.pop %v1066
  %v1173 = vmul.f32 1.0, %v1172
  %v1174 = vrcp.pop %v1067
  %v1175 = vmul.f32 1.0, %v1174
  %v1176 = vrcp.pop %v1068
  %v1177 = vmul.f32 1.0, %v1176
  %v1178 = vrcp.pop %v1069
  %v1179 = vmul.f32 1.0, %v1178
  %v1180 = vrcp.pop %v1070
  %v1181 = vmul.f32 1.0, %v1180
  %v1182 = vrcp.pop %v1071
  %v1183 = vmul.f32 1.0, %v1182
  %v1184 = vrcp.pop %v1072
  %v1185 = vmul.f32 1.0, %v1184
  %v1186 = vrcp.pop %v1073
  %v1187 = vmul.f32 1.0, %v1186
  %v1188 = vrcp.pop %v1074
  %v1189 = vmul.f32 1.0, %v1188
  %v1190 = vrcp.pop %v1075
  %v1191 = vmul.f32 1.0, %v1190
  %v1192 = vrcp.pop %v1076
  %v1193 = vmul.f32 1.0, %v1192
  %v1194 = vrcp.pop %v1077
  %v1195 = vmul.f32 1.0, %v1194
  %v1196 = vrcp.pop %v1078
  %v1197 = vmul.f32 1.0, %v1196
  %v1198 = vrcp.pop %v1079
  %v1199 = vmul.f32 1.0, %v1198
  %v1200 = vrcp.pop %v1080
  %v1201 = vmul.f32 1.0, %v1200
  %v1202 = vrcp.pop %v1081
  %v1203 = vmul.f32 1.0, %v1202
  %v1204 = vrcp.pop %v1082
  %v1205 = vmul.f32 1.0, %v1204
  %v1206 = vrcp.pop %v1083
  %v1207 = vmul.f32 1.0, %v1206
  %v1208 = vrcp.pop %v1084
  %v1209 = vmul.f32 1.0, %v1208
  %v1210 = vrcp.pop %v1085
  %v1211 = vmul.f32 1.0, %v1210
  %v1212 = vrcp.pop %v1086
  %v1213 = vmul.f32 1.0, %v1212
  %v1214 = vrcp.pop %v1087
  %v1215 = vmul.f32 1.0, %v1214
  %v1216 = vmul.f32 %v578, %v1089
  %v1217 = vmul.f32 %v581, %v1091
  %v1218 = vmul.f32 %v586, %v1093
  %v1219 = vmul.f32 %v589, %v1095
  %v1220 = vmul.f32 %v594, %v1097
  %v1221 = vmul.f32 %v597, %v1099
  %v1222 = vmul.f32 %v602, %v1101
  %v1223 = vmul.f32 %v605, %v1103
  %v1224 = vmul.f32 %v610, %v1105
  %v1225 = vmul.f32 %v613, %v1107
  %v1226 = vmul.f32 %v618, %v1109
  %v1227 = vmul.f32 %v621, %v1111
  %v1228 = vmul.f32 %v626, %v1113
  %v1229 = vmul.f32 %v629, %v1115
  %v1230 = vmul.f32 %v634, %v1117
  %v1231 = vmul.f32 %v637, %v1119
  %v1232 = vmul.f32 %v642, %v1121
  %v1233 = vmul.f32 %v645, %v1123
  %v1234 = vmul.f32 %v650, %v1125
  %v1235 = vmul.f32 %v653, %v1127
  %v1236 = vmul.f32 %v658, %v1129
  %v1237 = vmul.f32 %v661, %v1131
  %v1238 = vmul.f32 %v666, %v1133
  %v1239 = vmul.f32 %v669, %v1135
  %v1240 = vmul.f32 %v674, %v1137
  %v1241 = vmul.f32 %v677, %v1139
  %v1242 = vmul.f32 %v682, %v1141
  %v1243 = vmul.f32 %v685, %v1143
  %v1244 = vmul.f32 %v690, %v1145
  %v1245 = vmul.f32 %v693, %v1147
  %v1246 = vmul.f32 %v698, %v1149
  %v1247 = vmul.f32 %v701, %v1151
  %v1248 = vmul.f32 %v706, %v1153
  %v1249 = vmul.f32 %v709, %v1155
  %v1250 = vmul.f32 %v714, %v1157
  %v1251 = vmul.f32 %v717, %v1159
  %v1252 = vmul.f32 %v722, %v1161
  %v1253 = vmul.f32 %v725, %v1163
  %v1254 = vmul.f32 %v730, %v1165
  %v1255 = vmul.f32 %v733, %v1167
  %v1256 = vmul.f32 %v738, %v1169
  %v1257 = vmul.f32 %v741, %v1171
  %v1258 = vmul.f32 %v746, %v1173
  %v1259 = vmul.f32 %v749, %v1175
  %v1260 = vmul.f32 %v754, %v1177
  %v1261 = vmul.f32 %v757, %v1179
  %v1262 = vmul.f32 %v762, %v1181
  %v1263 = vmul.f32 %v765, %v1183
  %v1264 = vmul.f32 %v770, %v1185
  %v1265 = vmul.f32 %v773, %v1187
  %v1266 = vmul.f32 %v778, %v1189
  %v1267 = vmul.f32 %v781, %v1191
  %v1268 = vmul.f32 %v786, %v1193
  %v1269 = vmul.f32 %v789, %v1195
  %v1270 = vmul.f32 %v794, %v1197
  %v1271 = vmul.f32 %v797, %v1199
  %v1272 = vmul.f32 %v802, %v1201
  %v1273 = vmul.f32 %v805, %v1203
  %v1274 = vmul.f32 %v810, %v1205
  %v1275 = vmul.f32 %v813, %v1207
  %v1276 = vmul.f32 %v818, %v1209
  %v1277 = vmul.f32 %v821, %v1211
  %v1278 = vmul.f32 %v826, %v1213
  %v1279 = vmul.f32 %v829, %v1215
  %v1280 = vpack.c.bf16 %v1217, %v1216
  %v1281 = vpack.c.bf16 %v1219, %v1218
  %v1282 = vpack.c.bf16 %v1221, %v1220
  %v1283 = vpack.c.bf16 %v1223, %v1222
  %v1284 = vpack.c.bf16 %v1225, %v1224
  %v1285 = vpack.c.bf16 %v1227, %v1226
  %v1286 = vpack.c.bf16 %v1229, %v1228
  %v1287 = vpack.c.bf16 %v1231, %v1230
  %v1288 = vpack.c.bf16 %v1233, %v1232
  %v1289 = vpack.c.bf16 %v1235, %v1234
  %v1290 = vpack.c.bf16 %v1237, %v1236
  %v1291 = vpack.c.bf16 %v1239, %v1238
  %v1292 = vpack.c.bf16 %v1241, %v1240
  %v1293 = vpack.c.bf16 %v1243, %v1242
  %v1294 = vpack.c.bf16 %v1245, %v1244
  %v1295 = vpack.c.bf16 %v1247, %v1246
  %v1296 = vpack.c.bf16 %v1249, %v1248
  %v1297 = vpack.c.bf16 %v1251, %v1250
  %v1298 = vpack.c.bf16 %v1253, %v1252
  %v1299 = vpack.c.bf16 %v1255, %v1254
  %v1300 = vpack.c.bf16 %v1257, %v1256
  %v1301 = vpack.c.bf16 %v1259, %v1258
  %v1302 = vpack.c.bf16 %v1261, %v1260
  %v1303 = vpack.c.bf16 %v1263, %v1262
  %v1304 = vpack.c.bf16 %v1265, %v1264
  %v1305 = vpack.c.bf16 %v1267, %v1266
  %v1306 = vpack.c.bf16 %v1269, %v1268
  %v1307 = vpack.c.bf16 %v1271, %v1270
  %v1308 = vpack.c.bf16 %v1273, %v1272
  %v1309 = vpack.c.bf16 %v1275, %v1274
  %v1310 = vpack.c.bf16 %v1277, %v1276
  %v1311 = vpack.c.bf16 %v1279, %v1278
  %v1344 = vunpack.c.l.b16 %v1280
  %v1345 = vunpack.c.h.b16 %v1280
  %v1346 = vunpack.c.l.b16 %v1281
  %v1347 = vunpack.c.h.b16 %v1281
  %v1348 = vunpack.c.l.b16 %v1282
  %v1349 = vunpack.c.h.b16 %v1282
  %v1350 = vunpack.c.l.b16 %v1283
  %v1351 = vunpack.c.h.b16 %v1283
  %v1352 = vunpack.c.l.b16 %v1284
  %v1353 = vunpack.c.h.b16 %v1284
  %v1354 = vunpack.c.l.b16 %v1285
  %v1355 = vunpack.c.h.b16 %v1285
  %v1356 = vunpack.c.l.b16 %v1286
  %v1357 = vunpack.c.h.b16 %v1286
  %v1358 = vunpack.c.l.b16 %v1287
  %v1359 = vunpack.c.h.b16 %v1287
  %v1360 = vunpack.c.l.b16 %v1288
  %v1361 = vunpack.c.h.b16 %v1288
  %v1362 = vunpack.c.l.b16 %v1289
  %v1363 = vunpack.c.h.b16 %v1289
  %v1364 = vunpack.c.l.b16 %v1290
  %v1365 = vunpack.c.h.b16 %v1290
  %v1366 = vunpack.c.l.b16 %v1291
  %v1367 = vunpack.c.h.b16 %v1291
  %v1368 = vunpack.c.l.b16 %v1292
  %v1369 = vunpack.c.h.b16 %v1292
  %v1370 = vunpack.c.l.b16 %v1293
  %v1371 = vunpack.c.h.b16 %v1293
  %v1372 = vunpack.c.l.b16 %v1294
  %v1373 = vunpack.c.h.b16 %v1294
  %v1374 = vunpack.c.l.b16 %v1295
  %v1375 = vunpack.c.h.b16 %v1295
  %v1376 = vunpack.c.l.b16 %v1296
  %v1377 = vunpack.c.h.b16 %v1296
  %v1378 = vunpack.c.l.b16 %v1297
  %v1379 = vunpack.c.h.b16 %v1297
  %v1380 = vunpack.c.l.b16 %v1298
  %v1381 = vunpack.c.h.b16 %v1298
  %v1382 = vunpack.c.l.b16 %v1299
  %v1383 = vunpack.c.h.b16 %v1299
  %v1384 = vunpack.c.l.b16 %v1300
  %v1385 = vunpack.c.h.b16 %v1300
  %v1386 = vunpack.c.l.b16 %v1301
  %v1387 = vunpack.c.h.b16 %v1301
  %v1388 = vunpack.c.l.b16 %v1302
  %v1389 = vunpack.c.h.b16 %v1302
  %v1390 = vunpack.c.l.b16 %v1303
  %v1391 = vunpack.c.h.b16 %v1303
  %v1392 = vunpack.c.l.b16 %v1304
  %v1393 = vunpack.c.h.b16 %v1304
  %v1394 = vunpack.c.l.b16 %v1305
  %v1395 = vunpack.c.h.b16 %v1305
  %v1396 = vunpack.c.l.b16 %v1306
  %v1397 = vunpack.c.h.b16 %v1306
  %v1398 = vunpack.c.l.b16 %v1307
  %v1399 = vunpack.c.h.b16 %v1307
  %v1400 = vunpack.c.l.b16 %v1308
  %v1401 = vunpack.c.h.b16 %v1308
  %v1402 = vunpack.c.l.b16 %v1309
  %v1403 = vunpack.c.h.b16 %v1309
  %v1404 = vunpack.c.l.b16 %v1310
  %v1405 = vunpack.c.h.b16 %v1310
  %v1406 = vunpack.c.l.b16 %v1311
  %v1407 = vunpack.c.h.b16 %v1311
  %v1408 = vpack.c.b16 %v1344, %v1344
  %v1409 = vpack.c.b16 %v1345, %v1345
  %v1410 = vpack.c.b16 %v1346, %v1346
  %v1411 = vpack.c.b16 %v1347, %v1347
  %v1412 = vpack.c.b16 %v1348, %v1348
  %v1413 = vpack.c.b16 %v1349, %v1349
  %v1414 = vpack.c.b16 %v1350, %v1350
  %v1415 = vpack.c.b16 %v1351, %v1351
  %v1416 = vpack.c.b16 %v1352, %v1352
  %v1417 = vpack.c.b16 %v1353, %v1353
  %v1418 = vpack.c.b16 %v1354, %v1354
  %v1419 = vpack.c.b16 %v1355, %v1355
  %v1420 = vpack.c.b16 %v1356, %v1356
  %v1421 = vpack.c.b16 %v1357, %v1357
  %v1422 = vpack.c.b16 %v1358, %v1358
  %v1423 = vpack.c.b16 %v1359, %v1359
  %v1424 = vpack.c.b16 %v1360, %v1360
  %v1425 = vpack.c.b16 %v1361, %v1361
  %v1426 = vpack.c.b16 %v1362, %v1362
  %v1427 = vpack.c.b16 %v1363, %v1363
  %v1428 = vpack.c.b16 %v1364, %v1364
  %v1429 = vpack.c.b16 %v1365, %v1365
  %v1430 = vpack.c.b16 %v1366, %v1366
  %v1431 = vpack.c.b16 %v1367, %v1367
  %v1432 = vpack.c.b16 %v1368, %v1368
  %v1433 = vpack.c.b16 %v1369, %v1369
  %v1434 = vpack.c.b16 %v1370, %v1370
  %v1435 = vpack.c.b16 %v1371, %v1371
  %v1436 = vpack.c.b16 %v1372, %v1372
  %v1437 = vpack.c.b16 %v1373, %v1373
  %v1438 = vpack.c.b16 %v1374, %v1374
  %v1439 = vpack.c.b16 %v1375, %v1375
  %v1440 = vpack.c.b16 %v1376, %v1376
  %v1441 = vpack.c.b16 %v1377, %v1377
  %v1442 = vpack.c.b16 %v1378, %v1378
  %v1443 = vpack.c.b16 %v1379, %v1379
  %v1444 = vpack.c.b16 %v1380, %v1380
  %v1445 = vpack.c.b16 %v1381, %v1381
  %v1446 = vpack.c.b16 %v1382, %v1382
  %v1447 = vpack.c.b16 %v1383, %v1383
  %v1448 = vpack.c.b16 %v1384, %v1384
  %v1449 = vpack.c.b16 %v1385, %v1385
  %v1450 = vpack.c.b16 %v1386, %v1386
  %v1451 = vpack.c.b16 %v1387, %v1387
  %v1452 = vpack.c.b16 %v1388, %v1388
  %v1453 = vpack.c.b16 %v1389, %v1389
  %v1454 = vpack.c.b16 %v1390, %v1390
  %v1455 = vpack.c.b16 %v1391, %v1391
  %v1456 = vpack.c.b16 %v1392, %v1392
  %v1457 = vpack.c.b16 %v1393, %v1393
  %v1458 = vpack.c.b16 %v1394, %v1394
  %v1459 = vpack.c.b16 %v1395, %v1395
  %v1460 = vpack.c.b16 %v1396, %v1396
  %v1461 = vpack.c.b16 %v1397, %v1397
  %v1462 = vpack.c.b16 %v1398, %v1398
  %v1463 = vpack.c.b16 %v1399, %v1399
  %v1464 = vpack.c.b16 %v1400, %v1400
  %v1465 = vpack.c.b16 %v1401, %v1401
  %v1466 = vpack.c.b16 %v1402, %v1402
  %v1467 = vpack.c.b16 %v1403, %v1403
  %v1468 = vpack.c.b16 %v1404, %v1404
  %v1469 = vpack.c.b16 %v1405, %v1405
  %v1470 = vpack.c.b16 %v1406, %v1406
  %v1471 = vpack.c.b16 %v1407, %v1407
  %1536 = vst [vmem:[%s3] sm:$0xf] %v1408
  %1537 = vst [vmem:[%s3 + $0x4] sm:$0xf] %v1409
  %1538 = vst [vmem:[%s3 + $0x8] sm:$0xf] %v1410
  %1539 = vst [vmem:[%s3 + $0xc] sm:$0xf] %v1411
  %1540 = vst [vmem:[%s3 + $0x10] sm:$0xf] %v1412
  %1541 = vst [vmem:[%s3 + $0x14] sm:$0xf] %v1413
  %1542 = vst [vmem:[%s3 + $0x18] sm:$0xf] %v1414
  %1543 = vst [vmem:[%s3 + $0x1c] sm:$0xf] %v1415
  %1544 = vst [vmem:[%s3 + $0x20] sm:$0xf] %v1416
  %1545 = vst [vmem:[%s3 + $0x24] sm:$0xf] %v1417
  %1546 = vst [vmem:[%s3 + $0x28] sm:$0xf] %v1418
  %1547 = vst [vmem:[%s3 + $0x2c] sm:$0xf] %v1419
  %1548 = vst [vmem:[%s3 + $0x30] sm:$0xf] %v1420
  %1549 = vst [vmem:[%s3 + $0x34] sm:$0xf] %v1421
  %1550 = vst [vmem:[%s3 + $0x38] sm:$0xf] %v1422
  %1551 = vst [vmem:[%s3 + $0x3c] sm:$0xf] %v1423
  %1552 = vst [vmem:[%s3 + $0x40] sm:$0xf] %v1424
  %1553 = vst [vmem:[%s3 + $0x44] sm:$0xf] %v1425
  %1554 = vst [vmem:[%s3 + $0x48] sm:$0xf] %v1426
  %1555 = vst [vmem:[%s3 + $0x4c] sm:$0xf] %v1427
  %1556 = vst [vmem:[%s3 + $0x50] sm:$0xf] %v1428
  %1557 = vst [vmem:[%s3 + $0x54] sm:$0xf] %v1429
  %1558 = vst [vmem:[%s3 + $0x58] sm:$0xf] %v1430
  %1559 = vst [vmem:[%s3 + $0x5c] sm:$0xf] %v1431
  %1560 = vst [vmem:[%s3 + $0x60] sm:$0xf] %v1432
  %1561 = vst [vmem:[%s3 + $0x64] sm:$0xf] %v1433
  %1562 = vst [vmem:[%s3 + $0x68] sm:$0xf] %v1434
  %1563 = vst [vmem:[%s3 + $0x6c] sm:$0xf] %v1435
  %1564 = vst [vmem:[%s3 + $0x70] sm:$0xf] %v1436
  %1565 = vst [vmem:[%s3 + $0x74] sm:$0xf] %v1437
  %1566 = vst [vmem:[%s3 + $0x78] sm:$0xf] %v1438
  %1567 = vst [vmem:[%s3 + $0x7c] sm:$0xf] %v1439
  %1568 = vst [vmem:[%s3 + $0x80] sm:$0xf] %v1440
  %1569 = vst [vmem:[%s3 + $0x84] sm:$0xf] %v1441
  %1570 = vst [vmem:[%s3 + $0x88] sm:$0xf] %v1442
  %1571 = vst [vmem:[%s3 + $0x8c] sm:$0xf] %v1443
  %1572 = vst [vmem:[%s3 + $0x90] sm:$0xf] %v1444
  %1573 = vst [vmem:[%s3 + $0x94] sm:$0xf] %v1445
  %1574 = vst [vmem:[%s3 + $0x98] sm:$0xf] %v1446
  %1575 = vst [vmem:[%s3 + $0x9c] sm:$0xf] %v1447
  %1576 = vst [vmem:[%s3 + $0xa0] sm:$0xf] %v1448
  %1577 = vst [vmem:[%s3 + $0xa4] sm:$0xf] %v1449
  %1578 = vst [vmem:[%s3 + $0xa8] sm:$0xf] %v1450
  %1579 = vst [vmem:[%s3 + $0xac] sm:$0xf] %v1451
  %1580 = vst [vmem:[%s3 + $0xb0] sm:$0xf] %v1452
  %1581 = vst [vmem:[%s3 + $0xb4] sm:$0xf] %v1453
  %1582 = vst [vmem:[%s3 + $0xb8] sm:$0xf] %v1454
  %1583 = vst [vmem:[%s3 + $0xbc] sm:$0xf] %v1455
  %1584 = vst [vmem:[%s3 + $0xc0] sm:$0xf] %v1456
  %1585 = vst [vmem:[%s3 + $0xc4] sm:$0xf] %v1457
  %1586 = vst [vmem:[%s3 + $0xc8] sm:$0xf] %v1458
  %1587 = vst [vmem:[%s3 + $0xcc] sm:$0xf] %v1459
  %1588 = vst [vmem:[%s3 + $0xd0] sm:$0xf] %v1460
  %1589 = vst [vmem:[%s3 + $0xd4] sm:$0xf] %v1461
  %1590 = vst [vmem:[%s3 + $0xd8] sm:$0xf] %v1462
  %1591 = vst [vmem:[%s3 + $0xdc] sm:$0xf] %v1463
  %1592 = vst [vmem:[%s3 + $0xe0] sm:$0xf] %v1464
  %1593 = vst [vmem:[%s3 + $0xe4] sm:$0xf] %v1465
  %1594 = vst [vmem:[%s3 + $0xe8] sm:$0xf] %v1466
  %1595 = vst [vmem:[%s3 + $0xec] sm:$0xf] %v1467
  %1596 = vst [vmem:[%s3 + $0xf0] sm:$0xf] %v1468
  %1597 = vst [vmem:[%s3 + $0xf4] sm:$0xf] %v1469
  %1598 = vst [vmem:[%s3 + $0xf8] sm:$0xf] %v1470
  %1599 = vst [vmem:[%s3 + $0xfc] sm:$0xf] %v1471
  // Predicated region
  $region14: #{model_forward.9} parent=0 // pred_check
    _
  $region15: #{model_forward.9} parent=0 // pred_check_branch
    %1601 = sbr.rel (0) target = $region17
  $region16: #{model_forward.9} parent=0 // pred_region
    _
  $region17: #{model_forward.9} parent=0 // pred_fallthru
    _
  // Predicated region
  $region18: #{model_forward.9} parent=0 // pred_check
    _
  $region19: #{model_forward.9} parent=0 // pred_check_branch
    %1603 = sbr.rel (0) target = $region21
  $region20: #{model_forward.9} parent=0 // pred_region
    _
  $region21: #{model_forward.9} parent=0 // pred_fallthru
    _

// kernel: model_forward.10
$region0: #{model_forward.10}
  #allocation0 [shape = 'u32[]', space=smem, size = 0x4, offset = 0x4, fixed_abs, tag = 'smem constant byte address 0x4 - core index']
  #allocation1 [shape = 'u32[144,128]{1,0:T(1,128)}', space=vmem, size = 0x12000, scoped, tag = 'internal scratch']
  %s0 = inlined_call_operand.vmem [shape: bf16[128,288], index: 0, kind: input, shape index: {}]
  %s1 = inlined_call_operand.vmem [shape: bf16[288,128], index: 1, kind: input, shape index: {}]
  %s2 = inlined_call_operand.vmem [shape: f32[1,128], index: 2, kind: input, shape index: {}]
  %s3 = inlined_call_operand.vmem [shape: bf16[128,128], index: 3, kind: output, shape index: {}]
  %s4 = sld [smem:[#allocation0]]
  $region22: #{model_forward.10} parent=0
    _
  %s6 = ssub.s32 1, %s4
  %s7 = scalar_select 0, %s6, %s4
  // Predicated region
  $region2: #{model_forward.10} parent=0 // pred_check
    _
  $region3: #{model_forward.10} parent=0 // pred_check_branch
    %9 = sbr.rel (0) target = $region5
  $region4: #{model_forward.10} parent=0 // pred_region
    _
  $region5: #{model_forward.10} parent=0 // pred_fallthru
    _
  // Predicated region
  $region6: #{model_forward.10} parent=0 // pred_check
    _
  $region7: #{model_forward.10} parent=0 // pred_check_branch
    %11 = sbr.rel (0) target = $region9
  $region8: #{model_forward.10} parent=0 // pred_region
    _
  $region9: #{model_forward.10} parent=0 // pred_fallthru
    _
  // Predicated region
  $region10: #{model_forward.10} parent=0 // pred_check
    _
  $region11: #{model_forward.10} parent=0 // pred_check_branch
    %13 = sbr.rel (0) target = $region13
  $region12: #{model_forward.10} parent=0 // pred_region
    _
  $region13: #{model_forward.10} parent=0 // pred_fallthru
    _
  %v15 = vld [vmem:[%s0] sm:$0xff]
  %v16 = vld [vmem:[%s0 + $0x8] sm:$0xf]
  %v17 = vld [vmem:[%s0 + $0xc] sm:$0xff]
  %v18 = vld [vmem:[%s0 + $0x14] sm:$0xf]
  %v19 = vld [vmem:[%s0 + $0x18] sm:$0xff]
  %v20 = vld [vmem:[%s0 + $0x20] sm:$0xf]
  %v21 = vld [vmem:[%s0 + $0x24] sm:$0xff]
  %v22 = vld [vmem:[%s0 + $0x2c] sm:$0xf]
  %v23 = vld [vmem:[%s0 + $0x30] sm:$0xff]
  %v24 = vld [vmem:[%s0 + $0x38] sm:$0xf]
  %v25 = vld [vmem:[%s0 + $0x3c] sm:$0xff]
  %v26 = vld [vmem:[%s0 + $0x44] sm:$0xf]
  %v27 = vld [vmem:[%s0 + $0x48] sm:$0xff]
  %v28 = vld [vmem:[%s0 + $0x50] sm:$0xf]
  %v29 = vld [vmem:[%s0 + $0x54] sm:$0xff]
  %v30 = vld [vmem:[%s0 + $0x5c] sm:$0xf]
  %v31 = vld [vmem:[%s0 + $0x60] sm:$0xff]
  %v32 = vld [vmem:[%s0 + $0x68] sm:$0xf]
  %v33 = vld [vmem:[%s0 + $0x6c] sm:$0xff]
  %v34 = vld [vmem:[%s0 + $0x74] sm:$0xf]
  %v35 = vld [vmem:[%s0 + $0x78] sm:$0xff]
  %v36 = vld [vmem:[%s0 + $0x80] sm:$0xf]
  %v37 = vld [vmem:[%s0 + $0x84] sm:$0xff]
  %v38 = vld [vmem:[%s0 + $0x8c] sm:$0xf]
  %v39 = vld [vmem:[%s0 + $0x90] sm:$0xff]
  %v40 = vld [vmem:[%s0 + $0x98] sm:$0xf]
  %v41 = vld [vmem:[%s0 + $0x9c] sm:$0xff]
  %v42 = vld [vmem:[%s0 + $0xa4] sm:$0xf]
  %v43 = vld [vmem:[%s0 + $0xa8] sm:$0xff]
  %v44 = vld [vmem:[%s0 + $0xb0] sm:$0xf]
  %v45 = vld [vmem:[%s0 + $0xb4] sm:$0xff]
  %v46 = vld [vmem:[%s0 + $0xbc] sm:$0xf]
  %v47 = vld [vmem:[%s1] sm:$0xf]
  %v48 = vld [vmem:[%s1 + $0x4] sm:$0xf]
  %v49 = vld [vmem:[%s1 + $0x8] sm:$0xf]
  %v50 = vld [vmem:[%s1 + $0xc] sm:$0xf]
  %v51 = vld [vmem:[%s1 + $0x10] sm:$0xf]
  %v52 = vld [vmem:[%s1 + $0x14] sm:$0xf]
  %v53 = vld [vmem:[%s1 + $0x18] sm:$0xf]
  %v54 = vld [vmem:[%s1 + $0x1c] sm:$0xf]
  %v55 = vld [vmem:[%s1 + $0x20] sm:$0xf]
  %v56 = vld [vmem:[%s1 + $0x24] sm:$0xf]
  %v57 = vld [vmem:[%s1 + $0x28] sm:$0xf]
  %v58 = vld [vmem:[%s1 + $0x2c] sm:$0xf]
  %v59 = vld [vmem:[%s1 + $0x30] sm:$0xf]
  %v60 = vld [vmem:[%s1 + $0x34] sm:$0xf]
  %v61 = vld [vmem:[%s1 + $0x38] sm:$0xf]
  %v62 = vld [vmem:[%s1 + $0x3c] sm:$0xf]
  %v63 = vld [vmem:[%s1 + $0x40] sm:$0xf]
  %v64 = vld [vmem:[%s1 + $0x44] sm:$0xf]
  %v65 = vld [vmem:[%s1 + $0x48] sm:$0xf]
  %v66 = vld [vmem:[%s1 + $0x4c] sm:$0xf]
  %v67 = vld [vmem:[%s1 + $0x50] sm:$0xf]
  %v68 = vld [vmem:[%s1 + $0x54] sm:$0xf]
  %v69 = vld [vmem:[%s1 + $0x58] sm:$0xf]
  %v70 = vld [vmem:[%s1 + $0x5c] sm:$0xf]
  %v71 = vld [vmem:[%s1 + $0x60] sm:$0xf]
  %v72 = vld [vmem:[%s1 + $0x64] sm:$0xf]
  %v73 = vld [vmem:[%s1 + $0x68] sm:$0xf]
  %v74 = vld [vmem:[%s1 + $0x6c] sm:$0xf]
  %v75 = vld [vmem:[%s1 + $0x70] sm:$0xf]
  %v76 = vld [vmem:[%s1 + $0x74] sm:$0xf]
  %v77 = vld [vmem:[%s1 + $0x78] sm:$0xf]
  %v78 = vld [vmem:[%s1 + $0x7c] sm:$0xf]
  %v79 = vld [vmem:[%s1 + $0x80] sm:$0xf]
  %v80 = vld [vmem:[%s1 + $0x84] sm:$0xf]
  %v81 = vld [vmem:[%s1 + $0x88] sm:$0xf]
  %v82 = vld [vmem:[%s1 + $0x8c] sm:$0xf]
  %v83 = vld [vmem:[%s2] sm:$0x1]
  %v85 = vlaneseq
  %v86 = vshrl.u32 %v85, 7
  %v87 = vsub.s32 0, %v86
  %v88 = vrot.slane %v83, %v87
  %v122 = vunpack.c.l.b16 %v15
  %v123 = vunpack.c.h.b16 %v15
  %v124 = vunpack.c.l.b16 %v16
  %v125 = vunpack.c.l.b16 %v17
  %v126 = vunpack.c.h.b16 %v17
  %v127 = vunpack.c.l.b16 %v18
  %v128 = vunpack.c.l.b16 %v19
  %v129 = vunpack.c.h.b16 %v19
  %v130 = vunpack.c.l.b16 %v20
  %v131 = vunpack.c.l.b16 %v21
  %v132 = vunpack.c.h.b16 %v21
  %v133 = vunpack.c.l.b16 %v22
  %v134 = vunpack.c.l.b16 %v23
  %v135 = vunpack.c.h.b16 %v23
  %v136 = vunpack.c.l.b16 %v24
  %v137 = vunpack.c.l.b16 %v25
  %v138 = vunpack.c.h.b16 %v25
  %v139 = vunpack.c.l.b16 %v26
  %v140 = vunpack.c.l.b16 %v27
  %v141 = vunpack.c.h.b16 %v27
  %v142 = vunpack.c.l.b16 %v28
  %v143 = vunpack.c.l.b16 %v29
  %v144 = vunpack.c.h.b16 %v29
  %v145 = vunpack.c.l.b16 %v30
  %v146 = vunpack.c.l.b16 %v31
  %v147 = vunpack.c.h.b16 %v31
  %v148 = vunpack.c.l.b16 %v32
  %v149 = vunpack.c.l.b16 %v33
  %v150 = vunpack.c.h.b16 %v33
  %v151 = vunpack.c.l.b16 %v34
  %v152 = vunpack.c.l.b16 %v35
  %v153 = vunpack.c.h.b16 %v35
  %v154 = vunpack.c.l.b16 %v36
  %v155 = vunpack.c.l.b16 %v37
  %v156 = vunpack.c.h.b16 %v37
  %v157 = vunpack.c.l.b16 %v38
  %v158 = vunpack.c.l.b16 %v39
  %v159 = vunpack.c.h.b16 %v39
  %v160 = vunpack.c.l.b16 %v40
  %v161 = vunpack.c.l.b16 %v41
  %v162 = vunpack.c.h.b16 %v41
  %v163 = vunpack.c.l.b16 %v42
  %v164 = vunpack.c.l.b16 %v43
  %v165 = vunpack.c.h.b16 %v43
  %v166 = vunpack.c.l.b16 %v44
  %v167 = vunpack.c.l.b16 %v45
  %v168 = vunpack.c.h.b16 %v45
  %v169 = vunpack.c.l.b16 %v46
  %v170 = vpack.c.b16 %v125, %v122
  %v171 = vpack.c.b16 %v126, %v123
  %v172 = vpack.c.b16 %v127, %v124
  %v173 = vpack.c.b16 %v131, %v128
  %v174 = vpack.c.b16 %v132, %v129
  %v175 = vpack.c.b16 %v133, %v130
  %v176 = vpack.c.b16 %v137, %v134
  %v177 = vpack.c.b16 %v138, %v135
  %v178 = vpack.c.b16 %v139, %v136
  %v179 = vpack.c.b16 %v143, %v140
  %v180 = vpack.c.b16 %v144, %v141
  %v181 = vpack.c.b16 %v145, %v142
  %v182 = vpack.c.b16 %v149, %v146
  %v183 = vpack.c.b16 %v150, %v147
  %v184 = vpack.c.b16 %v151, %v148
  %v185 = vpack.c.b16 %v155, %v152
  %v186 = vpack.c.b16 %v156, %v153
  %v187 = vpack.c.b16 %v157, %v154
  %v188 = vpack.c.b16 %v161, %v158
  %v189 = vpack.c.b16 %v162, %v159
  %v190 = vpack.c.b16 %v163, %v160
  %v191 = vpack.c.b16 %v167, %v164
  %v192 = vpack.c.b16 %v168, %v165
  %v193 = vpack.c.b16 %v169, %v166
  %v246 = vunpack.c.l.b16 %v47
  %v247 = vunpack.c.l.b16 %v48
  %v248 = vunpack.c.l.b16 %v49
  %v249 = vunpack.c.l.b16 %v50
  %v250 = vunpack.c.l.b16 %v51
  %v251 = vunpack.c.l.b16 %v52
  %v252 = vunpack.c.l.b16 %v53
  %v253 = vunpack.c.l.b16 %v54
  %v254 = vunpack.c.l.b16 %v55
  %v255 = vunpack.c.l.b16 %v56
  %v256 = vunpack.c.l.b16 %v57
  %v257 = vunpack.c.l.b16 %v58
  %v258 = vunpack.c.l.b16 %v59
  %v259 = vunpack.c.l.b16 %v60
  %v260 = vunpack.c.l.b16 %v61
  %v261 = vunpack.c.l.b16 %v62
  %v262 = vunpack.c.l.b16 %v63
  %v263 = vunpack.c.l.b16 %v64
  %v264 = vunpack.c.l.b16 %v65
  %v265 = vunpack.c.l.b16 %v66
  %v266 = vunpack.c.l.b16 %v67
  %v267 = vunpack.c.l.b16 %v68
  %v268 = vunpack.c.l.b16 %v69
  %v269 = vunpack.c.l.b16 %v70
  %v270 = vunpack.c.l.b16 %v71
  %v271 = vunpack.c.l.b16 %v72
  %v272 = vunpack.c.l.b16 %v73
  %v273 = vunpack.c.l.b16 %v74
  %v274 = vunpack.c.l.b16 %v75
  %v275 = vunpack.c.l.b16 %v76
  %v276 = vunpack.c.l.b16 %v77
  %v277 = vunpack.c.l.b16 %v78
  %v278 = vunpack.c.l.b16 %v79
  %v279 = vunpack.c.l.b16 %v80
  %v280 = vunpack.c.l.b16 %v81
  %v281 = vunpack.c.l.b16 %v82
  %v282 = vpack.c.b16 %v247, %v246
  %v283 = vpack.c.b16 %v249, %v248
  %v284 = vpack.c.b16 %v251, %v250
  %v285 = vpack.c.b16 %v253, %v252
  %v286 = vpack.c.b16 %v255, %v254
  %v287 = vpack.c.b16 %v257, %v256
  %v288 = vpack.c.b16 %v259, %v258
  %v289 = vpack.c.b16 %v261, %v260
  %v290 = vpack.c.b16 %v263, %v262
  %v291 = vpack.c.b16 %v265, %v264
  %v292 = vpack.c.b16 %v267, %v266
  %v293 = vpack.c.b16 %v269, %v268
  %v294 = vpack.c.b16 %v271, %v270
  %v295 = vpack.c.b16 %v273, %v272
  %v296 = vpack.c.b16 %v275, %v274
  %v297 = vpack.c.b16 %v277, %v276
  %v298 = vpack.c.b16 %v279, %v278
  %v299 = vpack.c.b16 %v281, %v280
  %vm318 = vcmask 261120
  %v320 = vsel %vm318, %v172, 0
  %v323 = vsel %vm318, %v175, 0
  %v326 = vsel %vm318, %v178, 0
  %v329 = vsel %vm318, %v181, 0
  %v332 = vsel %vm318, %v184, 0
  %v335 = vsel %vm318, %v187, 0
  %v338 = vsel %vm318, %v190, 0
  %v341 = vsel %vm318, %v193, 0
  %343 = vmatprep.subr.bf16.mxu0 0
  %344 = vmatpush1.bf16.msra.mxu0 %v282
  %345 = vmatprep.subr.bf16.mxu0 0
  %346 = vmatpush1.bf16.msra.mxu0 %v283
  %347 = vmatprep.subr.bf16.mxu0 0
  %348 = vmatpush1.bf16.msra.mxu0 %v284
  %349 = vmatprep.subr.bf16.mxu0 0
  %350 = vmatpush1.bf16.msra.mxu0 %v285
  %351 = vmatprep.subr.bf16.mxu0 0
  %352 = vmatpush1.bf16.msra.mxu0 %v286
  %353 = vmatprep.subr.bf16.mxu0 0
  %354 = vmatpush1.bf16.msra.mxu0 %v287
  %355 = vmatprep.subr.bf16.mxu0 0
  %356 = vmatpush1.bf16.msra.mxu0 %v288
  %357 = vmatprep.subr.bf16.mxu0 0
  %358 = vmatpush1.bf16.msra.mxu0 %v289
  %359 = vmatprep.subr.bf16.mxu0 0
  %360 = vmatpush1.bf16.msra.mxu0 %v290
  %361 = vmatprep.subr.bf16.mxu0 0
  %362 = vmatpush1.bf16.msra.mxu0 %v291
  %363 = vmatprep.subr.bf16.mxu0 0
  %364 = vmatpush1.bf16.msra.mxu0 %v292
  %365 = vmatprep.subr.bf16.mxu0 0
  %366 = vmatpush1.bf16.msra.mxu0 %v293
  %367 = vmatprep.subr.bf16.mxu0 0
  %368 = vmatpush1.bf16.msra.mxu0 %v294
  %369 = vmatprep.subr.bf16.mxu0 0
  %370 = vmatpush1.bf16.msra.mxu0 %v295
  %371 = vmatprep.subr.bf16.mxu0 0
  %372 = vmatpush1.bf16.msra.mxu0 %v296
  %373 = vmatprep.subr.bf16.mxu0 0
  %374 = vmatpush1.bf16.msra.mxu0 %v297
  %375 = vmatprep.mubr.bf16.mxu0 %v171
  %376 = vmatmul.mubr.bf16.gmra.mrb[0].mxu0 %v170
  %v377 = vpop.f32.mrb[0].mxu0
  %v378 = vadd.f32 %v88, %v377
  %v379 = vpop.f32.mrb[0].mxu0
  %v380 = vpop.f32.mrb[0].mxu0
  %v381 = vadd.f32 %v88, %v380
  %v382 = vpop.f32.mrb[0].mxu0
  %383 = vmatprep.mubr.bf16.mxu0 %v174
  %384 = vmatmul.mubr.bf16.gmra.mrb[0].mxu0 %v173
  %v385 = vpop.f32.mrb[0].mxu0
  %v386 = vadd.f32 %v88, %v385
  %v387 = vpop.f32.mrb[0].mxu0
  %v388 = vpop.f32.mrb[0].mxu0
  %v389 = vadd.f32 %v88, %v388
  %v390 = vpop.f32.mrb[0].mxu0
  %391 = vmatprep.mubr.bf16.mxu0 %v177
  %392 = vmatmul.mubr.bf16.gmra.mrb[0].mxu0 %v176
  %v393 = vpop.f32.mrb[0].mxu0
  %v394 = vadd.f32 %v88, %v393
  %v395 = vpop.f32.mrb[0].mxu0
  %v396 = vpop.f32.mrb[0].mxu0
  %v397 = vadd.f32 %v88, %v396
  %v398 = vpop.f32.mrb[0].mxu0
  %399 = vmatprep.mubr.bf16.mxu0 %v180
  %400 = vmatmul.mubr.bf16.gmra.mrb[0].mxu0 %v179
  %v401 = vpop.f32.mrb[0].mxu0
  %v402 = vadd.f32 %v88, %v401
  %v403 = vpop.f32.mrb[0].mxu0
  %v404 = vpop.f32.mrb[0].mxu0
  %v405 = vadd.f32 %v88, %v404
  %v406 = vpop.f32.mrb[0].mxu0
  %407 = vmatprep.mubr.bf16.mxu0 %v183
  %408 = vmatmul.mubr.bf16.gmra.mrb[0].mxu0 %v182
  %v409 = vpop.f32.mrb[0].mxu0
  %v410 = vadd.f32 %v88, %v409
  %v411 = vpop.f32.mrb[0].mxu0
  %v412 = vpop.f32.mrb[0].mxu0
  %v413 = vadd.f32 %v88, %v412
  %v414 = vpop.f32.mrb[0].mxu0
  %415 = vmatprep.mubr.bf16.mxu0 %v186
  %416 = vmatmul.mubr.bf16.gmra.mrb[0].mxu0 %v185
  %v417 = vpop.f32.mrb[0].mxu0
  %v418 = vadd.f32 %v88, %v417
  %v419 = vpop.f32.mrb[0].mxu0
  %v420 = vpop.f32.mrb[0].mxu0
  %v421 = vadd.f32 %v88, %v420
  %v422 = vpop.f32.mrb[0].mxu0
  %423 = vmatprep.mubr.bf16.mxu0 %v189
  %424 = vmatmul.mubr.bf16.gmra.mrb[0].mxu0 %v188
  %v425 = vpop.f32.mrb[0].mxu0
  %v426 = vadd.f32 %v88, %v425
  %v427 = vpop.f32.mrb[0].mxu0
  %v428 = vpop.f32.mrb[0].mxu0
  %v429 = vadd.f32 %v88, %v428
  %v430 = vpop.f32.mrb[0].mxu0
  %431 = vmatprep.mubr.bf16.mxu0 %v192
  %432 = vmatmul.mubr.bf16.gmra.mrb[0].mxu0 %v191
  %v433 = vpop.f32.mrb[0].mxu0
  %v434 = vadd.f32 %v88, %v433
  %v435 = vpop.f32.mrb[0].mxu0
  %v436 = vpop.f32.mrb[0].mxu0
  %v437 = vadd.f32 %v88, %v436
  %v438 = vpop.f32.mrb[0].mxu0
  %439 = vdwg.mxu0
  %440 = vmatprep.subr.bf16.mxu0 0
  %441 = vmatpush1.bf16.msra.mxu0 %v298
  %442 = vmatprep.subr.bf16.mxu0 0
  %443 = vmatpush1.bf16.msra.mxu0 %v299
  %444 = vmatprep.subr.bf16.mxu0 0
  %445 = vmatpush1.bf16.msra.mxu0 0
  %446 = vmatprep.subr.bf16.mxu0 0
  %447 = vmatpush1.bf16.msra.mxu0 0
  %448 = vmatprep.subr.bf16.mxu0 0
  %449 = vmatpush1.bf16.msra.mxu0 0
  %450 = vmatprep.subr.bf16.mxu0 0
  %451 = vmatpush1.bf16.msra.mxu0 0
  %452 = vmatprep.subr.bf16.mxu0 0
  %453 = vmatpush1.bf16.msra.mxu0 0
  %454 = vmatprep.subr.bf16.mxu0 0
  %455 = vmatpush1.bf16.msra.mxu0 0
  %456 = vmatprep.subr.bf16.mxu0 0
  %457 = vmatpush1.bf16.msra.mxu0 0
  %458 = vmatprep.subr.bf16.mxu0 0
  %459 = vmatpush1.bf16.msra.mxu0 0
  %460 = vmatprep.subr.bf16.mxu0 0
  %461 = vmatpush1.bf16.msra.mxu0 0
  %462 = vmatprep.subr.bf16.mxu0 0
  %463 = vmatpush1.bf16.msra.mxu0 0
  %464 = vmatprep.subr.bf16.mxu0 0
  %465 = vmatpush1.bf16.msra.mxu0 0
  %466 = vmatprep.subr.bf16.mxu0 0
  %467 = vmatpush1.bf16.msra.mxu0 0
  %468 = vmatprep.subr.bf16.mxu0 0
  %469 = vmatpush1.bf16.msra.mxu0 0
  %470 = vmatprep.subr.bf16.mxu0 0
  %471 = vmatpush1.bf16.msra.mxu0 0
  %472 = vmatprep.mubr.bf16.mxu0 0
  %473 = vmatmul.mubr.bf16.gmra.mrb[0].mxu0 %v320
  %v474 = vpop.f32.mrb[0].mxu0
  %v475 = vadd.f32 %v378, %v474
  %v476 = vpop.f32.mrb[0].mxu0
  %v477 = vpop.f32.mrb[0].mxu0
  %v478 = vadd.f32 %v381, %v477
  %v479 = vpop.f32.mrb[0].mxu0
  %480 = vmatprep.mubr.bf16.mxu0 0
  %481 = vmatmul.mubr.bf16.gmra.mrb[0].mxu0 %v323
  %v482 = vpop.f32.mrb[0].mxu0
  %v483 = vadd.f32 %v386, %v482
  %v484 = vpop.f32.mrb[0].mxu0
  %v485 = vpop.f32.mrb[0].mxu0
  %v486 = vadd.f32 %v389, %v485
  %v487 = vpop.f32.mrb[0].mxu0
  %488 = vmatprep.mubr.bf16.mxu0 0
  %489 = vmatmul.mubr.bf16.gmra.mrb[0].mxu0 %v326
  %v490 = vpop.f32.mrb[0].mxu0
  %v491 = vadd.f32 %v394, %v490
  %v492 = vpop.f32.mrb[0].mxu0
  %v493 = vpop.f32.mrb[0].mxu0
  %v494 = vadd.f32 %v397, %v493
  %v495 = vpop.f32.mrb[0].mxu0
  %496 = vmatprep.mubr.bf16.mxu0 0
  %497 = vmatmul.mubr.bf16.gmra.mrb[0].mxu0 %v329
  %v498 = vpop.f32.mrb[0].mxu0
  %v499 = vadd.f32 %v402, %v498
  %v500 = vpop.f32.mrb[0].mxu0
  %v501 = vpop.f32.mrb[0].mxu0
  %v502 = vadd.f32 %v405, %v501
  %v503 = vpop.f32.mrb[0].mxu0
  %504 = vmatprep.mubr.bf16.mxu0 0
  %505 = vmatmul.mubr.bf16.gmra.mrb[0].mxu0 %v332
  %v506 = vpop.f32.mrb[0].mxu0
  %v507 = vadd.f32 %v410, %v506
  %v508 = vpop.f32.mrb[0].mxu0
  %v509 = vpop.f32.mrb[0].mxu0
  %v510 = vadd.f32 %v413, %v509
  %v511 = vpop.f32.mrb[0].mxu0
  %512 = vmatprep.mubr.bf16.mxu0 0
  %513 = vmatmul.mubr.bf16.gmra.mrb[0].mxu0 %v335
  %v514 = vpop.f32.mrb[0].mxu0
  %v515 = vadd.f32 %v418, %v514
  %v516 = vpop.f32.mrb[0].mxu0
  %v517 = vpop.f32.mrb[0].mxu0
  %v518 = vadd.f32 %v421, %v517
  %v519 = vpop.f32.mrb[0].mxu0
  %520 = vmatprep.mubr.bf16.mxu0 0
  %521 = vmatmul.mubr.bf16.gmra.mrb[0].mxu0 %v338
  %v522 = vpop.f32.mrb[0].mxu0
  %v523 = vadd.f32 %v426, %v522
  %v524 = vpop.f32.mrb[0].mxu0
  %v525 = vpop.f32.mrb[0].mxu0
  %v526 = vadd.f32 %v429, %v525
  %v527 = vpop.f32.mrb[0].mxu0
  %528 = vmatprep.mubr.bf16.mxu0 0
  %529 = vmatmul.mubr.bf16.gmra.mrb[0].mxu0 %v341
  %v530 = vpop.f32.mrb[0].mxu0
  %v531 = vadd.f32 %v434, %v530
  %v532 = vpop.f32.mrb[0].mxu0
  %v533 = vpop.f32.mrb[0].mxu0
  %v534 = vadd.f32 %v437, %v533
  %v535 = vpop.f32.mrb[0].mxu0
  %536 = vdwg.mxu0
  %v537 = vxor.u32 %v475, 2147483648
  %v538 = vxor.u32 %v478, 2147483648
  %v539 = vxor.u32 %v483, 2147483648
  %v540 = vxor.u32 %v486, 2147483648
  %v541 = vxor.u32 %v491, 2147483648
  %v542 = vxor.u32 %v494, 2147483648
  %v543 = vxor.u32 %v499, 2147483648
  %v544 = vxor.u32 %v502, 2147483648
  %v545 = vxor.u32 %v507, 2147483648
  %v546 = vxor.u32 %v510, 2147483648
  %v547 = vxor.u32 %v515, 2147483648
  %v548 = vxor.u32 %v518, 2147483648
  %v549 = vxor.u32 %v523, 2147483648
  %v550 = vxor.u32 %v526, 2147483648
  %v551 = vxor.u32 %v531, 2147483648
  %v552 = vxor.u32 %v534, 2147483648
  %v553 = vmul.f32 %v537, 1.442695
  %v554 = vpow.pop %v553
  %v555 = vmul.f32 %v538, 1.442695
  %v556 = vpow.pop %v555
  %v557 = vmul.f32 %v539, 1.442695
  %v558 = vpow.pop %v557
  %v559 = vmul.f32 %v540, 1.442695
  %v560 = vpow.pop %v559
  %v561 = vmul.f32 %v541, 1.442695
  %v562 = vpow.pop %v561
  %v563 = vmul.f32 %v542, 1.442695
  %v564 = vpow.pop %v563
  %v565 = vmul.f32 %v543, 1.442695
  %v566 = vpow.pop %v565
  %v567 = vmul.f32 %v544, 1.442695
  %v568 = vpow.pop %v567
  %v569 = vmul.f32 %v545, 1.442695
  %v570 = vpow.pop %v569
  %v571 = vmul.f32 %v546, 1.442695
  %v572 = vpow.pop %v571
  %v573 = vmul.f32 %v547, 1.442695
  %v574 = vpow.pop %v573
  %v575 = vmul.f32 %v548, 1.442695
  %v576 = vpow.pop %v575
  %v577 = vmul.f32 %v549, 1.442695
  %v578 = vpow.pop %v577
  %v579 = vmul.f32 %v550, 1.442695
  %v580 = vpow.pop %v579
  %v581 = vmul.f32 %v551, 1.442695
  %v582 = vpow.pop %v581
  %v583 = vmul.f32 %v552, 1.442695
  %v584 = vpow.pop %v583
  %v585 = vadd.f32 %v554, 1.0
  %v586 = vadd.f32 %v556, 1.0
  %v587 = vadd.f32 %v558, 1.0
  %v588 = vadd.f32 %v560, 1.0
  %v589 = vadd.f32 %v562, 1.0
  %v590 = vadd.f32 %v564, 1.0
  %v591 = vadd.f32 %v566, 1.0
  %v592 = vadd.f32 %v568, 1.0
  %v593 = vadd.f32 %v570, 1.0
  %v594 = vadd.f32 %v572, 1.0
  %v595 = vadd.f32 %v574, 1.0
  %v596 = vadd.f32 %v576, 1.0
  %v597 = vadd.f32 %v578, 1.0
  %v598 = vadd.f32 %v580, 1.0
  %v599 = vadd.f32 %v582, 1.0
  %v600 = vadd.f32 %v584, 1.0
  %v601 = vrcp.pop %v585
  %v602 = vmul.f32 1.0, %v601
  %v603 = vrcp.pop %v586
  %v604 = vmul.f32 1.0, %v603
  %v605 = vrcp.pop %v587
  %v606 = vmul.f32 1.0, %v605
  %v607 = vrcp.pop %v588
  %v608 = vmul.f32 1.0, %v607
  %v609 = vrcp.pop %v589
  %v610 = vmul.f32 1.0, %v609
  %v611 = vrcp.pop %v590
  %v612 = vmul.f32 1.0, %v611
  %v613 = vrcp.pop %v591
  %v614 = vmul.f32 1.0, %v613
  %v615 = vrcp.pop %v592
  %v616 = vmul.f32 1.0, %v615
  %v617 = vrcp.pop %v593
  %v618 = vmul.f32 1.0, %v617
  %v619 = vrcp.pop %v594
  %v620 = vmul.f32 1.0, %v619
  %v621 = vrcp.pop %v595
  %v622 = vmul.f32 1.0, %v621
  %v623 = vrcp.pop %v596
  %v624 = vmul.f32 1.0, %v623
  %v625 = vrcp.pop %v597
  %v626 = vmul.f32 1.0, %v625
  %v627 = vrcp.pop %v598
  %v628 = vmul.f32 1.0, %v627
  %v629 = vrcp.pop %v599
  %v630 = vmul.f32 1.0, %v629
  %v631 = vrcp.pop %v600
  %v632 = vmul.f32 1.0, %v631
  %v633 = vmul.f32 %v475, %v602
  %v634 = vmul.f32 %v478, %v604
  %v635 = vmul.f32 %v483, %v606
  %v636 = vmul.f32 %v486, %v608
  %v637 = vmul.f32 %v491, %v610
  %v638 = vmul.f32 %v494, %v612
  %v639 = vmul.f32 %v499, %v614
  %v640 = vmul.f32 %v502, %v616
  %v641 = vmul.f32 %v507, %v618
  %v642 = vmul.f32 %v510, %v620
  %v643 = vmul.f32 %v515, %v622
  %v644 = vmul.f32 %v518, %v624
  %v645 = vmul.f32 %v523, %v626
  %v646 = vmul.f32 %v526, %v628
  %v647 = vmul.f32 %v531, %v630
  %v648 = vmul.f32 %v534, %v632
  %v649 = vpack.c.bf16 %v634, %v633
  %v650 = vpack.c.bf16 %v636, %v635
  %v651 = vpack.c.bf16 %v638, %v637
  %v652 = vpack.c.bf16 %v640, %v639
  %v653 = vpack.c.bf16 %v642, %v641
  %v654 = vpack.c.bf16 %v644, %v643
  %v655 = vpack.c.bf16 %v646, %v645
  %v656 = vpack.c.bf16 %v648, %v647
  %v665 = vunpack.c.l.b16 %v649
  %v666 = vunpack.c.h.b16 %v649
  %v667 = vunpack.c.l.b16 %v650
  %v668 = vunpack.c.h.b16 %v650
  %v669 = vunpack.c.l.b16 %v651
  %v670 = vunpack.c.h.b16 %v651
  %v671 = vunpack.c.l.b16 %v652
  %v672 = vunpack.c.h.b16 %v652
  %v673 = vunpack.c.l.b16 %v653
  %v674 = vunpack.c.h.b16 %v653
  %v675 = vunpack.c.l.b16 %v654
  %v676 = vunpack.c.h.b16 %v654
  %v677 = vunpack.c.l.b16 %v655
  %v678 = vunpack.c.h.b16 %v655
  %v679 = vunpack.c.l.b16 %v656
  %v680 = vunpack.c.h.b16 %v656
  %v681 = vpack.c.b16 %v665, %v665
  %v682 = vpack.c.b16 %v666, %v666
  %v683 = vpack.c.b16 %v667, %v667
  %v684 = vpack.c.b16 %v668, %v668
  %v685 = vpack.c.b16 %v669, %v669
  %v686 = vpack.c.b16 %v670, %v670
  %v687 = vpack.c.b16 %v671, %v671
  %v688 = vpack.c.b16 %v672, %v672
  %v689 = vpack.c.b16 %v673, %v673
  %v690 = vpack.c.b16 %v674, %v674
  %v691 = vpack.c.b16 %v675, %v675
  %v692 = vpack.c.b16 %v676, %v676
  %v693 = vpack.c.b16 %v677, %v677
  %v694 = vpack.c.b16 %v678, %v678
  %v695 = vpack.c.b16 %v679, %v679
  %v696 = vpack.c.b16 %v680, %v680
  %713 = vst [vmem:[%s3] sm:$0xf] %v681
  %714 = vst [vmem:[%s3 + $0x4] sm:$0xf] %v682
  %715 = vst [vmem:[%s3 + $0x8] sm:$0xf] %v683
  %716 = vst [vmem:[%s3 + $0xc] sm:$0xf] %v684
  %717 = vst [vmem:[%s3 + $0x10] sm:$0xf] %v685
  %718 = vst [vmem:[%s3 + $0x14] sm:$0xf] %v686
  %719 = vst [vmem:[%s3 + $0x18] sm:$0xf] %v687
  %720 = vst [vmem:[%s3 + $0x1c] sm:$0xf] %v688
  %721 = vst [vmem:[%s3 + $0x20] sm:$0xf] %v689
  %722 = vst [vmem:[%s3 + $0x24] sm:$0xf] %v690
  %723 = vst [vmem:[%s3 + $0x28] sm:$0xf] %v691
  %724 = vst [vmem:[%s3 + $0x2c] sm:$0xf] %v692
  %725 = vst [vmem:[%s3 + $0x30] sm:$0xf] %v693
  %726 = vst [vmem:[%s3 + $0x34] sm:$0xf] %v694
  %727 = vst [vmem:[%s3 + $0x38] sm:$0xf] %v695
  %728 = vst [vmem:[%s3 + $0x3c] sm:$0xf] %v696
  // Predicated region
  $region14: #{model_forward.10} parent=0 // pred_check
    _
  $region15: #{model_forward.10} parent=0 // pred_check_branch
    %730 = sbr.rel (0) target = $region17
  $region16: #{model_forward.10} parent=0 // pred_region
    _
  $region17: #{model_forward.10} parent=0 // pred_fallthru
    _
  // Predicated region
  $region18: #{model_forward.10} parent=0 // pred_check
    _
  $region19: #{model_forward.10} parent=0 // pred_check_branch
    %732 = sbr.rel (0) target = $region21
  $region20: #{model_forward.10} parent=0 // pred_region
    _
  $region21: #{model_forward.10} parent=0 // pred_fallthru
    _

// kernel: model_forward.11
$region0: #{model_forward.11}
  #allocation0 [shape = 'u32[]', space=smem, size = 0x4, offset = 0x4, fixed_abs, tag = 'smem constant byte address 0x4 - core index']
  #allocation1 [shape = 'u32[144,128]{1,0:T(1,128)}', space=vmem, size = 0x12000, scoped, tag = 'internal scratch']
  %s0 = inlined_call_operand.vmem [shape: bf16[32,288], index: 0, kind: input, shape index: {}]
  %s1 = inlined_call_operand.vmem [shape: bf16[288,128], index: 1, kind: input, shape index: {}]
  %s2 = inlined_call_operand.vmem [shape: f32[1,128], index: 2, kind: input, shape index: {}]
  %s3 = inlined_call_operand.vmem [shape: bf16[32,128], index: 3, kind: output, shape index: {}]
  %s4 = sld [smem:[#allocation0]]
  $region22: #{model_forward.11} parent=0
    _
  %s6 = ssub.s32 1, %s4
  %s7 = scalar_select 0, %s6, %s4
  // Predicated region
  $region2: #{model_forward.11} parent=0 // pred_check
    _
  $region3: #{model_forward.11} parent=0 // pred_check_branch
    %9 = sbr.rel (0) target = $region5
  $region4: #{model_forward.11} parent=0 // pred_region
    _
  $region5: #{model_forward.11} parent=0 // pred_fallthru
    _
  // Predicated region
  $region6: #{model_forward.11} parent=0 // pred_check
    _
  $region7: #{model_forward.11} parent=0 // pred_check_branch
    %11 = sbr.rel (0) target = $region9
  $region8: #{model_forward.11} parent=0 // pred_region
    _
  $region9: #{model_forward.11} parent=0 // pred_fallthru
    _
  // Predicated region
  $region10: #{model_forward.11} parent=0 // pred_check
    _
  $region11: #{model_forward.11} parent=0 // pred_check_branch
    %13 = sbr.rel (0) target = $region13
  $region12: #{model_forward.11} parent=0 // pred_region
    _
  $region13: #{model_forward.11} parent=0 // pred_fallthru
    _
  %v15 = vld [vmem:[%s0] sm:$0xff]
  %v16 = vld [vmem:[%s0 + $0x8] sm:$0xf]
  %v17 = vld [vmem:[%s0 + $0xc] sm:$0xff]
  %v18 = vld [vmem:[%s0 + $0x14] sm:$0xf]
  %v19 = vld [vmem:[%s0 + $0x18] sm:$0xff]
  %v20 = vld [vmem:[%s0 + $0x20] sm:$0xf]
  %v21 = vld [vmem:[%s0 + $0x24] sm:$0xff]
  %v22 = vld [vmem:[%s0 + $0x2c] sm:$0xf]
  %v23 = vld [vmem:[%s1] sm:$0xf]
  %v24 = vld [vmem:[%s1 + $0x4] sm:$0xf]
  %v25 = vld [vmem:[%s1 + $0x8] sm:$0xf]
  %v26 = vld [vmem:[%s1 + $0xc] sm:$0xf]
  %v27 = vld [vmem:[%s1 + $0x10] sm:$0xf]
  %v28 = vld [vmem:[%s1 + $0x14] sm:$0xf]
  %v29 = vld [vmem:[%s1 + $0x18] sm:$0xf]
  %v30 = vld [vmem:[%s1 + $0x1c] sm:$0xf]
  %v31 = vld [vmem:[%s1 + $0x20] sm:$0xf]
  %v32 = vld [vmem:[%s1 + $0x24] sm:$0xf]
  %v33 = vld [vmem:[%s1 + $0x28] sm:$0xf]
  %v34 = vld [vmem:[%s1 + $0x2c] sm:$0xf]
  %v35 = vld [vmem:[%s1 + $0x30] sm:$0xf]
  %v36 = vld [vmem:[%s1 + $0x34] sm:$0xf]
  %v37 = vld [vmem:[%s1 + $0x38] sm:$0xf]
  %v38 = vld [vmem:[%s1 + $0x3c] sm:$0xf]
  %v39 = vld [vmem:[%s1 + $0x40] sm:$0xf]
  %v40 = vld [vmem:[%s1 + $0x44] sm:$0xf]
  %v41 = vld [vmem:[%s1 + $0x48] sm:$0xf]
  %v42 = vld [vmem:[%s1 + $0x4c] sm:$0xf]
  %v43 = vld [vmem:[%s1 + $0x50] sm:$0xf]
  %v44 = vld [vmem:[%s1 + $0x54] sm:$0xf]
  %v45 = vld [vmem:[%s1 + $0x58] sm:$0xf]
  %v46 = vld [vmem:[%s1 + $0x5c] sm:$0xf]
  %v47 = vld [vmem:[%s1 + $0x60] sm:$0xf]
  %v48 = vld [vmem:[%s1 + $0x64] sm:$0xf]
  %v49 = vld [vmem:[%s1 + $0x68] sm:$0xf]
  %v50 = vld [vmem:[%s1 + $0x6c] sm:$0xf]
  %v51 = vld [vmem:[%s1 + $0x70] sm:$0xf]
  %v52 = vld [vmem:[%s1 + $0x74] sm:$0xf]
  %v53 = vld [vmem:[%s1 + $0x78] sm:$0xf]
  %v54 = vld [vmem:[%s1 + $0x7c] sm:$0xf]
  %v55 = vld [vmem:[%s1 + $0x80] sm:$0xf]
  %v56 = vld [vmem:[%s1 + $0x84] sm:$0xf]
  %v57 = vld [vmem:[%s1 + $0x88] sm:$0xf]
  %v58 = vld [vmem:[%s1 + $0x8c] sm:$0xf]
  %v59 = vld [vmem:[%s2] sm:$0x1]
  %v61 = vlaneseq
  %v62 = vshrl.u32 %v61, 7
  %v63 = vsub.s32 0, %v62
  %v64 = vrot.slane %v59, %v63
  %v74 = vunpack.c.l.b16 %v15
  %v75 = vunpack.c.h.b16 %v15
  %v76 = vunpack.c.l.b16 %v16
  %v77 = vunpack.c.l.b16 %v17
  %v78 = vunpack.c.h.b16 %v17
  %v79 = vunpack.c.l.b16 %v18
  %v80 = vunpack.c.l.b16 %v19
  %v81 = vunpack.c.h.b16 %v19
  %v82 = vunpack.c.l.b16 %v20
  %v83 = vunpack.c.l.b16 %v21
  %v84 = vunpack.c.h.b16 %v21
  %v85 = vunpack.c.l.b16 %v22
  %v86 = vpack.c.b16 %v77, %v74
  %v87 = vpack.c.b16 %v78, %v75
  %v88 = vpack.c.b16 %v79, %v76
  %v89 = vpack.c.b16 %v83, %v80
  %v90 = vpack.c.b16 %v84, %v81
  %v91 = vpack.c.b16 %v85, %v82
  %v132 = vunpack.c.l.b16 %v23
  %v133 = vunpack.c.l.b16 %v24
  %v134 = vunpack.c.l.b16 %v25
  %v135 = vunpack.c.l.b16 %v26
  %v136 = vunpack.c.l.b16 %v27
  %v137 = vunpack.c.l.b16 %v28
  %v138 = vunpack.c.l.b16 %v29
  %v139 = vunpack.c.l.b16 %v30
  %v140 = vunpack.c.l.b16 %v31
  %v141 = vunpack.c.l.b16 %v32
  %v142 = vunpack.c.l.b16 %v33
  %v143 = vunpack.c.l.b16 %v34
  %v144 = vunpack.c.l.b16 %v35
  %v145 = vunpack.c.l.b16 %v36
  %v146 = vunpack.c.l.b16 %v37
  %v147 = vunpack.c.l.b16 %v38
  %v148 = vunpack.c.l.b16 %v39
  %v149 = vunpack.c.l.b16 %v40
  %v150 = vunpack.c.l.b16 %v41
  %v151 = vunpack.c.l.b16 %v42
  %v152 = vunpack.c.l.b16 %v43
  %v153 = vunpack.c.l.b16 %v44
  %v154 = vunpack.c.l.b16 %v45
  %v155 = vunpack.c.l.b16 %v46
  %v156 = vunpack.c.l.b16 %v47
  %v157 = vunpack.c.l.b16 %v48
  %v158 = vunpack.c.l.b16 %v49
  %v159 = vunpack.c.l.b16 %v50
  %v160 = vunpack.c.l.b16 %v51
  %v161 = vunpack.c.l.b16 %v52
  %v162 = vunpack.c.l.b16 %v53
  %v163 = vunpack.c.l.b16 %v54
  %v164 = vunpack.c.l.b16 %v55
  %v165 = vunpack.c.l.b16 %v56
  %v166 = vunpack.c.l.b16 %v57
  %v167 = vunpack.c.l.b16 %v58
  %v168 = vpack.c.b16 %v133, %v132
  %v169 = vpack.c.b16 %v135, %v134
  %v170 = vpack.c.b16 %v137, %v136
  %v171 = vpack.c.b16 %v139, %v138
  %v172 = vpack.c.b16 %v141, %v140
  %v173 = vpack.c.b16 %v143, %v142
  %v174 = vpack.c.b16 %v145, %v144
  %v175 = vpack.c.b16 %v147, %v146
  %v176 = vpack.c.b16 %v149, %v148
  %v177 = vpack.c.b16 %v151, %v150
  %v178 = vpack.c.b16 %v153, %v152
  %v179 = vpack.c.b16 %v155, %v154
  %v180 = vpack.c.b16 %v157, %v156
  %v181 = vpack.c.b16 %v159, %v158
  %v182 = vpack.c.b16 %v161, %v160
  %v183 = vpack.c.b16 %v163, %v162
  %v184 = vpack.c.b16 %v165, %v164
  %v185 = vpack.c.b16 %v167, %v166
  %vm204 = vcmask 261120
  %v206 = vsel %vm204, %v88, 0
  %v209 = vsel %vm204, %v91, 0
  %211 = vmatprep.subr.bf16.mxu0 0
  %212 = vmatpush1.bf16.msra.mxu0 %v168
  %213 = vmatprep.subr.bf16.mxu0 0
  %214 = vmatpush1.bf16.msra.mxu0 %v169
  %215 = vmatprep.subr.bf16.mxu0 0
  %216 = vmatpush1.bf16.msra.mxu0 %v170
  %217 = vmatprep.subr.bf16.mxu0 0
  %218 = vmatpush1.bf16.msra.mxu0 %v171
  %219 = vmatprep.subr.bf16.mxu0 0
  %220 = vmatpush1.bf16.msra.mxu0 %v172
  %221 = vmatprep.subr.bf16.mxu0 0
  %222 = vmatpush1.bf16.msra.mxu0 %v173
  %223 = vmatprep.subr.bf16.mxu0 0
  %224 = vmatpush1.bf16.msra.mxu0 %v174
  %225 = vmatprep.subr.bf16.mxu0 0
  %226 = vmatpush1.bf16.msra.mxu0 %v175
  %227 = vmatprep.subr.bf16.mxu0 0
  %228 = vmatpush1.bf16.msra.mxu0 %v176
  %229 = vmatprep.subr.bf16.mxu0 0
  %230 = vmatpush1.bf16.msra.mxu0 %v177
  %231 = vmatprep.subr.bf16.mxu0 0
  %232 = vmatpush1.bf16.msra.mxu0 %v178
  %233 = vmatprep.subr.bf16.mxu0 0
  %234 = vmatpush1.bf16.msra.mxu0 %v179
  %235 = vmatprep.subr.bf16.mxu0 0
  %236 = vmatpush1.bf16.msra.mxu0 %v180
  %237 = vmatprep.subr.bf16.mxu0 0
  %238 = vmatpush1.bf16.msra.mxu0 %v181
  %239 = vmatprep.subr.bf16.mxu0 0
  %240 = vmatpush1.bf16.msra.mxu0 %v182
  %241 = vmatprep.subr.bf16.mxu0 0
  %242 = vmatpush1.bf16.msra.mxu0 %v183
  %243 = vmatprep.mubr.bf16.mxu0 %v87
  %244 = vmatmul.mubr.bf16.gmra.mrb[0].mxu0 %v86
  %v245 = vpop.f32.mrb[0].mxu0
  %v246 = vadd.f32 %v64, %v245
  %v247 = vpop.f32.mrb[0].mxu0
  %v248 = vpop.f32.mrb[0].mxu0
  %v249 = vadd.f32 %v64, %v248
  %v250 = vpop.f32.mrb[0].mxu0
  %251 = vmatprep.mubr.bf16.mxu0 %v90
  %252 = vmatmul.mubr.bf16.gmra.mrb[0].mxu0 %v89
  %v253 = vpop.f32.mrb[0].mxu0
  %v254 = vadd.f32 %v64, %v253
  %v255 = vpop.f32.mrb[0].mxu0
  %v256 = vpop.f32.mrb[0].mxu0
  %v257 = vadd.f32 %v64, %v256
  %v258 = vpop.f32.mrb[0].mxu0
  %259 = vdwg.mxu0
  %260 = vmatprep.subr.bf16.mxu0 0
  %261 = vmatpush1.bf16.msra.mxu0 %v184
  %262 = vmatprep.subr.bf16.mxu0 0
  %263 = vmatpush1.bf16.msra.mxu0 %v185
  %264 = vmatprep.subr.bf16.mxu0 0
  %265 = vmatpush1.bf16.msra.mxu0 0
  %266 = vmatprep.subr.bf16.mxu0 0
  %267 = vmatpush1.bf16.msra.mxu0 0
  %268 = vmatprep.subr.bf16.mxu0 0
  %269 = vmatpush1.bf16.msra.mxu0 0
  %270 = vmatprep.subr.bf16.mxu0 0
  %271 = vmatpush1.bf16.msra.mxu0 0
  %272 = vmatprep.subr.bf16.mxu0 0
  %273 = vmatpush1.bf16.msra.mxu0 0
  %274 = vmatprep.subr.bf16.mxu0 0
  %275 = vmatpush1.bf16.msra.mxu0 0
  %276 = vmatprep.subr.bf16.mxu0 0
  %277 = vmatpush1.bf16.msra.mxu0 0
  %278 = vmatprep.subr.bf16.mxu0 0
  %279 = vmatpush1.bf16.msra.mxu0 0
  %280 = vmatprep.subr.bf16.mxu0 0
  %281 = vmatpush1.bf16.msra.mxu0 0
  %282 = vmatprep.subr.bf16.mxu0 0
  %283 = vmatpush1.bf16.msra.mxu0 0
  %284 = vmatprep.subr.bf16.mxu0 0
  %285 = vmatpush1.bf16.msra.mxu0 0
  %286 = vmatprep.subr.bf16.mxu0 0
  %287 = vmatpush1.bf16.msra.mxu0 0
  %288 = vmatprep.subr.bf16.mxu0 0
  %289 = vmatpush1.bf16.msra.mxu0 0
  %290 = vmatprep.subr.bf16.mxu0 0
  %291 = vmatpush1.bf16.msra.mxu0 0
  %292 = vmatprep.mubr.bf16.mxu0 0
  %293 = vmatmul.mubr.bf16.gmra.mrb[0].mxu0 %v206
  %v294 = vpop.f32.mrb[0].mxu0
  %v295 = vadd.f32 %v246, %v294
  %v296 = vpop.f32.mrb[0].mxu0
  %v297 = vpop.f32.mrb[0].mxu0
  %v298 = vadd.f32 %v249, %v297
  %v299 = vpop.f32.mrb[0].mxu0
  %300 = vmatprep.mubr.bf16.mxu0 0
  %301 = vmatmul.mubr.bf16.gmra.mrb[0].mxu0 %v209
  %v302 = vpop.f32.mrb[0].mxu0
  %v303 = vadd.f32 %v254, %v302
  %v304 = vpop.f32.mrb[0].mxu0
  %v305 = vpop.f32.mrb[0].mxu0
  %v306 = vadd.f32 %v257, %v305
  %v307 = vpop.f32.mrb[0].mxu0
  %308 = vdwg.mxu0
  %v309 = vxor.u32 %v295, 2147483648
  %v310 = vxor.u32 %v298, 2147483648
  %v311 = vxor.u32 %v303, 2147483648
  %v312 = vxor.u32 %v306, 2147483648
  %v313 = vmul.f32 %v309, 1.442695
  %v314 = vpow.pop %v313
  %v315 = vmul.f32 %v310, 1.442695
  %v316 = vpow.pop %v315
  %v317 = vmul.f32 %v311, 1.442695
  %v318 = vpow.pop %v317
  %v319 = vmul.f32 %v312, 1.442695
  %v320 = vpow.pop %v319
  %v321 = vadd.f32 %v314, 1.0
  %v322 = vadd.f32 %v316, 1.0
  %v323 = vadd.f32 %v318, 1.0
  %v324 = vadd.f32 %v320, 1.0
  %v325 = vrcp.pop %v321
  %v326 = vmul.f32 1.0, %v325
  %v327 = vrcp.pop %v322
  %v328 = vmul.f32 1.0, %v327
  %v329 = vrcp.pop %v323
  %v330 = vmul.f32 1.0, %v329
  %v331 = vrcp.pop %v324
  %v332 = vmul.f32 1.0, %v331
  %v333 = vmul.f32 %v295, %v326
  %v334 = vmul.f32 %v298, %v328
  %v335 = vmul.f32 %v303, %v330
  %v336 = vmul.f32 %v306, %v332
  %v337 = vpack.c.bf16 %v334, %v333
  %v338 = vpack.c.bf16 %v336, %v335
  %v341 = vunpack.c.l.b16 %v337
  %v342 = vunpack.c.h.b16 %v337
  %v343 = vunpack.c.l.b16 %v338
  %v344 = vunpack.c.h.b16 %v338
  %v345 = vpack.c.b16 %v341, %v341
  %v346 = vpack.c.b16 %v342, %v342
  %v347 = vpack.c.b16 %v343, %v343
  %v348 = vpack.c.b16 %v344, %v344
  %353 = vst [vmem:[%s3] sm:$0xf] %v345
  %354 = vst [vmem:[%s3 + $0x4] sm:$0xf] %v346
  %355 = vst [vmem:[%s3 + $0x8] sm:$0xf] %v347
  %356 = vst [vmem:[%s3 + $0xc] sm:$0xf] %v348
  // Predicated region
  $region14: #{model_forward.11} parent=0 // pred_check
    _
  $region15: #{model_forward.11} parent=0 // pred_check_branch
    %358 = sbr.rel (0) target = $region17
  $region16: #{model_forward.11} parent=0 // pred_region
    _
  $region17: #{model_forward.11} parent=0 // pred_fallthru
    _
  // Predicated region
  $region18: #{model_forward.11} parent=0 // pred_check
    _
  $region19: #{model_forward.11} parent=0 // pred_check_branch
    %360 = sbr.rel (0) target = $region21
  $region20: #{model_forward.11} parent=0 // pred_region
    _
  $region21: #{model_forward.11} parent=0 // pred_fallthru
    _

// kernel: model_forward.12
$region0: #{model_forward.12}
  #allocation0 [shape = 'u32[]', space=smem, size = 0x4, offset = 0x4, fixed_abs, tag = 'smem constant byte address 0x4 - core index']
  #allocation1 [shape = 'u32[144,128]{1,0:T(1,128)}', space=vmem, size = 0x12000, scoped, tag = 'internal scratch']
  %s0 = inlined_call_operand.vmem [shape: bf16[8,576], index: 0, kind: input, shape index: {}]
  %s1 = inlined_call_operand.vmem [shape: bf16[576,128], index: 1, kind: input, shape index: {}]
  %s2 = inlined_call_operand.vmem [shape: f32[1,128], index: 2, kind: input, shape index: {}]
  %s3 = inlined_call_operand.vmem [shape: bf16[8,128], index: 3, kind: output, shape index: {}]
  %s4 = sld [smem:[#allocation0]]
  $region22: #{model_forward.12} parent=0
    _
  %s6 = ssub.s32 1, %s4
  %s7 = scalar_select 0, %s6, %s4
  // Predicated region
  $region2: #{model_forward.12} parent=0 // pred_check
    _
  $region3: #{model_forward.12} parent=0 // pred_check_branch
    %9 = sbr.rel (0) target = $region5
  $region4: #{model_forward.12} parent=0 // pred_region
    _
  $region5: #{model_forward.12} parent=0 // pred_fallthru
    _
  // Predicated region
  $region6: #{model_forward.12} parent=0 // pred_check
    _
  $region7: #{model_forward.12} parent=0 // pred_check_branch
    %11 = sbr.rel (0) target = $region9
  $region8: #{model_forward.12} parent=0 // pred_region
    _
  $region9: #{model_forward.12} parent=0 // pred_fallthru
    _
  // Predicated region
  $region10: #{model_forward.12} parent=0 // pred_check
    _
  $region11: #{model_forward.12} parent=0 // pred_check_branch
    %13 = sbr.rel (0) target = $region13
  $region12: #{model_forward.12} parent=0 // pred_region
    _
  $region13: #{model_forward.12} parent=0 // pred_fallthru
    _
  %v15 = vld [vmem:[%s0] sm:$0xff]
  %v16 = vld [vmem:[%s0 + $0x8] sm:$0xff]
  %v17 = vld [vmem:[%s0 + $0x10] sm:$0xf]
  %v18 = vld [vmem:[%s1] sm:$0xf]
  %v19 = vld [vmem:[%s1 + $0x4] sm:$0xf]
  %v20 = vld [vmem:[%s1 + $0x8] sm:$0xf]
  %v21 = vld [vmem:[%s1 + $0xc] sm:$0xf]
  %v22 = vld [vmem:[%s1 + $0x10] sm:$0xf]
  %v23 = vld [vmem:[%s1 + $0x14] sm:$0xf]
  %v24 = vld [vmem:[%s1 + $0x18] sm:$0xf]
  %v25 = vld [vmem:[%s1 + $0x1c] sm:$0xf]
  %v26 = vld [vmem:[%s1 + $0x20] sm:$0xf]
  %v27 = vld [vmem:[%s1 + $0x24] sm:$0xf]
  %v28 = vld [vmem:[%s1 + $0x28] sm:$0xf]
  %v29 = vld [vmem:[%s1 + $0x2c] sm:$0xf]
  %v30 = vld [vmem:[%s1 + $0x30] sm:$0xf]
  %v31 = vld [vmem:[%s1 + $0x34] sm:$0xf]
  %v32 = vld [vmem:[%s1 + $0x38] sm:$0xf]
  %v33 = vld [vmem:[%s1 + $0x3c] sm:$0xf]
  %v34 = vld [vmem:[%s1 + $0x40] sm:$0xf]
  %v35 = vld [vmem:[%s1 + $0x44] sm:$0xf]
  %v36 = vld [vmem:[%s1 + $0x48] sm:$0xf]
  %v37 = vld [vmem:[%s1 + $0x4c] sm:$0xf]
  %v38 = vld [vmem:[%s1 + $0x50] sm:$0xf]
  %v39 = vld [vmem:[%s1 + $0x54] sm:$0xf]
  %v40 = vld [vmem:[%s1 + $0x58] sm:$0xf]
  %v41 = vld [vmem:[%s1 + $0x5c] sm:$0xf]
  %v42 = vld [vmem:[%s1 + $0x60] sm:$0xf]
  %v43 = vld [vmem:[%s1 + $0x64] sm:$0xf]
  %v44 = vld [vmem:[%s1 + $0x68] sm:$0xf]
  %v45 = vld [vmem:[%s1 + $0x6c] sm:$0xf]
  %v46 = vld [vmem:[%s1 + $0x70] sm:$0xf]
  %v47 = vld [vmem:[%s1 + $0x74] sm:$0xf]
  %v48 = vld [vmem:[%s1 + $0x78] sm:$0xf]
  %v49 = vld [vmem:[%s1 + $0x7c] sm:$0xf]
  %v50 = vld [vmem:[%s1 + $0x80] sm:$0xf]
  %v51 = vld [vmem:[%s1 + $0x84] sm:$0xf]
  %v52 = vld [vmem:[%s1 + $0x88] sm:$0xf]
  %v53 = vld [vmem:[%s1 + $0x8c] sm:$0xf]
  %v54 = vld [vmem:[%s1 + $0x90] sm:$0xf]
  %v55 = vld [vmem:[%s1 + $0x94] sm:$0xf]
  %v56 = vld [vmem:[%s1 + $0x98] sm:$0xf]
  %v57 = vld [vmem:[%s1 + $0x9c] sm:$0xf]
  %v58 = vld [vmem:[%s1 + $0xa0] sm:$0xf]
  %v59 = vld [vmem:[%s1 + $0xa4] sm:$0xf]
  %v60 = vld [vmem:[%s1 + $0xa8] sm:$0xf]
  %v61 = vld [vmem:[%s1 + $0xac] sm:$0xf]
  %v62 = vld [vmem:[%s1 + $0xb0] sm:$0xf]
  %v63 = vld [vmem:[%s1 + $0xb4] sm:$0xf]
  %v64 = vld [vmem:[%s1 + $0xb8] sm:$0xf]
  %v65 = vld [vmem:[%s1 + $0xbc] sm:$0xf]
  %v66 = vld [vmem:[%s1 + $0xc0] sm:$0xf]
  %v67 = vld [vmem:[%s1 + $0xc4] sm:$0xf]
  %v68 = vld [vmem:[%s1 + $0xc8] sm:$0xf]
  %v69 = vld [vmem:[%s1 + $0xcc] sm:$0xf]
  %v70 = vld [vmem:[%s1 + $0xd0] sm:$0xf]
  %v71 = vld [vmem:[%s1 + $0xd4] sm:$0xf]
  %v72 = vld [vmem:[%s1 + $0xd8] sm:$0xf]
  %v73 = vld [vmem:[%s1 + $0xdc] sm:$0xf]
  %v74 = vld [vmem:[%s1 + $0xe0] sm:$0xf]
  %v75 = vld [vmem:[%s1 + $0xe4] sm:$0xf]
  %v76 = vld [vmem:[%s1 + $0xe8] sm:$0xf]
  %v77 = vld [vmem:[%s1 + $0xec] sm:$0xf]
  %v78 = vld [vmem:[%s1 + $0xf0] sm:$0xf]
  %v79 = vld [vmem:[%s1 + $0xf4] sm:$0xf]
  %v80 = vld [vmem:[%s1 + $0xf8] sm:$0xf]
  %v81 = vld [vmem:[%s1 + $0xfc] sm:$0xf]
  %v82 = vld [vmem:[%s1 + $0x100] sm:$0xf]
  %v83 = vld [vmem:[%s1 + $0x104] sm:$0xf]
  %v84 = vld [vmem:[%s1 + $0x108] sm:$0xf]
  %v85 = vld [vmem:[%s1 + $0x10c] sm:$0xf]
  %v86 = vld [vmem:[%s1 + $0x110] sm:$0xf]
  %v87 = vld [vmem:[%s1 + $0x114] sm:$0xf]
  %v88 = vld [vmem:[%s1 + $0x118] sm:$0xf]
  %v89 = vld [vmem:[%s1 + $0x11c] sm:$0xf]
  %v90 = vld [vmem:[%s2] sm:$0x1]
  %v92 = vlaneseq
  %v93 = vshrl.u32 %v92, 7
  %v94 = vsub.s32 0, %v93
  %v95 = vrot.slane %v90, %v94
  %v100 = vunpack.c.l.b16 %v15
  %v101 = vunpack.c.h.b16 %v15
  %v102 = vunpack.c.l.b16 %v16
  %v103 = vunpack.c.h.b16 %v16
  %v104 = vunpack.c.l.b16 %v17
  %v105 = vpack.c.b16 %v100, %v100
  %v106 = vpack.c.b16 %v101, %v101
  %v107 = vpack.c.b16 %v102, %v102
  %v108 = vpack.c.b16 %v103, %v103
  %v109 = vpack.c.b16 %v104, %v104
  %v186 = vunpack.c.l.b16 %v18
  %v187 = vunpack.c.l.b16 %v19
  %v188 = vunpack.c.l.b16 %v20
  %v189 = vunpack.c.l.b16 %v21
  %v190 = vunpack.c.l.b16 %v22
  %v191 = vunpack.c.l.b16 %v23
  %v192 = vunpack.c.l.b16 %v24
  %v193 = vunpack.c.l.b16 %v25
  %v194 = vunpack.c.l.b16 %v26
  %v195 = vunpack.c.l.b16 %v27
  %v196 = vunpack.c.l.b16 %v28
  %v197 = vunpack.c.l.b16 %v29
  %v198 = vunpack.c.l.b16 %v30
  %v199 = vunpack.c.l.b16 %v31
  %v200 = vunpack.c.l.b16 %v32
  %v201 = vunpack.c.l.b16 %v33
  %v202 = vunpack.c.l.b16 %v34
  %v203 = vunpack.c.l.b16 %v35
  %v204 = vunpack.c.l.b16 %v36
  %v205 = vunpack.c.l.b16 %v37
  %v206 = vunpack.c.l.b16 %v38
  %v207 = vunpack.c.l.b16 %v39
  %v208 = vunpack.c.l.b16 %v40
  %v209 = vunpack.c.l.b16 %v41
  %v210 = vunpack.c.l.b16 %v42
  %v211 = vunpack.c.l.b16 %v43
  %v212 = vunpack.c.l.b16 %v44
  %v213 = vunpack.c.l.b16 %v45
  %v214 = vunpack.c.l.b16 %v46
  %v215 = vunpack.c.l.b16 %v47
  %v216 = vunpack.c.l.b16 %v48
  %v217 = vunpack.c.l.b16 %v49
  %v218 = vunpack.c.l.b16 %v50
  %v219 = vunpack.c.l.b16 %v51
  %v220 = vunpack.c.l.b16 %v52
  %v221 = vunpack.c.l.b16 %v53
  %v222 = vunpack.c.l.b16 %v54
  %v223 = vunpack.c.l.b16 %v55
  %v224 = vunpack.c.l.b16 %v56
  %v225 = vunpack.c.l.b16 %v57
  %v226 = vunpack.c.l.b16 %v58
  %v227 = vunpack.c.l.b16 %v59
  %v228 = vunpack.c.l.b16 %v60
  %v229 = vunpack.c.l.b16 %v61
  %v230 = vunpack.c.l.b16 %v62
  %v231 = vunpack.c.l.b16 %v63
  %v232 = vunpack.c.l.b16 %v64
  %v233 = vunpack.c.l.b16 %v65
  %v234 = vunpack.c.l.b16 %v66
  %v235 = vunpack.c.l.b16 %v67
  %v236 = vunpack.c.l.b16 %v68
  %v237 = vunpack.c.l.b16 %v69
  %v238 = vunpack.c.l.b16 %v70
  %v239 = vunpack.c.l.b16 %v71
  %v240 = vunpack.c.l.b16 %v72
  %v241 = vunpack.c.l.b16 %v73
  %v242 = vunpack.c.l.b16 %v74
  %v243 = vunpack.c.l.b16 %v75
  %v244 = vunpack.c.l.b16 %v76
  %v245 = vunpack.c.l.b16 %v77
  %v246 = vunpack.c.l.b16 %v78
  %v247 = vunpack.c.l.b16 %v79
  %v248 = vunpack.c.l.b16 %v80
  %v249 = vunpack.c.l.b16 %v81
  %v250 = vunpack.c.l.b16 %v82
  %v251 = vunpack.c.l.b16 %v83
  %v252 = vunpack.c.l.b16 %v84
  %v253 = vunpack.c.l.b16 %v85
  %v254 = vunpack.c.l.b16 %v86
  %v255 = vunpack.c.l.b16 %v87
  %v256 = vunpack.c.l.b16 %v88
  %v257 = vunpack.c.l.b16 %v89
  %v258 = vpack.c.b16 %v187, %v186
  %v259 = vpack.c.b16 %v189, %v188
  %v260 = vpack.c.b16 %v191, %v190
  %v261 = vpack.c.b16 %v193, %v192
  %v262 = vpack.c.b16 %v195, %v194
  %v263 = vpack.c.b16 %v197, %v196
  %v264 = vpack.c.b16 %v199, %v198
  %v265 = vpack.c.b16 %v201, %v200
  %v266 = vpack.c.b16 %v203, %v202
  %v267 = vpack.c.b16 %v205, %v204
  %v268 = vpack.c.b16 %v207, %v206
  %v269 = vpack.c.b16 %v209, %v208
  %v270 = vpack.c.b16 %v211, %v210
  %v271 = vpack.c.b16 %v213, %v212
  %v272 = vpack.c.b16 %v215, %v214
  %v273 = vpack.c.b16 %v217, %v216
  %v274 = vpack.c.b16 %v219, %v218
  %v275 = vpack.c.b16 %v221, %v220
  %v276 = vpack.c.b16 %v223, %v222
  %v277 = vpack.c.b16 %v225, %v224
  %v278 = vpack.c.b16 %v227, %v226
  %v279 = vpack.c.b16 %v229, %v228
  %v280 = vpack.c.b16 %v231, %v230
  %v281 = vpack.c.b16 %v233, %v232
  %v282 = vpack.c.b16 %v235, %v234
  %v283 = vpack.c.b16 %v237, %v236
  %v284 = vpack.c.b16 %v239, %v238
  %v285 = vpack.c.b16 %v241, %v240
  %v286 = vpack.c.b16 %v243, %v242
  %v287 = vpack.c.b16 %v245, %v244
  %v288 = vpack.c.b16 %v247, %v246
  %v289 = vpack.c.b16 %v249, %v248
  %v290 = vpack.c.b16 %v251, %v250
  %v291 = vpack.c.b16 %v253, %v252
  %v292 = vpack.c.b16 %v255, %v254
  %v293 = vpack.c.b16 %v257, %v256
  %vm330 = vcmask 523264
  %v332 = vsel %vm330, %v109, 0
  %334 = vmatprep.subr.bf16.mxu0 0
  %335 = vmatpush1.bf16.msra.mxu0 %v258
  %336 = vmatprep.subr.bf16.mxu0 0
  %337 = vmatpush1.bf16.msra.mxu0 %v259
  %338 = vmatprep.subr.bf16.mxu0 0
  %339 = vmatpush1.bf16.msra.mxu0 %v260
  %340 = vmatprep.subr.bf16.mxu0 0
  %341 = vmatpush1.bf16.msra.mxu0 %v261
  %342 = vmatprep.subr.bf16.mxu0 0
  %343 = vmatpush1.bf16.msra.mxu0 %v262
  %344 = vmatprep.subr.bf16.mxu0 0
  %345 = vmatpush1.bf16.msra.mxu0 %v263
  %346 = vmatprep.subr.bf16.mxu0 0
  %347 = vmatpush1.bf16.msra.mxu0 %v264
  %348 = vmatprep.subr.bf16.mxu0 0
  %349 = vmatpush1.bf16.msra.mxu0 %v265
  %350 = vmatprep.subr.bf16.mxu0 0
  %351 = vmatpush1.bf16.msra.mxu0 %v266
  %352 = vmatprep.subr.bf16.mxu0 0
  %353 = vmatpush1.bf16.msra.mxu0 %v267
  %354 = vmatprep.subr.bf16.mxu0 0
  %355 = vmatpush1.bf16.msra.mxu0 %v268
  %356 = vmatprep.subr.bf16.mxu0 0
  %357 = vmatpush1.bf16.msra.mxu0 %v269
  %358 = vmatprep.subr.bf16.mxu0 0
  %359 = vmatpush1.bf16.msra.mxu0 %v270
  %360 = vmatprep.subr.bf16.mxu0 0
  %361 = vmatpush1.bf16.msra.mxu0 %v271
  %362 = vmatprep.subr.bf16.mxu0 0
  %363 = vmatpush1.bf16.msra.mxu0 %v272
  %364 = vmatprep.subr.bf16.mxu0 0
  %365 = vmatpush1.bf16.msra.mxu0 %v273
  %366 = vmatprep.mubr.bf16.mxu0 %v106
  %367 = vmatmul.mubr.bf16.gmra.mrb[0].mxu0 %v105
  %v368 = vpop.f32.mrb[0].mxu0
  %v369 = vadd.f32 %v95, %v368
  %v370 = vpop.f32.mrb[0].mxu0
  %v371 = vpop.f32.mrb[0].mxu0
  %v372 = vpop.f32.mrb[0].mxu0
  %373 = vdwg.mxu0
  %374 = vmatprep.subr.bf16.mxu0 0
  %375 = vmatpush1.bf16.msra.mxu0 %v274
  %376 = vmatprep.subr.bf16.mxu0 0
  %377 = vmatpush1.bf16.msra.mxu0 %v275
  %378 = vmatprep.subr.bf16.mxu0 0
  %379 = vmatpush1.bf16.msra.mxu0 %v276
  %380 = vmatprep.subr.bf16.mxu0 0
  %381 = vmatpush1.bf16.msra.mxu0 %v277
  %382 = vmatprep.subr.bf16.mxu0 0
  %383 = vmatpush1.bf16.msra.mxu0 %v278
  %384 = vmatprep.subr.bf16.mxu0 0
  %385 = vmatpush1.bf16.msra.mxu0 %v279
  %386 = vmatprep.subr.bf16.mxu0 0
  %387 = vmatpush1.bf16.msra.mxu0 %v280
  %388 = vmatprep.subr.bf16.mxu0 0
  %389 = vmatpush1.bf16.msra.mxu0 %v281
  %390 = vmatprep.subr.bf16.mxu0 0
  %391 = vmatpush1.bf16.msra.mxu0 %v282
  %392 = vmatprep.subr.bf16.mxu0 0
  %393 = vmatpush1.bf16.msra.mxu0 %v283
  %394 = vmatprep.subr.bf16.mxu0 0
  %395 = vmatpush1.bf16.msra.mxu0 %v284
  %396 = vmatprep.subr.bf16.mxu0 0
  %397 = vmatpush1.bf16.msra.mxu0 %v285
  %398 = vmatprep.subr.bf16.mxu0 0
  %399 = vmatpush1.bf16.msra.mxu0 %v286
  %400 = vmatprep.subr.bf16.mxu0 0
  %401 = vmatpush1.bf16.msra.mxu0 %v287
  %402 = vmatprep.subr.bf16.mxu0 0
  %403 = vmatpush1.bf16.msra.mxu0 %v288
  %404 = vmatprep.subr.bf16.mxu0 0
  %405 = vmatpush1.bf16.msra.mxu0 %v289
  %406 = vmatprep.mubr.bf16.mxu0 %v108
  %407 = vmatmul.mubr.bf16.gmra.mrb[0].mxu0 %v107
  %v408 = vpop.f32.mrb[0].mxu0
  %v409 = vadd.f32 %v369, %v408
  %v410 = vpop.f32.mrb[0].mxu0
  %v411 = vpop.f32.mrb[0].mxu0
  %v412 = vpop.f32.mrb[0].mxu0
  %413 = vdwg.mxu0
  %414 = vmatprep.subr.bf16.mxu0 0
  %415 = vmatpush1.bf16.msra.mxu0 %v290
  %416 = vmatprep.subr.bf16.mxu0 0
  %417 = vmatpush1.bf16.msra.mxu0 %v291
  %418 = vmatprep.subr.bf16.mxu0 0
  %419 = vmatpush1.bf16.msra.mxu0 %v292
  %420 = vmatprep.subr.bf16.mxu0 0
  %421 = vmatpush1.bf16.msra.mxu0 %v293
  %422 = vmatprep.subr.bf16.mxu0 0
  %423 = vmatpush1.bf16.msra.mxu0 0
  %424 = vmatprep.subr.bf16.mxu0 0
  %425 = vmatpush1.bf16.msra.mxu0 0
  %426 = vmatprep.subr.bf16.mxu0 0
  %427 = vmatpush1.bf16.msra.mxu0 0
  %428 = vmatprep.subr.bf16.mxu0 0
  %429 = vmatpush1.bf16.msra.mxu0 0
  %430 = vmatprep.subr.bf16.mxu0 0
  %431 = vmatpush1.bf16.msra.mxu0 0
  %432 = vmatprep.subr.bf16.mxu0 0
  %433 = vmatpush1.bf16.msra.mxu0 0
  %434 = vmatprep.subr.bf16.mxu0 0
  %435 = vmatpush1.bf16.msra.mxu0 0
  %436 = vmatprep.subr.bf16.mxu0 0
  %437 = vmatpush1.bf16.msra.mxu0 0
  %438 = vmatprep.subr.bf16.mxu0 0
  %439 = vmatpush1.bf16.msra.mxu0 0
  %440 = vmatprep.subr.bf16.mxu0 0
  %441 = vmatpush1.bf16.msra.mxu0 0
  %442 = vmatprep.subr.bf16.mxu0 0
  %443 = vmatpush1.bf16.msra.mxu0 0
  %444 = vmatprep.subr.bf16.mxu0 0
  %445 = vmatpush1.bf16.msra.mxu0 0
  %446 = vmatprep.mubr.bf16.mxu0 0
  %447 = vmatmul.mubr.bf16.gmra.mrb[0].mxu0 %v332
  %v448 = vpop.f32.mrb[0].mxu0
  %v449 = vadd.f32 %v409, %v448
  %v450 = vpop.f32.mrb[0].mxu0
  %v451 = vpop.f32.mrb[0].mxu0
  %v452 = vpop.f32.mrb[0].mxu0
  %453 = vdwg.mxu0
  %v454 = vxor.u32 %v449, 2147483648
  %v455 = vmul.f32 %v454, 1.442695
  %v456 = vpow.pop %v455
  %v457 = vadd.f32 %v456, 1.0
  %v458 = vrcp.pop %v457
  %v459 = vmul.f32 1.0, %v458
  %v460 = vmul.f32 %v449, %v459
  %v461 = vpack.c.bf16 %v460, %v460
  %462 = vst [vmem:[%s3] sm:$0xf] %v461
  // Predicated region
  $region14: #{model_forward.12} parent=0 // pred_check
    _
  $region15: #{model_forward.12} parent=0 // pred_check_branch
    %464 = sbr.rel (0) target = $region17
  $region16: #{model_forward.12} parent=0 // pred_region
    _
  $region17: #{model_forward.12} parent=0 // pred_fallthru
    _
  // Predicated region
  $region18: #{model_forward.12} parent=0 // pred_check
    _
  $region19: #{model_forward.12} parent=0 // pred_check_branch
    %466 = sbr.rel (0) target = $region21
  $region20: #{model_forward.12} parent=0 // pred_region
    _
  $region21: #{model_forward.12} parent=0 // pred_fallthru
    _

// kernel: model_forward.15
$region0: #{model_forward.15}
  #allocation0 [shape = 'u32[]', space=smem, size = 0x4, offset = 0x4, fixed_abs, tag = 'smem constant byte address 0x4 - core index']
  #allocation1 [shape = 'u32[144,128]{1,0:T(1,128)}', space=vmem, size = 0x12000, scoped, tag = 'internal scratch']
  %s0 = inlined_call_operand.vmem [shape: bf16[8,64], index: 0, kind: input, shape index: {}]
  %s1 = inlined_call_operand.vmem [shape: bf16[64,128], index: 1, kind: input, shape index: {}]
  %s2 = inlined_call_operand.vmem [shape: f32[1,128], index: 2, kind: input, shape index: {}]
  %s3 = inlined_call_operand.vmem [shape: f32[8,1], index: 3, kind: input, shape index: {}]
  %s4 = inlined_call_operand.vmem [shape: f32[8,1], index: 4, kind: input, shape index: {}]
  %s5 = inlined_call_operand.vmem [shape: f32[1,128], index: 5, kind: input, shape index: {}]
  %s6 = inlined_call_operand.vmem [shape: f32[1,128], index: 6, kind: input, shape index: {}]
  %s7 = inlined_call_operand.vmem [shape: f32[1,128], index: 7, kind: input, shape index: {}]
  %s8 = inlined_call_operand.vmem [shape: f32[1,128], index: 8, kind: input, shape index: {}]
  %s9 = inlined_call_operand.vmem [shape: f32[8,128], index: 9, kind: output, shape index: {0}]
  %s10 = inlined_call_operand.vmem [shape: f32[8,128], index: 10, kind: output, shape index: {1}]
  %11 = xla_tuple %s9, %s10
  %s12 = sld [smem:[#allocation0]]
  $region54: #{model_forward.15} parent=0
    _
  %s14 = ssub.s32 1, %s12
  %s15 = scalar_select 0, %s14, %s12
  // Predicated region
  $region2: #{model_forward.15} parent=0 // pred_check
    _
  $region3: #{model_forward.15} parent=0 // pred_check_branch
    %17 = sbr.rel (0) target = $region5
  $region4: #{model_forward.15} parent=0 // pred_region
    _
  $region5: #{model_forward.15} parent=0 // pred_fallthru
    _
  // Predicated region
  $region6: #{model_forward.15} parent=0 // pred_check
    _
  $region7: #{model_forward.15} parent=0 // pred_check_branch
    %19 = sbr.rel (0) target = $region9
  $region8: #{model_forward.15} parent=0 // pred_region
    _
  $region9: #{model_forward.15} parent=0 // pred_fallthru
    _
  // Predicated region
  $region10: #{model_forward.15} parent=0 // pred_check
    _
  $region11: #{model_forward.15} parent=0 // pred_check_branch
    %21 = sbr.rel (0) target = $region13
  $region12: #{model_forward.15} parent=0 // pred_region
    _
  $region13: #{model_forward.15} parent=0 // pred_fallthru
    _
  // Predicated region
  $region14: #{model_forward.15} parent=0 // pred_check
    _
  $region15: #{model_forward.15} parent=0 // pred_check_branch
    %23 = sbr.rel (0) target = $region17
  $region16: #{model_forward.15} parent=0 // pred_region
    _
  $region17: #{model_forward.15} parent=0 // pred_fallthru
    _
  // Predicated region
  $region18: #{model_forward.15} parent=0 // pred_check
    _
  $region19: #{model_forward.15} parent=0 // pred_check_branch
    %25 = sbr.rel (0) target = $region21
  $region20: #{model_forward.15} parent=0 // pred_region
    _
  $region21: #{model_forward.15} parent=0 // pred_fallthru
    _
  // Predicated region
  $region22: #{model_forward.15} parent=0 // pred_check
    _
  $region23: #{model_forward.15} parent=0 // pred_check_branch
    %27 = sbr.rel (0) target = $region25
  $region24: #{model_forward.15} parent=0 // pred_region
    _
  $region25: #{model_forward.15} parent=0 // pred_fallthru
    _
  // Predicated region
  $region26: #{model_forward.15} parent=0 // pred_check
    _
  $region27: #{model_forward.15} parent=0 // pred_check_branch
    %29 = sbr.rel (0) target = $region29
  $region28: #{model_forward.15} parent=0 // pred_region
    _
  $region29: #{model_forward.15} parent=0 // pred_fallthru
    _
  // Predicated region
  $region30: #{model_forward.15} parent=0 // pred_check
    _
  $region31: #{model_forward.15} parent=0 // pred_check_branch
    %31 = sbr.rel (0) target = $region33
  $region32: #{model_forward.15} parent=0 // pred_region
    _
  $region33: #{model_forward.15} parent=0 // pred_fallthru
    _
  // Predicated region
  $region34: #{model_forward.15} parent=0 // pred_check
    _
  $region35: #{model_forward.15} parent=0 // pred_check_branch
    %33 = sbr.rel (0) target = $region37
  $region36: #{model_forward.15} parent=0 // pred_region
    _
  $region37: #{model_forward.15} parent=0 // pred_fallthru
    _
  %v35 = vld [vmem:[%s0] sm:$0xf]
  %v36 = vld [vmem:[%s1] sm:$0xf]
  %v37 = vld [vmem:[%s1 + $0x4] sm:$0xf]
  %v38 = vld [vmem:[%s1 + $0x8] sm:$0xf]
  %v39 = vld [vmem:[%s1 + $0xc] sm:$0xf]
  %v40 = vld [vmem:[%s1 + $0x10] sm:$0xf]
  %v41 = vld [vmem:[%s1 + $0x14] sm:$0xf]
  %v42 = vld [vmem:[%s1 + $0x18] sm:$0xf]
  %v43 = vld [vmem:[%s1 + $0x1c] sm:$0xf]
  %v44 = vld [vmem:[%s2] sm:$0x1]
  %v46 = vlaneseq
  %v47 = vshrl.u32 %v46, 7
  %v48 = vsub.s32 0, %v47
  %v49 = vrot.slane %v44, %v48
  %v59 = vunpack.c.l.b16 %v36
  %v60 = vunpack.c.l.b16 %v37
  %v61 = vunpack.c.l.b16 %v38
  %v62 = vunpack.c.l.b16 %v39
  %v63 = vunpack.c.l.b16 %v40
  %v64 = vunpack.c.l.b16 %v41
  %v65 = vunpack.c.l.b16 %v42
  %v66 = vunpack.c.l.b16 %v43
  %v67 = vpack.c.b16 %v60, %v59
  %v68 = vpack.c.b16 %v62, %v61
  %v69 = vpack.c.b16 %v64, %v63
  %v70 = vpack.c.b16 %v66, %v65
  %vm75 = vcmask 523264
  %v77 = vsel %vm75, %v35, 0
  %79 = vmatprep.subr.bf16.mxu0 0
  %80 = vmatpush1.bf16.msra.mxu0 %v67
  %81 = vmatprep.subr.bf16.mxu0 0
  %82 = vmatpush1.bf16.msra.mxu0 %v68
  %83 = vmatprep.subr.bf16.mxu0 0
  %84 = vmatpush1.bf16.msra.mxu0 %v69
  %85 = vmatprep.subr.bf16.mxu0 0
  %86 = vmatpush1.bf16.msra.mxu0 %v70
  %87 = vmatprep.subr.bf16.mxu0 0
  %88 = vmatpush1.bf16.msra.mxu0 0
  %89 = vmatprep.subr.bf16.mxu0 0
  %90 = vmatpush1.bf16.msra.mxu0 0
  %91 = vmatprep.subr.bf16.mxu0 0
  %92 = vmatpush1.bf16.msra.mxu0 0
  %93 = vmatprep.subr.bf16.mxu0 0
  %94 = vmatpush1.bf16.msra.mxu0 0
  %95 = vmatprep.subr.bf16.mxu0 0
  %96 = vmatpush1.bf16.msra.mxu0 0
  %97 = vmatprep.subr.bf16.mxu0 0
  %98 = vmatpush1.bf16.msra.mxu0 0
  %99 = vmatprep.subr.bf16.mxu0 0
  %100 = vmatpush1.bf16.msra.mxu0 0
  %101 = vmatprep.subr.bf16.mxu0 0
  %102 = vmatpush1.bf16.msra.mxu0 0
  %103 = vmatprep.subr.bf16.mxu0 0
  %104 = vmatpush1.bf16.msra.mxu0 0
  %105 = vmatprep.subr.bf16.mxu0 0
  %106 = vmatpush1.bf16.msra.mxu0 0
  %107 = vmatprep.subr.bf16.mxu0 0
  %108 = vmatpush1.bf16.msra.mxu0 0
  %109 = vmatprep.subr.bf16.mxu0 0
  %110 = vmatpush1.bf16.msra.mxu0 0
  %111 = vmatprep.mubr.bf16.mxu0 0
  %112 = vmatmul.mubr.bf16.gmra.mrb[0].mxu0 %v77
  %v113 = vpop.f32.mrb[0].mxu0
  %v114 = vadd.f32 %v49, %v113
  %v115 = vpop.f32.mrb[0].mxu0
  %v116 = vpop.f32.mrb[0].mxu0
  %v117 = vpop.f32.mrb[0].mxu0
  %118 = vdwg.mxu0
  %119 = vst [vmem:[%s9] sm:$0xff] %v114
  %v120 = vxor.u32 %v114, 2147483648
  %v121 = vmul.f32 %v120, 1.442695
  %v122 = vpow.pop %v121
  %v123 = vadd.f32 %v122, 1.0
  %v124 = vrcp.pop %v123
  %v125 = vmul.f32 1.0, %v124
  %v126 = vld [vmem:[%s5] sm:$0x1]
  %v127 = vld [vmem:[%s6] sm:$0x1]
  %v128 = vld [vmem:[%s7] sm:$0x1]
  %v129 = vld [vmem:[%s8] sm:$0x1]
  %v130 = vadd.f32 %v126, %v127
  %v131 = vld [vmem:[%s3] sm:$0xff]
  %v133 = vlaneseq
  %v134 = vshrl.u32 %v133, 7
  %v135 = vsub.s32 0, %v134
  %v136 = vrot.slane %v126, %v135
  %139 = vset.pattern.permute.xlu0 0
  %140 = vperm.xlu0 %139, %v131
  %v141 = vpop.permute.xlu0 %140
  %v143 = vmul.f32 %v136, %v141
  %v144 = vld [vmem:[%s4] sm:$0xff]
  %v146 = vlaneseq
  %v147 = vshrl.u32 %v146, 7
  %v148 = vsub.s32 0, %v147
  %v149 = vrot.slane %v127, %v148
  %152 = vset.pattern.permute.xlu0 0
  %153 = vperm.xlu0 %152, %v144
  %v154 = vpop.permute.xlu0 %153
  %v156 = vmul.f32 %v149, %v154
  %v157 = vadd.f32 %v143, %v156
  %v158 = vmul.f32 %v125, 2.0
  %v159 = vsub.f32 %v158, 0.5
  %v160 = vadd.f32 %v159, %v157
  %v161 = vmul.f32 %v160, 32.0
  %v162 = vmul.f32 %v158, %v158
  %v164 = vlaneseq
  %v165 = vshrl.u32 %v164, 7
  %v166 = vsub.s32 0, %v165
  %v167 = vrot.slane %v129, %v166
  %v169 = vmul.f32 %v162, %v167
  %v171 = vlaneseq
  %v172 = vshrl.u32 %v171, 7
  %v173 = vsub.s32 0, %v172
  %v174 = vrot.slane %v130, %v173
  %v176 = vmul.f32 %v174, %v161
  %v178 = vlaneseq
  %v179 = vshrl.u32 %v178, 7
  %v180 = vsub.s32 0, %v179
  %v181 = vrot.slane %v128, %v180
  %v183 = vmul.f32 %v181, %v169
  %v184 = vadd.f32 %v176, %v183
  %v185 = vsub.f32 1.0, %v130
  %v186 = vsub.f32 %v185, %v128
  %v188 = vlaneseq
  %v189 = vshrl.u32 %v188, 7
  %v190 = vsub.s32 0, %v189
  %v191 = vrot.slane %v186, %v190
  %v193 = vmul.f32 %v191, %v125
  %v194 = vadd.f32 %v184, %v193
  %195 = vst [vmem:[%s10] sm:$0xff] %v194
  // Predicated region
  $region38: #{model_forward.15} parent=0 // pred_check
    _
  $region39: #{model_forward.15} parent=0 // pred_check_branch
    %197 = sbr.rel (0) target = $region41
  $region40: #{model_forward.15} parent=0 // pred_region
    _
  $region41: #{model_forward.15} parent=0 // pred_fallthru
    _
  // Predicated region
  $region42: #{model_forward.15} parent=0 // pred_check
    _
  $region43: #{model_forward.15} parent=0 // pred_check_branch
    %199 = sbr.rel (0) target = $region45
  $region44: #{model_forward.15} parent=0 // pred_region
    _
  $region45: #{model_forward.15} parent=0 // pred_fallthru
    _
  // Predicated region
  $region46: #{model_forward.15} parent=0 // pred_check
    _
  $region47: #{model_forward.15} parent=0 // pred_check_branch
    %201 = sbr.rel (0) target = $region49
  $region48: #{model_forward.15} parent=0 // pred_region
    _
  $region49: #{model_forward.15} parent=0 // pred_fallthru
    _
  // Predicated region
  $region50: #{model_forward.15} parent=0 // pred_check
    _
  $region51: #{model_forward.15} parent=0 // pred_check_branch
    %203 = sbr.rel (0) target = $region53
  $region52: #{model_forward.15} parent=0 // pred_region
    _
  $region53: #{model_forward.15} parent=0 // pred_fallthru
    _

// kernel: model_forward.13
$region0: #{model_forward.13}
  #allocation0 [shape = 'u32[]', space=smem, size = 0x4, offset = 0x4, fixed_abs, tag = 'smem constant byte address 0x4 - core index']
  #allocation1 [shape = 'u32[144,128]{1,0:T(1,128)}', space=vmem, size = 0x12000, scoped, tag = 'internal scratch']
  %s0 = inlined_call_operand.vmem [shape: bf16[128,32], index: 0, kind: input, shape index: {}]
  %s1 = inlined_call_operand.vmem [shape: bf16[32,128], index: 1, kind: input, shape index: {}]
  %s2 = inlined_call_operand.vmem [shape: f32[1,128], index: 2, kind: input, shape index: {}]
  %s3 = inlined_call_operand.vmem [shape: f32[128,1], index: 3, kind: input, shape index: {}]
  %s4 = inlined_call_operand.vmem [shape: f32[128,1], index: 4, kind: input, shape index: {}]
  %s5 = inlined_call_operand.vmem [shape: f32[1,128], index: 5, kind: input, shape index: {}]
  %s6 = inlined_call_operand.vmem [shape: f32[1,128], index: 6, kind: input, shape index: {}]
  %s7 = inlined_call_operand.vmem [shape: f32[1,128], index: 7, kind: input, shape index: {}]
  %s8 = inlined_call_operand.vmem [shape: f32[1,128], index: 8, kind: input, shape index: {}]
  %s9 = inlined_call_operand.vmem [shape: f32[128,128], index: 9, kind: output, shape index: {0}]
  %s10 = inlined_call_operand.vmem [shape: f32[128,128], index: 10, kind: output, shape index: {1}]
  %11 = xla_tuple %s9, %s10
  %s12 = sld [smem:[#allocation0]]
  $region54: #{model_forward.13} parent=0
    _
  %s14 = ssub.s32 1, %s12
  %s15 = scalar_select 0, %s14, %s12
  // Predicated region
  $region2: #{model_forward.13} parent=0 // pred_check
    _
  $region3: #{model_forward.13} parent=0 // pred_check_branch
    %17 = sbr.rel (0) target = $region5
  $region4: #{model_forward.13} parent=0 // pred_region
    _
  $region5: #{model_forward.13} parent=0 // pred_fallthru
    _
  // Predicated region
  $region6: #{model_forward.13} parent=0 // pred_check
    _
  $region7: #{model_forward.13} parent=0 // pred_check_branch
    %19 = sbr.rel (0) target = $region9
  $region8: #{model_forward.13} parent=0 // pred_region
    _
  $region9: #{model_forward.13} parent=0 // pred_fallthru
    _
  // Predicated region
  $region10: #{model_forward.13} parent=0 // pred_check
    _
  $region11: #{model_forward.13} parent=0 // pred_check_branch
    %21 = sbr.rel (0) target = $region13
  $region12: #{model_forward.13} parent=0 // pred_region
    _
  $region13: #{model_forward.13} parent=0 // pred_fallthru
    _
  // Predicated region
  $region14: #{model_forward.13} parent=0 // pred_check
    _
  $region15: #{model_forward.13} parent=0 // pred_check_branch
    %23 = sbr.rel (0) target = $region17
  $region16: #{model_forward.13} parent=0 // pred_region
    _
  $region17: #{model_forward.13} parent=0 // pred_fallthru
    _
  // Predicated region
  $region18: #{model_forward.13} parent=0 // pred_check
    _
  $region19: #{model_forward.13} parent=0 // pred_check_branch
    %25 = sbr.rel (0) target = $region21
  $region20: #{model_forward.13} parent=0 // pred_region
    _
  $region21: #{model_forward.13} parent=0 // pred_fallthru
    _
  // Predicated region
  $region22: #{model_forward.13} parent=0 // pred_check
    _
  $region23: #{model_forward.13} parent=0 // pred_check_branch
    %27 = sbr.rel (0) target = $region25
  $region24: #{model_forward.13} parent=0 // pred_region
    _
  $region25: #{model_forward.13} parent=0 // pred_fallthru
    _
  // Predicated region
  $region26: #{model_forward.13} parent=0 // pred_check
    _
  $region27: #{model_forward.13} parent=0 // pred_check_branch
    %29 = sbr.rel (0) target = $region29
  $region28: #{model_forward.13} parent=0 // pred_region
    _
  $region29: #{model_forward.13} parent=0 // pred_fallthru
    _
  // Predicated region
  $region30: #{model_forward.13} parent=0 // pred_check
    _
  $region31: #{model_forward.13} parent=0 // pred_check_branch
    %31 = sbr.rel (0) target = $region33
  $region32: #{model_forward.13} parent=0 // pred_region
    _
  $region33: #{model_forward.13} parent=0 // pred_fallthru
    _
  // Predicated region
  $region34: #{model_forward.13} parent=0 // pred_check
    _
  $region35: #{model_forward.13} parent=0 // pred_check_branch
    %33 = sbr.rel (0) target = $region37
  $region36: #{model_forward.13} parent=0 // pred_region
    _
  $region37: #{model_forward.13} parent=0 // pred_fallthru
    _
  %v35 = vld [vmem:[%s0] sm:$0xf]
  %v36 = vld [vmem:[%s0 + $0x4] sm:$0xf]
  %v37 = vld [vmem:[%s0 + $0x8] sm:$0xf]
  %v38 = vld [vmem:[%s0 + $0xc] sm:$0xf]
  %v39 = vld [vmem:[%s0 + $0x10] sm:$0xf]
  %v40 = vld [vmem:[%s0 + $0x14] sm:$0xf]
  %v41 = vld [vmem:[%s0 + $0x18] sm:$0xf]
  %v42 = vld [vmem:[%s0 + $0x1c] sm:$0xf]
  %v43 = vld [vmem:[%s0 + $0x20] sm:$0xf]
  %v44 = vld [vmem:[%s0 + $0x24] sm:$0xf]
  %v45 = vld [vmem:[%s0 + $0x28] sm:$0xf]
  %v46 = vld [vmem:[%s0 + $0x2c] sm:$0xf]
  %v47 = vld [vmem:[%s0 + $0x30] sm:$0xf]
  %v48 = vld [vmem:[%s0 + $0x34] sm:$0xf]
  %v49 = vld [vmem:[%s0 + $0x38] sm:$0xf]
  %v50 = vld [vmem:[%s0 + $0x3c] sm:$0xf]
  %v51 = vld [vmem:[%s1] sm:$0xf]
  %v52 = vld [vmem:[%s1 + $0x4] sm:$0xf]
  %v53 = vld [vmem:[%s1 + $0x8] sm:$0xf]
  %v54 = vld [vmem:[%s1 + $0xc] sm:$0xf]
  %v55 = vld [vmem:[%s2] sm:$0x1]
  %v57 = vlaneseq
  %v58 = vshrl.u32 %v57, 7
  %v59 = vsub.s32 0, %v58
  %v60 = vrot.slane %v55, %v59
  %v78 = vunpack.c.l.b16 %v35
  %v79 = vunpack.c.l.b16 %v36
  %v80 = vunpack.c.l.b16 %v37
  %v81 = vunpack.c.l.b16 %v38
  %v82 = vunpack.c.l.b16 %v39
  %v83 = vunpack.c.l.b16 %v40
  %v84 = vunpack.c.l.b16 %v41
  %v85 = vunpack.c.l.b16 %v42
  %v86 = vunpack.c.l.b16 %v43
  %v87 = vunpack.c.l.b16 %v44
  %v88 = vunpack.c.l.b16 %v45
  %v89 = vunpack.c.l.b16 %v46
  %v90 = vunpack.c.l.b16 %v47
  %v91 = vunpack.c.l.b16 %v48
  %v92 = vunpack.c.l.b16 %v49
  %v93 = vunpack.c.l.b16 %v50
  %v94 = vpack.c.b16 %v79, %v78
  %v95 = vpack.c.b16 %v81, %v80
  %v96 = vpack.c.b16 %v83, %v82
  %v97 = vpack.c.b16 %v85, %v84
  %v98 = vpack.c.b16 %v87, %v86
  %v99 = vpack.c.b16 %v89, %v88
  %v100 = vpack.c.b16 %v91, %v90
  %v101 = vpack.c.b16 %v93, %v92
  %v106 = vunpack.c.l.b16 %v51
  %v107 = vunpack.c.l.b16 %v52
  %v108 = vunpack.c.l.b16 %v53
  %v109 = vunpack.c.l.b16 %v54
  %v110 = vpack.c.b16 %v107, %v106
  %v111 = vpack.c.b16 %v109, %v108
  %vm114 = vcmask 261120
  %v116 = vsel %vm114, %v94, 0
  %v119 = vsel %vm114, %v95, 0
  %v122 = vsel %vm114, %v96, 0
  %v125 = vsel %vm114, %v97, 0
  %v128 = vsel %vm114, %v98, 0
  %v131 = vsel %vm114, %v99, 0
  %v134 = vsel %vm114, %v100, 0
  %v137 = vsel %vm114, %v101, 0
  %139 = vmatprep.subr.bf16.mxu0 0
  %140 = vmatpush1.bf16.msra.mxu0 %v110
  %141 = vmatprep.subr.bf16.mxu0 0
  %142 = vmatpush1.bf16.msra.mxu0 %v111
  %143 = vmatprep.subr.bf16.mxu0 0
  %144 = vmatpush1.bf16.msra.mxu0 0
  %145 = vmatprep.subr.bf16.mxu0 0
  %146 = vmatpush1.bf16.msra.mxu0 0
  %147 = vmatprep.subr.bf16.mxu0 0
  %148 = vmatpush1.bf16.msra.mxu0 0
  %149 = vmatprep.subr.bf16.mxu0 0
  %150 = vmatpush1.bf16.msra.mxu0 0
  %151 = vmatprep.subr.bf16.mxu0 0
  %152 = vmatpush1.bf16.msra.mxu0 0
  %153 = vmatprep.subr.bf16.mxu0 0
  %154 = vmatpush1.bf16.msra.mxu0 0
  %155 = vmatprep.subr.bf16.mxu0 0
  %156 = vmatpush1.bf16.msra.mxu0 0
  %157 = vmatprep.subr.bf16.mxu0 0
  %158 = vmatpush1.bf16.msra.mxu0 0
  %159 = vmatprep.subr.bf16.mxu0 0
  %160 = vmatpush1.bf16.msra.mxu0 0
  %161 = vmatprep.subr.bf16.mxu0 0
  %162 = vmatpush1.bf16.msra.mxu0 0
  %163 = vmatprep.subr.bf16.mxu0 0
  %164 = vmatpush1.bf16.msra.mxu0 0
  %165 = vmatprep.subr.bf16.mxu0 0
  %166 = vmatpush1.bf16.msra.mxu0 0
  %167 = vmatprep.subr.bf16.mxu0 0
  %168 = vmatpush1.bf16.msra.mxu0 0
  %169 = vmatprep.subr.bf16.mxu0 0
  %170 = vmatpush1.bf16.msra.mxu0 0
  %171 = vmatprep.mubr.bf16.mxu0 0
  %172 = vmatmul.mubr.bf16.gmra.mrb[0].mxu0 %v116
  %v173 = vpop.f32.mrb[0].mxu0
  %v174 = vadd.f32 %v60, %v173
  %v175 = vpop.f32.mrb[0].mxu0
  %v176 = vpop.f32.mrb[0].mxu0
  %v177 = vadd.f32 %v60, %v176
  %v178 = vpop.f32.mrb[0].mxu0
  %179 = vmatprep.mubr.bf16.mxu0 0
  %180 = vmatmul.mubr.bf16.gmra.mrb[0].mxu0 %v119
  %v181 = vpop.f32.mrb[0].mxu0
  %v182 = vadd.f32 %v60, %v181
  %v183 = vpop.f32.mrb[0].mxu0
  %v184 = vpop.f32.mrb[0].mxu0
  %v185 = vadd.f32 %v60, %v184
  %v186 = vpop.f32.mrb[0].mxu0
  %187 = vmatprep.mubr.bf16.mxu0 0
  %188 = vmatmul.mubr.bf16.gmra.mrb[0].mxu0 %v122
  %v189 = vpop.f32.mrb[0].mxu0
  %v190 = vadd.f32 %v60, %v189
  %v191 = vpop.f32.mrb[0].mxu0
  %v192 = vpop.f32.mrb[0].mxu0
  %v193 = vadd.f32 %v60, %v192
  %v194 = vpop.f32.mrb[0].mxu0
  %195 = vmatprep.mubr.bf16.mxu0 0
  %196 = vmatmul.mubr.bf16.gmra.mrb[0].mxu0 %v125
  %v197 = vpop.f32.mrb[0].mxu0
  %v198 = vadd.f32 %v60, %v197
  %v199 = vpop.f32.mrb[0].mxu0
  %v200 = vpop.f32.mrb[0].mxu0
  %v201 = vadd.f32 %v60, %v200
  %v202 = vpop.f32.mrb[0].mxu0
  %203 = vmatprep.mubr.bf16.mxu0 0
  %204 = vmatmul.mubr.bf16.gmra.mrb[0].mxu0 %v128
  %v205 = vpop.f32.mrb[0].mxu0
  %v206 = vadd.f32 %v60, %v205
  %v207 = vpop.f32.mrb[0].mxu0
  %v208 = vpop.f32.mrb[0].mxu0
  %v209 = vadd.f32 %v60, %v208
  %v210 = vpop.f32.mrb[0].mxu0
  %211 = vmatprep.mubr.bf16.mxu0 0
  %212 = vmatmul.mubr.bf16.gmra.mrb[0].mxu0 %v131
  %v213 = vpop.f32.mrb[0].mxu0
  %v214 = vadd.f32 %v60, %v213
  %v215 = vpop.f32.mrb[0].mxu0
  %v216 = vpop.f32.mrb[0].mxu0
  %v217 = vadd.f32 %v60, %v216
  %v218 = vpop.f32.mrb[0].mxu0
  %219 = vmatprep.mubr.bf16.mxu0 0
  %220 = vmatmul.mubr.bf16.gmra.mrb[0].mxu0 %v134
  %v221 = vpop.f32.mrb[0].mxu0
  %v222 = vadd.f32 %v60, %v221
  %v223 = vpop.f32.mrb[0].mxu0
  %v224 = vpop.f32.mrb[0].mxu0
  %v225 = vadd.f32 %v60, %v224
  %v226 = vpop.f32.mrb[0].mxu0
  %227 = vmatprep.mubr.bf16.mxu0 0
  %228 = vmatmul.mubr.bf16.gmra.mrb[0].mxu0 %v137
  %v229 = vpop.f32.mrb[0].mxu0
  %v230 = vadd.f32 %v60, %v229
  %v231 = vpop.f32.mrb[0].mxu0
  %v232 = vpop.f32.mrb[0].mxu0
  %v233 = vadd.f32 %v60, %v232
  %v234 = vpop.f32.mrb[0].mxu0
  %235 = vdwg.mxu0
  %236 = vst [vmem:[%s9] sm:$0xff] %v174
  %237 = vst [vmem:[%s9 + $0x8] sm:$0xff] %v177
  %238 = vst [vmem:[%s9 + $0x10] sm:$0xff] %v182
  %239 = vst [vmem:[%s9 + $0x18] sm:$0xff] %v185
  %240 = vst [vmem:[%s9 + $0x20] sm:$0xff] %v190
  %241 = vst [vmem:[%s9 + $0x28] sm:$0xff] %v193
  %242 = vst [vmem:[%s9 + $0x30] sm:$0xff] %v198
  %243 = vst [vmem:[%s9 + $0x38] sm:$0xff] %v201
  %244 = vst [vmem:[%s9 + $0x40] sm:$0xff] %v206
  %245 = vst [vmem:[%s9 + $0x48] sm:$0xff] %v209
  %246 = vst [vmem:[%s9 + $0x50] sm:$0xff] %v214
  %247 = vst [vmem:[%s9 + $0x58] sm:$0xff] %v217
  %248 = vst [vmem:[%s9 + $0x60] sm:$0xff] %v222
  %249 = vst [vmem:[%s9 + $0x68] sm:$0xff] %v225
  %250 = vst [vmem:[%s9 + $0x70] sm:$0xff] %v230
  %251 = vst [vmem:[%s9 + $0x78] sm:$0xff] %v233
  %v252 = vxor.u32 %v174, 2147483648
  %v253 = vxor.u32 %v177, 2147483648
  %v254 = vxor.u32 %v182, 2147483648
  %v255 = vxor.u32 %v185, 2147483648
  %v256 = vxor.u32 %v190, 2147483648
  %v257 = vxor.u32 %v193, 2147483648
  %v258 = vxor.u32 %v198, 2147483648
  %v259 = vxor.u32 %v201, 2147483648
  %v260 = vxor.u32 %v206, 2147483648
  %v261 = vxor.u32 %v209, 2147483648
  %v262 = vxor.u32 %v214, 2147483648
  %v263 = vxor.u32 %v217, 2147483648
  %v264 = vxor.u32 %v222, 2147483648
  %v265 = vxor.u32 %v225, 2147483648
  %v266 = vxor.u32 %v230, 2147483648
  %v267 = vxor.u32 %v233, 2147483648
  %v268 = vmul.f32 %v252, 1.442695
  %v269 = vpow.pop %v268
  %v270 = vmul.f32 %v253, 1.442695
  %v271 = vpow.pop %v270
  %v272 = vmul.f32 %v254, 1.442695
  %v273 = vpow.pop %v272
  %v274 = vmul.f32 %v255, 1.442695
  %v275 = vpow.pop %v274
  %v276 = vmul.f32 %v256, 1.442695
  %v277 = vpow.pop %v276
  %v278 = vmul.f32 %v257, 1.442695
  %v279 = vpow.pop %v278
  %v280 = vmul.f32 %v258, 1.442695
  %v281 = vpow.pop %v280
  %v282 = vmul.f32 %v259, 1.442695
  %v283 = vpow.pop %v282
  %v284 = vmul.f32 %v260, 1.442695
  %v285 = vpow.pop %v284
  %v286 = vmul.f32 %v261, 1.442695
  %v287 = vpow.pop %v286
  %v288 = vmul.f32 %v262, 1.442695
  %v289 = vpow.pop %v288
  %v290 = vmul.f32 %v263, 1.442695
  %v291 = vpow.pop %v290
  %v292 = vmul.f32 %v264, 1.442695
  %v293 = vpow.pop %v292
  %v294 = vmul.f32 %v265, 1.442695
  %v295 = vpow.pop %v294
  %v296 = vmul.f32 %v266, 1.442695
  %v297 = vpow.pop %v296
  %v298 = vmul.f32 %v267, 1.442695
  %v299 = vpow.pop %v298
  %v300 = vadd.f32 %v269, 1.0
  %v301 = vadd.f32 %v271, 1.0
  %v302 = vadd.f32 %v273, 1.0
  %v303 = vadd.f32 %v275, 1.0
  %v304 = vadd.f32 %v277, 1.0
  %v305 = vadd.f32 %v279, 1.0
  %v306 = vadd.f32 %v281, 1.0
  %v307 = vadd.f32 %v283, 1.0
  %v308 = vadd.f32 %v285, 1.0
  %v309 = vadd.f32 %v287, 1.0
  %v310 = vadd.f32 %v289, 1.0
  %v311 = vadd.f32 %v291, 1.0
  %v312 = vadd.f32 %v293, 1.0
  %v313 = vadd.f32 %v295, 1.0
  %v314 = vadd.f32 %v297, 1.0
  %v315 = vadd.f32 %v299, 1.0
  %v316 = vrcp.pop %v300
  %v317 = vmul.f32 1.0, %v316
  %v318 = vrcp.pop %v301
  %v319 = vmul.f32 1.0, %v318
  %v320 = vrcp.pop %v302
  %v321 = vmul.f32 1.0, %v320
  %v322 = vrcp.pop %v303
  %v323 = vmul.f32 1.0, %v322
  %v324 = vrcp.pop %v304
  %v325 = vmul.f32 1.0, %v324
  %v326 = vrcp.pop %v305
  %v327 = vmul.f32 1.0, %v326
  %v328 = vrcp.pop %v306
  %v329 = vmul.f32 1.0, %v328
  %v330 = vrcp.pop %v307
  %v331 = vmul.f32 1.0, %v330
  %v332 = vrcp.pop %v308
  %v333 = vmul.f32 1.0, %v332
  %v334 = vrcp.pop %v309
  %v335 = vmul.f32 1.0, %v334
  %v336 = vrcp.pop %v310
  %v337 = vmul.f32 1.0, %v336
  %v338 = vrcp.pop %v311
  %v339 = vmul.f32 1.0, %v338
  %v340 = vrcp.pop %v312
  %v341 = vmul.f32 1.0, %v340
  %v342 = vrcp.pop %v313
  %v343 = vmul.f32 1.0, %v342
  %v344 = vrcp.pop %v314
  %v345 = vmul.f32 1.0, %v344
  %v346 = vrcp.pop %v315
  %v347 = vmul.f32 1.0, %v346
  %v348 = vld [vmem:[%s5] sm:$0x1]
  %v349 = vld [vmem:[%s6] sm:$0x1]
  %v350 = vld [vmem:[%s7] sm:$0x1]
  %v351 = vld [vmem:[%s8] sm:$0x1]
  %v352 = vadd.f32 %v348, %v349
  %v353 = vld [vmem:[%s3] sm:$0xff]
  %v354 = vld [vmem:[%s3 + $0x8] sm:$0xff]
  %v355 = vld [vmem:[%s3 + $0x10] sm:$0xff]
  %v356 = vld [vmem:[%s3 + $0x18] sm:$0xff]
  %v357 = vld [vmem:[%s3 + $0x20] sm:$0xff]
  %v358 = vld [vmem:[%s3 + $0x28] sm:$0xff]
  %v359 = vld [vmem:[%s3 + $0x30] sm:$0xff]
  %v360 = vld [vmem:[%s3 + $0x38] sm:$0xff]
  %v361 = vld [vmem:[%s3 + $0x40] sm:$0xff]
  %v362 = vld [vmem:[%s3 + $0x48] sm:$0xff]
  %v363 = vld [vmem:[%s3 + $0x50] sm:$0xff]
  %v364 = vld [vmem:[%s3 + $0x58] sm:$0xff]
  %v365 = vld [vmem:[%s3 + $0x60] sm:$0xff]
  %v366 = vld [vmem:[%s3 + $0x68] sm:$0xff]
  %v367 = vld [vmem:[%s3 + $0x70] sm:$0xff]
  %v368 = vld [vmem:[%s3 + $0x78] sm:$0xff]
  %v370 = vlaneseq
  %v371 = vshrl.u32 %v370, 7
  %v372 = vsub.s32 0, %v371
  %v373 = vrot.slane %v348, %v372
  %376 = vset.pattern.permute.xlu0 0
  %377 = vperm.xlu0 %376, %v353
  %v378 = vpop.permute.xlu0 %377
  %381 = vset.pattern.permute.xlu0 0
  %382 = vperm.xlu0 %381, %v354
  %v383 = vpop.permute.xlu0 %382
  %386 = vset.pattern.permute.xlu0 0
  %387 = vperm.xlu0 %386, %v355
  %v388 = vpop.permute.xlu0 %387
  %391 = vset.pattern.permute.xlu0 0
  %392 = vperm.xlu0 %391, %v356
  %v393 = vpop.permute.xlu0 %392
  %396 = vset.pattern.permute.xlu0 0
  %397 = vperm.xlu0 %396, %v357
  %v398 = vpop.permute.xlu0 %397
  %401 = vset.pattern.permute.xlu0 0
  %402 = vperm.xlu0 %401, %v358
  %v403 = vpop.permute.xlu0 %402
  %406 = vset.pattern.permute.xlu0 0
  %407 = vperm.xlu0 %406, %v359
  %v408 = vpop.permute.xlu0 %407
  %411 = vset.pattern.permute.xlu0 0
  %412 = vperm.xlu0 %411, %v360
  %v413 = vpop.permute.xlu0 %412
  %416 = vset.pattern.permute.xlu0 0
  %417 = vperm.xlu0 %416, %v361
  %v418 = vpop.permute.xlu0 %417
  %421 = vset.pattern.permute.xlu0 0
  %422 = vperm.xlu0 %421, %v362
  %v423 = vpop.permute.xlu0 %422
  %426 = vset.pattern.permute.xlu0 0
  %427 = vperm.xlu0 %426, %v363
  %v428 = vpop.permute.xlu0 %427
  %431 = vset.pattern.permute.xlu0 0
  %432 = vperm.xlu0 %431, %v364
  %v433 = vpop.permute.xlu0 %432
  %436 = vset.pattern.permute.xlu0 0
  %437 = vperm.xlu0 %436, %v365
  %v438 = vpop.permute.xlu0 %437
  %441 = vset.pattern.permute.xlu0 0
  %442 = vperm.xlu0 %441, %v366
  %v443 = vpop.permute.xlu0 %442
  %446 = vset.pattern.permute.xlu0 0
  %447 = vperm.xlu0 %446, %v367
  %v448 = vpop.permute.xlu0 %447
  %451 = vset.pattern.permute.xlu0 0
  %452 = vperm.xlu0 %451, %v368
  %v453 = vpop.permute.xlu0 %452
  %v455 = vmul.f32 %v373, %v378
  %v456 = vmul.f32 %v373, %v383
  %v457 = vmul.f32 %v373, %v388
  %v458 = vmul.f32 %v373, %v393
  %v459 = vmul.f32 %v373, %v398
  %v460 = vmul.f32 %v373, %v403
  %v461 = vmul.f32 %v373, %v408
  %v462 = vmul.f32 %v373, %v413
  %v463 = vmul.f32 %v373, %v418
  %v464 = vmul.f32 %v373, %v423
  %v465 = vmul.f32 %v373, %v428
  %v466 = vmul.f32 %v373, %v433
  %v467 = vmul.f32 %v373, %v438
  %v468 = vmul.f32 %v373, %v443
  %v469 = vmul.f32 %v373, %v448
  %v470 = vmul.f32 %v373, %v453
  %v471 = vld [vmem:[%s4] sm:$0xff]
  %v472 = vld [vmem:[%s4 + $0x8] sm:$0xff]
  %v473 = vld [vmem:[%s4 + $0x10] sm:$0xff]
  %v474 = vld [vmem:[%s4 + $0x18] sm:$0xff]
  %v475 = vld [vmem:[%s4 + $0x20] sm:$0xff]
  %v476 = vld [vmem:[%s4 + $0x28] sm:$0xff]
  %v477 = vld [vmem:[%s4 + $0x30] sm:$0xff]
  %v478 = vld [vmem:[%s4 + $0x38] sm:$0xff]
  %v479 = vld [vmem:[%s4 + $0x40] sm:$0xff]
  %v480 = vld [vmem:[%s4 + $0x48] sm:$0xff]
  %v481 = vld [vmem:[%s4 + $0x50] sm:$0xff]
  %v482 = vld [vmem:[%s4 + $0x58] sm:$0xff]
  %v483 = vld [vmem:[%s4 + $0x60] sm:$0xff]
  %v484 = vld [vmem:[%s4 + $0x68] sm:$0xff]
  %v485 = vld [vmem:[%s4 + $0x70] sm:$0xff]
  %v486 = vld [vmem:[%s4 + $0x78] sm:$0xff]
  %v488 = vlaneseq
  %v489 = vshrl.u32 %v488, 7
  %v490 = vsub.s32 0, %v489
  %v491 = vrot.slane %v349, %v490
  %494 = vset.pattern.permute.xlu0 0
  %495 = vperm.xlu0 %494, %v471
  %v496 = vpop.permute.xlu0 %495
  %499 = vset.pattern.permute.xlu0 0
  %500 = vperm.xlu0 %499, %v472
  %v501 = vpop.permute.xlu0 %500
  %504 = vset.pattern.permute.xlu0 0
  %505 = vperm.xlu0 %504, %v473
  %v506 = vpop.permute.xlu0 %505
  %509 = vset.pattern.permute.xlu0 0
  %510 = vperm.xlu0 %509, %v474
  %v511 = vpop.permute.xlu0 %510
  %514 = vset.pattern.permute.xlu0 0
  %515 = vperm.xlu0 %514, %v475
  %v516 = vpop.permute.xlu0 %515
  %519 = vset.pattern.permute.xlu0 0
  %520 = vperm.xlu0 %519, %v476
  %v521 = vpop.permute.xlu0 %520
  %524 = vset.pattern.permute.xlu0 0
  %525 = vperm.xlu0 %524, %v477
  %v526 = vpop.permute.xlu0 %525
  %529 = vset.pattern.permute.xlu0 0
  %530 = vperm.xlu0 %529, %v478
  %v531 = vpop.permute.xlu0 %530
  %534 = vset.pattern.permute.xlu0 0
  %535 = vperm.xlu0 %534, %v479
  %v536 = vpop.permute.xlu0 %535
  %539 = vset.pattern.permute.xlu0 0
  %540 = vperm.xlu0 %539, %v480
  %v541 = vpop.permute.xlu0 %540
  %544 = vset.pattern.permute.xlu0 0
  %545 = vperm.xlu0 %544, %v481
  %v546 = vpop.permute.xlu0 %545
  %549 = vset.pattern.permute.xlu0 0
  %550 = vperm.xlu0 %549, %v482
  %v551 = vpop.permute.xlu0 %550
  %554 = vset.pattern.permute.xlu0 0
  %555 = vperm.xlu0 %554, %v483
  %v556 = vpop.permute.xlu0 %555
  %559 = vset.pattern.permute.xlu0 0
  %560 = vperm.xlu0 %559, %v484
  %v561 = vpop.permute.xlu0 %560
  %564 = vset.pattern.permute.xlu0 0
  %565 = vperm.xlu0 %564, %v485
  %v566 = vpop.permute.xlu0 %565
  %569 = vset.pattern.permute.xlu0 0
  %570 = vperm.xlu0 %569, %v486
  %v571 = vpop.permute.xlu0 %570
  %v573 = vmul.f32 %v491, %v496
  %v574 = vmul.f32 %v491, %v501
  %v575 = vmul.f32 %v491, %v506
  %v576 = vmul.f32 %v491, %v511
  %v577 = vmul.f32 %v491, %v516
  %v578 = vmul.f32 %v491, %v521
  %v579 = vmul.f32 %v491, %v526
  %v580 = vmul.f32 %v491, %v531
  %v581 = vmul.f32 %v491, %v536
  %v582 = vmul.f32 %v491, %v541
  %v583 = vmul.f32 %v491, %v546
  %v584 = vmul.f32 %v491, %v551
  %v585 = vmul.f32 %v491, %v556
  %v586 = vmul.f32 %v491, %v561
  %v587 = vmul.f32 %v491, %v566
  %v588 = vmul.f32 %v491, %v571
  %v589 = vadd.f32 %v455, %v573
  %v590 = vadd.f32 %v456, %v574
  %v591 = vadd.f32 %v457, %v575
  %v592 = vadd.f32 %v458, %v576
  %v593 = vadd.f32 %v459, %v577
  %v594 = vadd.f32 %v460, %v578
  %v595 = vadd.f32 %v461, %v579
  %v596 = vadd.f32 %v462, %v580
  %v597 = vadd.f32 %v463, %v581
  %v598 = vadd.f32 %v464, %v582
  %v599 = vadd.f32 %v465, %v583
  %v600 = vadd.f32 %v466, %v584
  %v601 = vadd.f32 %v467, %v585
  %v602 = vadd.f32 %v468, %v586
  %v603 = vadd.f32 %v469, %v587
  %v604 = vadd.f32 %v470, %v588
  %v605 = vmul.f32 %v317, 2.0
  %v606 = vmul.f32 %v319, 2.0
  %v607 = vmul.f32 %v321, 2.0
  %v608 = vmul.f32 %v323, 2.0
  %v609 = vmul.f32 %v325, 2.0
  %v610 = vmul.f32 %v327, 2.0
  %v611 = vmul.f32 %v329, 2.0
  %v612 = vmul.f32 %v331, 2.0
  %v613 = vmul.f32 %v333, 2.0
  %v614 = vmul.f32 %v335, 2.0
  %v615 = vmul.f32 %v337, 2.0
  %v616 = vmul.f32 %v339, 2.0
  %v617 = vmul.f32 %v341, 2.0
  %v618 = vmul.f32 %v343, 2.0
  %v619 = vmul.f32 %v345, 2.0
  %v620 = vmul.f32 %v347, 2.0
  %v621 = vsub.f32 %v605, 0.5
  %v622 = vsub.f32 %v606, 0.5
  %v623 = vsub.f32 %v607, 0.5
  %v624 = vsub.f32 %v608, 0.5
  %v625 = vsub.f32 %v609, 0.5
  %v626 = vsub.f32 %v610, 0.5
  %v627 = vsub.f32 %v611, 0.5
  %v628 = vsub.f32 %v612, 0.5
  %v629 = vsub.f32 %v613, 0.5
  %v630 = vsub.f32 %v614, 0.5
  %v631 = vsub.f32 %v615, 0.5
  %v632 = vsub.f32 %v616, 0.5
  %v633 = vsub.f32 %v617, 0.5
  %v634 = vsub.f32 %v618, 0.5
  %v635 = vsub.f32 %v619, 0.5
  %v636 = vsub.f32 %v620, 0.5
  %v637 = vadd.f32 %v621, %v589
  %v638 = vadd.f32 %v622, %v590
  %v639 = vadd.f32 %v623, %v591
  %v640 = vadd.f32 %v624, %v592
  %v641 = vadd.f32 %v625, %v593
  %v642 = vadd.f32 %v626, %v594
  %v643 = vadd.f32 %v627, %v595
  %v644 = vadd.f32 %v628, %v596
  %v645 = vadd.f32 %v629, %v597
  %v646 = vadd.f32 %v630, %v598
  %v647 = vadd.f32 %v631, %v599
  %v648 = vadd.f32 %v632, %v600
  %v649 = vadd.f32 %v633, %v601
  %v650 = vadd.f32 %v634, %v602
  %v651 = vadd.f32 %v635, %v603
  %v652 = vadd.f32 %v636, %v604
  %v653 = vmul.f32 %v637, 8.0
  %v654 = vmul.f32 %v638, 8.0
  %v655 = vmul.f32 %v639, 8.0
  %v656 = vmul.f32 %v640, 8.0
  %v657 = vmul.f32 %v641, 8.0
  %v658 = vmul.f32 %v642, 8.0
  %v659 = vmul.f32 %v643, 8.0
  %v660 = vmul.f32 %v644, 8.0
  %v661 = vmul.f32 %v645, 8.0
  %v662 = vmul.f32 %v646, 8.0
  %v663 = vmul.f32 %v647, 8.0
  %v664 = vmul.f32 %v648, 8.0
  %v665 = vmul.f32 %v649, 8.0
  %v666 = vmul.f32 %v650, 8.0
  %v667 = vmul.f32 %v651, 8.0
  %v668 = vmul.f32 %v652, 8.0
  %v669 = vmul.f32 %v605, %v605
  %v670 = vmul.f32 %v606, %v606
  %v671 = vmul.f32 %v607, %v607
  %v672 = vmul.f32 %v608, %v608
  %v673 = vmul.f32 %v609, %v609
  %v674 = vmul.f32 %v610, %v610
  %v675 = vmul.f32 %v611, %v611
  %v676 = vmul.f32 %v612, %v612
  %v677 = vmul.f32 %v613, %v613
  %v678 = vmul.f32 %v614, %v614
  %v679 = vmul.f32 %v615, %v615
  %v680 = vmul.f32 %v616, %v616
  %v681 = vmul.f32 %v617, %v617
  %v682 = vmul.f32 %v618, %v618
  %v683 = vmul.f32 %v619, %v619
  %v684 = vmul.f32 %v620, %v620
  %v686 = vlaneseq
  %v687 = vshrl.u32 %v686, 7
  %v688 = vsub.s32 0, %v687
  %v689 = vrot.slane %v351, %v688
  %v691 = vmul.f32 %v669, %v689
  %v692 = vmul.f32 %v670, %v689
  %v693 = vmul.f32 %v671, %v689
  %v694 = vmul.f32 %v672, %v689
  %v695 = vmul.f32 %v673, %v689
  %v696 = vmul.f32 %v674, %v689
  %v697 = vmul.f32 %v675, %v689
  %v698 = vmul.f32 %v676, %v689
  %v699 = vmul.f32 %v677, %v689
  %v700 = vmul.f32 %v678, %v689
  %v701 = vmul.f32 %v679, %v689
  %v702 = vmul.f32 %v680, %v689
  %v703 = vmul.f32 %v681, %v689
  %v704 = vmul.f32 %v682, %v689
  %v705 = vmul.f32 %v683, %v689
  %v706 = vmul.f32 %v684, %v689
  %v708 = vlaneseq
  %v709 = vshrl.u32 %v708, 7
  %v710 = vsub.s32 0, %v709
  %v711 = vrot.slane %v352, %v710
  %v713 = vmul.f32 %v711, %v653
  %v714 = vmul.f32 %v711, %v654
  %v715 = vmul.f32 %v711, %v655
  %v716 = vmul.f32 %v711, %v656
  %v717 = vmul.f32 %v711, %v657
  %v718 = vmul.f32 %v711, %v658
  %v719 = vmul.f32 %v711, %v659
  %v720 = vmul.f32 %v711, %v660
  %v721 = vmul.f32 %v711, %v661
  %v722 = vmul.f32 %v711, %v662
  %v723 = vmul.f32 %v711, %v663
  %v724 = vmul.f32 %v711, %v664
  %v725 = vmul.f32 %v711, %v665
  %v726 = vmul.f32 %v711, %v666
  %v727 = vmul.f32 %v711, %v667
  %v728 = vmul.f32 %v711, %v668
  %v730 = vlaneseq
  %v731 = vshrl.u32 %v730, 7
  %v732 = vsub.s32 0, %v731
  %v733 = vrot.slane %v350, %v732
  %v735 = vmul.f32 %v733, %v691
  %v736 = vmul.f32 %v733, %v692
  %v737 = vmul.f32 %v733, %v693
  %v738 = vmul.f32 %v733, %v694
  %v739 = vmul.f32 %v733, %v695
  %v740 = vmul.f32 %v733, %v696
  %v741 = vmul.f32 %v733, %v697
  %v742 = vmul.f32 %v733, %v698
  %v743 = vmul.f32 %v733, %v699
  %v744 = vmul.f32 %v733, %v700
  %v745 = vmul.f32 %v733, %v701
  %v746 = vmul.f32 %v733, %v702
  %v747 = vmul.f32 %v733, %v703
  %v748 = vmul.f32 %v733, %v704
  %v749 = vmul.f32 %v733, %v705
  %v750 = vmul.f32 %v733, %v706
  %v751 = vadd.f32 %v713, %v735
  %v752 = vadd.f32 %v714, %v736
  %v753 = vadd.f32 %v715, %v737
  %v754 = vadd.f32 %v716, %v738
  %v755 = vadd.f32 %v717, %v739
  %v756 = vadd.f32 %v718, %v740
  %v757 = vadd.f32 %v719, %v741
  %v758 = vadd.f32 %v720, %v742
  %v759 = vadd.f32 %v721, %v743
  %v760 = vadd.f32 %v722, %v744
  %v761 = vadd.f32 %v723, %v745
  %v762 = vadd.f32 %v724, %v746
  %v763 = vadd.f32 %v725, %v747
  %v764 = vadd.f32 %v726, %v748
  %v765 = vadd.f32 %v727, %v749
  %v766 = vadd.f32 %v728, %v750
  %v767 = vsub.f32 1.0, %v352
  %v768 = vsub.f32 %v767, %v350
  %v770 = vlaneseq
  %v771 = vshrl.u32 %v770, 7
  %v772 = vsub.s32 0, %v771
  %v773 = vrot.slane %v768, %v772
  %v775 = vmul.f32 %v773, %v317
  %v776 = vmul.f32 %v773, %v319
  %v777 = vmul.f32 %v773, %v321
  %v778 = vmul.f32 %v773, %v323
  %v779 = vmul.f32 %v773, %v325
  %v780 = vmul.f32 %v773, %v327
  %v781 = vmul.f32 %v773, %v329
  %v782 = vmul.f32 %v773, %v331
  %v783 = vmul.f32 %v773, %v333
  %v784 = vmul.f32 %v773, %v335
  %v785 = vmul.f32 %v773, %v337
  %v786 = vmul.f32 %v773, %v339
  %v787 = vmul.f32 %v773, %v341
  %v788 = vmul.f32 %v773, %v343
  %v789 = vmul.f32 %v773, %v345
  %v790 = vmul.f32 %v773, %v347
  %v791 = vadd.f32 %v751, %v775
  %v792 = vadd.f32 %v752, %v776
  %v793 = vadd.f32 %v753, %v777
  %v794 = vadd.f32 %v754, %v778
  %v795 = vadd.f32 %v755, %v779
  %v796 = vadd.f32 %v756, %v780
  %v797 = vadd.f32 %v757, %v781
  %v798 = vadd.f32 %v758, %v782
  %v799 = vadd.f32 %v759, %v783
  %v800 = vadd.f32 %v760, %v784
  %v801 = vadd.f32 %v761, %v785
  %v802 = vadd.f32 %v762, %v786
  %v803 = vadd.f32 %v763, %v787
  %v804 = vadd.f32 %v764, %v788
  %v805 = vadd.f32 %v765, %v789
  %v806 = vadd.f32 %v766, %v790
  %807 = vst [vmem:[%s10] sm:$0xff] %v791
  %808 = vst [vmem:[%s10 + $0x8] sm:$0xff] %v792
  %809 = vst [vmem:[%s10 + $0x10] sm:$0xff] %v793
  %810 = vst [vmem:[%s10 + $0x18] sm:$0xff] %v794
  %811 = vst [vmem:[%s10 + $0x20] sm:$0xff] %v795
  %812 = vst [vmem:[%s10 + $0x28] sm:$0xff] %v796
  %813 = vst [vmem:[%s10 + $0x30] sm:$0xff] %v797
  %814 = vst [vmem:[%s10 + $0x38] sm:$0xff] %v798
  %815 = vst [vmem:[%s10 + $0x40] sm:$0xff] %v799
  %816 = vst [vmem:[%s10 + $0x48] sm:$0xff] %v800
  %817 = vst [vmem:[%s10 + $0x50] sm:$0xff] %v801
  %818 = vst [vmem:[%s10 + $0x58] sm:$0xff] %v802
  %819 = vst [vmem:[%s10 + $0x60] sm:$0xff] %v803
  %820 = vst [vmem:[%s10 + $0x68] sm:$0xff] %v804
  %821 = vst [vmem:[%s10 + $0x70] sm:$0xff] %v805
  %822 = vst [vmem:[%s10 + $0x78] sm:$0xff] %v806
  // Predicated region
  $region38: #{model_forward.13} parent=0 // pred_check
    _
  $region39: #{model_forward.13} parent=0 // pred_check_branch
    %824 = sbr.rel (0) target = $region41
  $region40: #{model_forward.13} parent=0 // pred_region
    _
  $region41: #{model_forward.13} parent=0 // pred_fallthru
    _
  // Predicated region
  $region42: #{model_forward.13} parent=0 // pred_check
    _
  $region43: #{model_forward.13} parent=0 // pred_check_branch
    %826 = sbr.rel (0) target = $region45
  $region44: #{model_forward.13} parent=0 // pred_region
    _
  $region45: #{model_forward.13} parent=0 // pred_fallthru
    _
  // Predicated region
  $region46: #{model_forward.13} parent=0 // pred_check
    _
  $region47: #{model_forward.13} parent=0 // pred_check_branch
    %828 = sbr.rel (0) target = $region49
  $region48: #{model_forward.13} parent=0 // pred_region
    _
  $region49: #{model_forward.13} parent=0 // pred_fallthru
    _
  // Predicated region
  $region50: #{model_forward.13} parent=0 // pred_check
    _
  $region51: #{model_forward.13} parent=0 // pred_check_branch
    %830 = sbr.rel (0) target = $region53
  $region52: #{model_forward.13} parent=0 // pred_region
    _
  $region53: #{model_forward.13} parent=0 // pred_fallthru
    _

// kernel: model_forward.14
$region0: #{model_forward.14}
  #allocation0 [shape = 'u32[]', space=smem, size = 0x4, offset = 0x4, fixed_abs, tag = 'smem constant byte address 0x4 - core index']
  #allocation1 [shape = 'u32[144,128]{1,0:T(1,128)}', space=vmem, size = 0x12000, scoped, tag = 'internal scratch']
  %s0 = inlined_call_operand.vmem [shape: bf16[32,64], index: 0, kind: input, shape index: {}]
  %s1 = inlined_call_operand.vmem [shape: bf16[64,128], index: 1, kind: input, shape index: {}]
  %s2 = inlined_call_operand.vmem [shape: f32[1,128], index: 2, kind: input, shape index: {}]
  %s3 = inlined_call_operand.vmem [shape: f32[32,1], index: 3, kind: input, shape index: {}]
  %s4 = inlined_call_operand.vmem [shape: f32[32,1], index: 4, kind: input, shape index: {}]
  %s5 = inlined_call_operand.vmem [shape: f32[1,128], index: 5, kind: input, shape index: {}]
  %s6 = inlined_call_operand.vmem [shape: f32[1,128], index: 6, kind: input, shape index: {}]
  %s7 = inlined_call_operand.vmem [shape: f32[1,128], index: 7, kind: input, shape index: {}]
  %s8 = inlined_call_operand.vmem [shape: f32[1,128], index: 8, kind: input, shape index: {}]
  %s9 = inlined_call_operand.vmem [shape: f32[32,128], index: 9, kind: output, shape index: {0}]
  %s10 = inlined_call_operand.vmem [shape: f32[32,128], index: 10, kind: output, shape index: {1}]
  %11 = xla_tuple %s9, %s10
  %s12 = sld [smem:[#allocation0]]
  $region54: #{model_forward.14} parent=0
    _
  %s14 = ssub.s32 1, %s12
  %s15 = scalar_select 0, %s14, %s12
  // Predicated region
  $region2: #{model_forward.14} parent=0 // pred_check
    _
  $region3: #{model_forward.14} parent=0 // pred_check_branch
    %17 = sbr.rel (0) target = $region5
  $region4: #{model_forward.14} parent=0 // pred_region
    _
  $region5: #{model_forward.14} parent=0 // pred_fallthru
    _
  // Predicated region
  $region6: #{model_forward.14} parent=0 // pred_check
    _
  $region7: #{model_forward.14} parent=0 // pred_check_branch
    %19 = sbr.rel (0) target = $region9
  $region8: #{model_forward.14} parent=0 // pred_region
    _
  $region9: #{model_forward.14} parent=0 // pred_fallthru
    _
  // Predicated region
  $region10: #{model_forward.14} parent=0 // pred_check
    _
  $region11: #{model_forward.14} parent=0 // pred_check_branch
    %21 = sbr.rel (0) target = $region13
  $region12: #{model_forward.14} parent=0 // pred_region
    _
  $region13: #{model_forward.14} parent=0 // pred_fallthru
    _
  // Predicated region
  $region14: #{model_forward.14} parent=0 // pred_check
    _
  $region15: #{model_forward.14} parent=0 // pred_check_branch
    %23 = sbr.rel (0) target = $region17
  $region16: #{model_forward.14} parent=0 // pred_region
    _
  $region17: #{model_forward.14} parent=0 // pred_fallthru
    _
  // Predicated region
  $region18: #{model_forward.14} parent=0 // pred_check
    _
  $region19: #{model_forward.14} parent=0 // pred_check_branch
    %25 = sbr.rel (0) target = $region21
  $region20: #{model_forward.14} parent=0 // pred_region
    _
  $region21: #{model_forward.14} parent=0 // pred_fallthru
    _
  // Predicated region
  $region22: #{model_forward.14} parent=0 // pred_check
    _
  $region23: #{model_forward.14} parent=0 // pred_check_branch
    %27 = sbr.rel (0) target = $region25
  $region24: #{model_forward.14} parent=0 // pred_region
    _
  $region25: #{model_forward.14} parent=0 // pred_fallthru
    _
  // Predicated region
  $region26: #{model_forward.14} parent=0 // pred_check
    _
  $region27: #{model_forward.14} parent=0 // pred_check_branch
    %29 = sbr.rel (0) target = $region29
  $region28: #{model_forward.14} parent=0 // pred_region
    _
  $region29: #{model_forward.14} parent=0 // pred_fallthru
    _
  // Predicated region
  $region30: #{model_forward.14} parent=0 // pred_check
    _
  $region31: #{model_forward.14} parent=0 // pred_check_branch
    %31 = sbr.rel (0) target = $region33
  $region32: #{model_forward.14} parent=0 // pred_region
    _
  $region33: #{model_forward.14} parent=0 // pred_fallthru
    _
  // Predicated region
  $region34: #{model_forward.14} parent=0 // pred_check
    _
  $region35: #{model_forward.14} parent=0 // pred_check_branch
    %33 = sbr.rel (0) target = $region37
  $region36: #{model_forward.14} parent=0 // pred_region
    _
  $region37: #{model_forward.14} parent=0 // pred_fallthru
    _
  %v35 = vld [vmem:[%s0] sm:$0xf]
  %v36 = vld [vmem:[%s0 + $0x4] sm:$0xf]
  %v37 = vld [vmem:[%s0 + $0x8] sm:$0xf]
  %v38 = vld [vmem:[%s0 + $0xc] sm:$0xf]
  %v39 = vld [vmem:[%s1] sm:$0xf]
  %v40 = vld [vmem:[%s1 + $0x4] sm:$0xf]
  %v41 = vld [vmem:[%s1 + $0x8] sm:$0xf]
  %v42 = vld [vmem:[%s1 + $0xc] sm:$0xf]
  %v43 = vld [vmem:[%s1 + $0x10] sm:$0xf]
  %v44 = vld [vmem:[%s1 + $0x14] sm:$0xf]
  %v45 = vld [vmem:[%s1 + $0x18] sm:$0xf]
  %v46 = vld [vmem:[%s1 + $0x1c] sm:$0xf]
  %v47 = vld [vmem:[%s2] sm:$0x1]
  %v49 = vlaneseq
  %v50 = vshrl.u32 %v49, 7
  %v51 = vsub.s32 0, %v50
  %v52 = vrot.slane %v47, %v51
  %v58 = vunpack.c.l.b16 %v35
  %v59 = vunpack.c.l.b16 %v36
  %v60 = vunpack.c.l.b16 %v37
  %v61 = vunpack.c.l.b16 %v38
  %v62 = vpack.c.b16 %v59, %v58
  %v63 = vpack.c.b16 %v61, %v60
  %v72 = vunpack.c.l.b16 %v39
  %v73 = vunpack.c.l.b16 %v40
  %v74 = vunpack.c.l.b16 %v41
  %v75 = vunpack.c.l.b16 %v42
  %v76 = vunpack.c.l.b16 %v43
  %v77 = vunpack.c.l.b16 %v44
  %v78 = vunpack.c.l.b16 %v45
  %v79 = vunpack.c.l.b16 %v46
  %v80 = vpack.c.b16 %v73, %v72
  %v81 = vpack.c.b16 %v75, %v74
  %v82 = vpack.c.b16 %v77, %v76
  %v83 = vpack.c.b16 %v79, %v78
  %vm88 = vcmask 523264
  %v90 = vsel %vm88, %v62, 0
  %v93 = vsel %vm88, %v63, 0
  %95 = vmatprep.subr.bf16.mxu0 0
  %96 = vmatpush1.bf16.msra.mxu0 %v80
  %97 = vmatprep.subr.bf16.mxu0 0
  %98 = vmatpush1.bf16.msra.mxu0 %v81
  %99 = vmatprep.subr.bf16.mxu0 0
  %100 = vmatpush1.bf16.msra.mxu0 %v82
  %101 = vmatprep.subr.bf16.mxu0 0
  %102 = vmatpush1.bf16.msra.mxu0 %v83
  %103 = vmatprep.subr.bf16.mxu0 0
  %104 = vmatpush1.bf16.msra.mxu0 0
  %105 = vmatprep.subr.bf16.mxu0 0
  %106 = vmatpush1.bf16.msra.mxu0 0
  %107 = vmatprep.subr.bf16.mxu0 0
  %108 = vmatpush1.bf16.msra.mxu0 0
  %109 = vmatprep.subr.bf16.mxu0 0
  %110 = vmatpush1.bf16.msra.mxu0 0
  %111 = vmatprep.subr.bf16.mxu0 0
  %112 = vmatpush1.bf16.msra.mxu0 0
  %113 = vmatprep.subr.bf16.mxu0 0
  %114 = vmatpush1.bf16.msra.mxu0 0
  %115 = vmatprep.subr.bf16.mxu0 0
  %116 = vmatpush1.bf16.msra.mxu0 0
  %117 = vmatprep.subr.bf16.mxu0 0
  %118 = vmatpush1.bf16.msra.mxu0 0
  %119 = vmatprep.subr.bf16.mxu0 0
  %120 = vmatpush1.bf16.msra.mxu0 0
  %121 = vmatprep.subr.bf16.mxu0 0
  %122 = vmatpush1.bf16.msra.mxu0 0
  %123 = vmatprep.subr.bf16.mxu0 0
  %124 = vmatpush1.bf16.msra.mxu0 0
  %125 = vmatprep.subr.bf16.mxu0 0
  %126 = vmatpush1.bf16.msra.mxu0 0
  %127 = vmatprep.mubr.bf16.mxu0 0
  %128 = vmatmul.mubr.bf16.gmra.mrb[0].mxu0 %v90
  %v129 = vpop.f32.mrb[0].mxu0
  %v130 = vadd.f32 %v52, %v129
  %v131 = vpop.f32.mrb[0].mxu0
  %v132 = vpop.f32.mrb[0].mxu0
  %v133 = vadd.f32 %v52, %v132
  %v134 = vpop.f32.mrb[0].mxu0
  %135 = vmatprep.mubr.bf16.mxu0 0
  %136 = vmatmul.mubr.bf16.gmra.mrb[0].mxu0 %v93
  %v137 = vpop.f32.mrb[0].mxu0
  %v138 = vadd.f32 %v52, %v137
  %v139 = vpop.f32.mrb[0].mxu0
  %v140 = vpop.f32.mrb[0].mxu0
  %v141 = vadd.f32 %v52, %v140
  %v142 = vpop.f32.mrb[0].mxu0
  %143 = vdwg.mxu0
  %144 = vst [vmem:[%s9] sm:$0xff] %v130
  %145 = vst [vmem:[%s9 + $0x8] sm:$0xff] %v133
  %146 = vst [vmem:[%s9 + $0x10] sm:$0xff] %v138
  %147 = vst [vmem:[%s9 + $0x18] sm:$0xff] %v141
  %v148 = vxor.u32 %v130, 2147483648
  %v149 = vxor.u32 %v133, 2147483648
  %v150 = vxor.u32 %v138, 2147483648
  %v151 = vxor.u32 %v141, 2147483648
  %v152 = vmul.f32 %v148, 1.442695
  %v153 = vpow.pop %v152
  %v154 = vmul.f32 %v149, 1.442695
  %v155 = vpow.pop %v154
  %v156 = vmul.f32 %v150, 1.442695
  %v157 = vpow.pop %v156
  %v158 = vmul.f32 %v151, 1.442695
  %v159 = vpow.pop %v158
  %v160 = vadd.f32 %v153, 1.0
  %v161 = vadd.f32 %v155, 1.0
  %v162 = vadd.f32 %v157, 1.0
  %v163 = vadd.f32 %v159, 1.0
  %v164 = vrcp.pop %v160
  %v165 = vmul.f32 1.0, %v164
  %v166 = vrcp.pop %v161
  %v167 = vmul.f32 1.0, %v166
  %v168 = vrcp.pop %v162
  %v169 = vmul.f32 1.0, %v168
  %v170 = vrcp.pop %v163
  %v171 = vmul.f32 1.0, %v170
  %v172 = vld [vmem:[%s5] sm:$0x1]
  %v173 = vld [vmem:[%s6] sm:$0x1]
  %v174 = vld [vmem:[%s7] sm:$0x1]
  %v175 = vld [vmem:[%s8] sm:$0x1]
  %v176 = vadd.f32 %v172, %v173
  %v177 = vld [vmem:[%s3] sm:$0xff]
  %v178 = vld [vmem:[%s3 + $0x8] sm:$0xff]
  %v179 = vld [vmem:[%s3 + $0x10] sm:$0xff]
  %v180 = vld [vmem:[%s3 + $0x18] sm:$0xff]
  %v182 = vlaneseq
  %v183 = vshrl.u32 %v182, 7
  %v184 = vsub.s32 0, %v183
  %v185 = vrot.slane %v172, %v184
  %188 = vset.pattern.permute.xlu0 0
  %189 = vperm.xlu0 %188, %v177
  %v190 = vpop.permute.xlu0 %189
  %193 = vset.pattern.permute.xlu0 0
  %194 = vperm.xlu0 %193, %v178
  %v195 = vpop.permute.xlu0 %194
  %198 = vset.pattern.permute.xlu0 0
  %199 = vperm.xlu0 %198, %v179
  %v200 = vpop.permute.xlu0 %199
  %203 = vset.pattern.permute.xlu0 0
  %204 = vperm.xlu0 %203, %v180
  %v205 = vpop.permute.xlu0 %204
  %v207 = vmul.f32 %v185, %v190
  %v208 = vmul.f32 %v185, %v195
  %v209 = vmul.f32 %v185, %v200
  %v210 = vmul.f32 %v185, %v205
  %v211 = vld [vmem:[%s4] sm:$0xff]
  %v212 = vld [vmem:[%s4 + $0x8] sm:$0xff]
  %v213 = vld [vmem:[%s4 + $0x10] sm:$0xff]
  %v214 = vld [vmem:[%s4 + $0x18] sm:$0xff]
  %v216 = vlaneseq
  %v217 = vshrl.u32 %v216, 7
  %v218 = vsub.s32 0, %v217
  %v219 = vrot.slane %v173, %v218
  %222 = vset.pattern.permute.xlu0 0
  %223 = vperm.xlu0 %222, %v211
  %v224 = vpop.permute.xlu0 %223
  %227 = vset.pattern.permute.xlu0 0
  %228 = vperm.xlu0 %227, %v212
  %v229 = vpop.permute.xlu0 %228
  %232 = vset.pattern.permute.xlu0 0
  %233 = vperm.xlu0 %232, %v213
  %v234 = vpop.permute.xlu0 %233
  %237 = vset.pattern.permute.xlu0 0
  %238 = vperm.xlu0 %237, %v214
  %v239 = vpop.permute.xlu0 %238
  %v241 = vmul.f32 %v219, %v224
  %v242 = vmul.f32 %v219, %v229
  %v243 = vmul.f32 %v219, %v234
  %v244 = vmul.f32 %v219, %v239
  %v245 = vadd.f32 %v207, %v241
  %v246 = vadd.f32 %v208, %v242
  %v247 = vadd.f32 %v209, %v243
  %v248 = vadd.f32 %v210, %v244
  %v249 = vmul.f32 %v165, 2.0
  %v250 = vmul.f32 %v167, 2.0
  %v251 = vmul.f32 %v169, 2.0
  %v252 = vmul.f32 %v171, 2.0
  %v253 = vsub.f32 %v249, 0.5
  %v254 = vsub.f32 %v250, 0.5
  %v255 = vsub.f32 %v251, 0.5
  %v256 = vsub.f32 %v252, 0.5
  %v257 = vadd.f32 %v253, %v245
  %v258 = vadd.f32 %v254, %v246
  %v259 = vadd.f32 %v255, %v247
  %v260 = vadd.f32 %v256, %v248
  %v261 = vmul.f32 %v257, 16.0
  %v262 = vmul.f32 %v258, 16.0
  %v263 = vmul.f32 %v259, 16.0
  %v264 = vmul.f32 %v260, 16.0
  %v265 = vmul.f32 %v249, %v249
  %v266 = vmul.f32 %v250, %v250
  %v267 = vmul.f32 %v251, %v251
  %v268 = vmul.f32 %v252, %v252
  %v270 = vlaneseq
  %v271 = vshrl.u32 %v270, 7
  %v272 = vsub.s32 0, %v271
  %v273 = vrot.slane %v175, %v272
  %v275 = vmul.f32 %v265, %v273
  %v276 = vmul.f32 %v266, %v273
  %v277 = vmul.f32 %v267, %v273
  %v278 = vmul.f32 %v268, %v273
  %v280 = vlaneseq
  %v281 = vshrl.u32 %v280, 7
  %v282 = vsub.s32 0, %v281
  %v283 = vrot.slane %v176, %v282
  %v285 = vmul.f32 %v283, %v261
  %v286 = vmul.f32 %v283, %v262
  %v287 = vmul.f32 %v283, %v263
  %v288 = vmul.f32 %v283, %v264
  %v290 = vlaneseq
  %v291 = vshrl.u32 %v290, 7
  %v292 = vsub.s32 0, %v291
  %v293 = vrot.slane %v174, %v292
  %v295 = vmul.f32 %v293, %v275
  %v296 = vmul.f32 %v293, %v276
  %v297 = vmul.f32 %v293, %v277
  %v298 = vmul.f32 %v293, %v278
  %v299 = vadd.f32 %v285, %v295
  %v300 = vadd.f32 %v286, %v296
  %v301 = vadd.f32 %v287, %v297
  %v302 = vadd.f32 %v288, %v298
  %v303 = vsub.f32 1.0, %v176
  %v304 = vsub.f32 %v303, %v174
  %v306 = vlaneseq
  %v307 = vshrl.u32 %v306, 7
  %v308 = vsub.s32 0, %v307
  %v309 = vrot.slane %v304, %v308
  %v311 = vmul.f32 %v309, %v165
  %v312 = vmul.f32 %v309, %v167
  %v313 = vmul.f32 %v309, %v169
  %v314 = vmul.f32 %v309, %v171
  %v315 = vadd.f32 %v299, %v311
  %v316 = vadd.f32 %v300, %v312
  %v317 = vadd.f32 %v301, %v313
  %v318 = vadd.f32 %v302, %v314
  %319 = vst [vmem:[%s10] sm:$0xff] %v315
  %320 = vst [vmem:[%s10 + $0x8] sm:$0xff] %v316
  %321 = vst [vmem:[%s10 + $0x10] sm:$0xff] %v317
  %322 = vst [vmem:[%s10 + $0x18] sm:$0xff] %v318
  // Predicated region
  $region38: #{model_forward.14} parent=0 // pred_check
    _
  $region39: #{model_forward.14} parent=0 // pred_check_branch
    %324 = sbr.rel (0) target = $region41
  $region40: #{model_forward.14} parent=0 // pred_region
    _
  $region41: #{model_forward.14} parent=0 // pred_fallthru
    _
  // Predicated region
  $region42: #{model_forward.14} parent=0 // pred_check
    _
  $region43: #{model_forward.14} parent=0 // pred_check_branch
    %326 = sbr.rel (0) target = $region45
  $region44: #{model_forward.14} parent=0 // pred_region
    _
  $region45: #{model_forward.14} parent=0 // pred_fallthru
    _
  // Predicated region
  $region46: #{model_forward.14} parent=0 // pred_check
    _
  $region47: #{model_forward.14} parent=0 // pred_check_branch
    %328 = sbr.rel (0) target = $region49
  $region48: #{model_forward.14} parent=0 // pred_region
    _
  $region49: #{model_forward.14} parent=0 // pred_fallthru
    _
  // Predicated region
  $region50: #{model_forward.14} parent=0 // pred_check
    _
  $region51: #{model_forward.14} parent=0 // pred_check_branch
    %330 = sbr.rel (0) target = $region53
  $region52: #{model_forward.14} parent=0 // pred_region
    _
  $region53: #{model_forward.14} parent=0 // pred_fallthru
    _

</llo_original>
